<compile_context>
chip_gen: v7x
topology: tpu7x:2x2x1
jax: 0.10.0
libtpu: 0.0.40
codegen_flags: <defaults>
</compile_context>

<pallas_src>
import math
import jax
import jax.numpy as jnp
import numpy as np
from jax import lax
from jax.experimental import pallas as pl
from jax.experimental.pallas import tpu as pltpu


def _vmem_limit_bytes():
    # ~96 MiB on 128-MiB parts (v5e/v6e), ~48 MiB on v7x (64 MiB physical).
    try:
        cap = pltpu.get_tpu_info().vmem_capacity_bytes
    except Exception:
        cap = 64 * 1024 * 1024
    return int(min(100 * 1024 * 1024, cap * 3 // 4))


# ----------------------------- small helpers -------------------------------

def _layernorm(x, gamma, beta, eps=1e-5):
    x = x.astype(jnp.float32)
    mu = jnp.mean(x, axis=-1, keepdims=True)
    var = jnp.mean((x - mu) ** 2, axis=-1, keepdims=True)
    return (x - mu) * lax.rsqrt(var + eps) * gamma + beta


# --------------- fused proj_in + (PerceiverAttention + FF) x depth ----------

def _make_fused_layers_kernel(B, n1, n2, heads, dim_head):
    inner = heads * dim_head
    inv_sqrt_dh = 1.0 / math.sqrt(dim_head)   # == (dh**-0.25)**2 of the reference
    bf16 = jnp.bfloat16

    def kernel(x_raw_ref, lat0_ref, win_ref, bin_ref,
               ln_ref, wqkv_ref, wo_ref, w1_ref, w2_ref,
               out_ref, x_scr):
        d = pl.program_id(0)
        dim = out_ref.shape[-1]
        emb = x_raw_ref.shape[-1]

        @pl.when(d == 0)
        def _init():
            # latents start value, resident in the output block across all layers
            out_ref[...] = jnp.broadcast_to(lat0_ref[...], out_ref.shape)
            # fused proj_in: computed once, kept in VMEM for the whole depth loop
            xr = x_raw_ref[...].reshape(B * n1, emb).astype(bf16)
            xp = (jnp.dot(xr, win_ref[...], preferred_element_type=jnp.float32)
                  + bin_ref[...])
            x_scr[...] = xp.reshape(B, n1, dim)

        lat = out_ref[...]                     # (B, n2, dim) f32
        x = x_scr[...]                         # (B, n1, dim) f32

        lnv = ln_ref[0]                        # (6, dim): g1,b1,g2,b2,ffg,ffb
        g1, b1 = lnv[0:1], lnv[1:2]
        g2, b2 = lnv[2:3], lnv[3:4]
        fg, fb = lnv[4:5], lnv[5:6]

        # ------------------------- PerceiverAttention -------------------------
        xn = _layernorm(x, g1, b1).reshape(B * n1, dim).astype(bf16)
        lnl = _layernorm(lat, g2, b2).reshape(B * n2, dim).astype(bf16)

        wqkv = wqkv_ref[0]                     # (dim, 3*inner) bf16, q|k|v fused
        # latents: one fused matmul producing q | k_l | v_l
        qkv_l = jnp.dot(lnl, wqkv, preferred_element_type=jnp.float32)   # (B*n2, 3*inner)
        # image tokens: one fused matmul producing k_x | v_x
        kv_x = jnp.dot(xn, wqkv[:, inner:], preferred_element_type=jnp.float32)

        q = (qkv_l[:, :inner] * inv_sqrt_dh).astype(bf16).reshape(B, n2, inner)
        k_l = qkv_l[:, inner:2 * inner].astype(bf16).reshape(B, n2, inner)
        v_l = qkv_l[:, 2 * inner:].astype(bf16).reshape(B, n2, inner)
        k_x = kv_x[:, :inner].astype(bf16).reshape(B, n1, inner)
        v_x = kv_x[:, inner:].astype(bf16).reshape(B, n1, inner)

        # per-head attention; image-token and latent k/v kept separate and combined
        # with a two-block softmax (no kv concat as in the reference)
        o_heads = []
        for h in range(heads):                 # static unroll over heads
            hs = slice(h * dim_head, (h + 1) * dim_head)
            qh = q[:, :, hs]
            s_x = jnp.einsum('bqd,bkd->bqk', qh, k_x[:, :, hs],
                             preferred_element_type=jnp.float32)          # (B, n2, n1)
            s_l = jnp.einsum('bqd,bkd->bqk', qh, k_l[:, :, hs],
                             preferred_element_type=jnp.float32)          # (B, n2, n2)
            m = jnp.maximum(s_x.max(-1, keepdims=True), s_l.max(-1, keepdims=True))
            e_x = jnp.exp(s_x - m)
            e_l = jnp.exp(s_l - m)
            inv = pl.reciprocal(e_x.sum(-1, keepdims=True)
                                + e_l.sum(-1, keepdims=True), approx=False)
            o_h = (jnp.einsum('bqk,bkd->bqd', (e_x * inv).astype(bf16), v_x[:, :, hs],
                              preferred_element_type=jnp.float32)
                   + jnp.einsum('bqk,bkd->bqd', (e_l * inv).astype(bf16), v_l[:, :, hs],
                                preferred_element_type=jnp.float32))
            o_heads.append(o_h)

        # head-major lane concat (layout plumbing only) -> ONE wide W_o matmul (K=inner)
        o = jnp.concatenate(o_heads, axis=-1).reshape(B * n2, inner).astype(bf16)
        attn = jnp.dot(o, wo_ref[0], preferred_element_type=jnp.float32)  # (B*n2, dim)
        lat = lat + attn.reshape(B, n2, dim)   # residual 1 (f32)

        # ----------------------------- FeedForward ----------------------------
        hN = _layernorm(lat, fg, fb).reshape(B * n2, dim).astype(bf16)
        h1 = jnp.dot(hN, w1_ref[0], preferred_element_type=jnp.float32)
        # exact GELU (PyTorch nn.GELU default): 0.5*x*(1+erf(x/sqrt(2)))
        h1 = 0.5 * h1 * (1.0 + lax.erf(h1 * 0.7071067811865476))
        h2 = jnp.dot(h1.astype(bf16), w2_ref[0], preferred_element_type=jnp.float32)

        out_ref[...] = lat + h2.reshape(B, n2, dim)   # residual 2; resident over depth

    return kernel


def fused_layers(x_raw, params, *, heads, dim_head):
    B, n1, emb = x_raw.shape
    lat0 = params["latents"]
    n2, dim = lat0.shape[1], lat0.shape[2]
    depth = params["wqkv"].shape[0]
    inner = heads * dim_head
    inner_ff = params["w1"].shape[-1]

    return pl.pallas_call(
        _make_fused_layers_kernel(B, n1, n2, heads, dim_head),
        out_shape=jax.ShapeDtypeStruct((B, n2, dim), jnp.float32),
        grid=(depth,),
        in_specs=[
            pl.BlockSpec((B, n1, emb), lambda d: (0, 0, 0)),            # raw x (DMA'd once)
            pl.BlockSpec((1, n2, dim), lambda d: (0, 0, 0)),            # latents init
            pl.BlockSpec((emb, dim), lambda d: (0, 0)),                 # proj_in W (bf16)
            pl.BlockSpec((1, dim), lambda d: (0, 0)),                   # proj_in b
            pl.BlockSpec((1, 6, dim), lambda d: (d, 0, 0)),             # packed LN vectors
            pl.BlockSpec((1, dim, 3 * inner), lambda d: (d, 0, 0)),     # fused W_qkv
            pl.BlockSpec((1, inner, dim), lambda d: (d, 0, 0)),         # W_o
            pl.BlockSpec((1, dim, inner_ff), lambda d: (d, 0, 0)),      # FF W1
            pl.BlockSpec((1, inner_ff, dim), lambda d: (d, 0, 0)),      # FF W2
        ],
        out_specs=pl.BlockSpec((B, n2, dim), lambda d: (0, 0, 0)),      # resident over d
        scratch_shapes=[pltpu.VMEM((B, n1, dim), jnp.float32)],         # projected x
        compiler_params=pltpu.CompilerParams(
            dimension_semantics=("arbitrary",),
            vmem_limit_bytes=_vmem_limit_bytes()),
    )(x_raw, lat0, params["proj_in_w"], params["proj_in_b"],
      params["ln"], params["wqkv"], params["wo"], params["w1"], params["w2"])


# -------------------------- proj_out + norm_out kernel ----------------------

def _proj_out_kernel(lat_ref, w_ref, bias_ref, g_ref, be_ref, o_ref):
    B, n2, dim = lat_ref.shape
    y = (jnp.dot(lat_ref[...].reshape(B * n2, dim).astype(jnp.bfloat16), w_ref[...],
                 preferred_element_type=jnp.float32) + bias_ref[...])
    y = _layernorm(y, g_ref[...], be_ref[...])
    o_ref[...] = y.reshape(o_ref.shape)


def proj_out_norm(latents, w_bf16, b, gamma, beta):
    B, n2, dim = latents.shape
    dout = w_bf16.shape[1]
    return pl.pallas_call(
        _proj_out_kernel,
        out_shape=jax.ShapeDtypeStruct((B, n2, dout), jnp.float32),
        grid=(1,),
        in_specs=[
            pl.BlockSpec((B, n2, dim), lambda i: (0, 0, 0)),
            pl.BlockSpec((dim, dout), lambda i: (0, 0)),
            pl.BlockSpec((1, dout), lambda i: (0, 0)),
            pl.BlockSpec((1, dout), lambda i: (0, 0)),
            pl.BlockSpec((1, dout), lambda i: (0, 0)),
        ],
        out_specs=pl.BlockSpec((B, n2, dout), lambda i: (0, 0, 0)),
        compiler_params=pltpu.CompilerParams(
            dimension_semantics=("arbitrary",),
            vmem_limit_bytes=_vmem_limit_bytes()),
    )(latents, w_bf16, b, gamma, beta)


# ----------------------------- Resampler forward ----------------------------

def resampler_forward(x, params, *, heads, dim_head):
    latents = fused_layers(x, params, heads=heads, dim_head=dim_head)
    return proj_out_norm(latents, params["proj_out_w"], params["proj_out_b"],
                         params["norm_out_g"], params["norm_out_b"])


# ------------------------------ parameters ----------------------------------
# Per-layer params are pre-stacked along depth and pre-fused at init time
# (no per-forward stacking / HBM copies).

def init_params(key, *, dim, depth, dim_head, heads, num_queries,
                embedding_dim, output_dim, ff_mult):
    inner = dim_head * heads
    inner_ff = int(dim * ff_mult)
    ks = iter(jax.random.split(key, 24))
    bf16 = jnp.bfloat16

    def rnd(shape, scale, dtype=jnp.float32):
        return (jax.random.normal(next(ks), shape, jnp.float32) * scale).astype(dtype)

    # packed LayerNorm vectors per layer: [norm1_g, norm1_b, norm2_g, norm2_b, ffg, ffb]
    ln = jnp.stack([
        1.0 + rnd((depth, dim), 0.05), rnd((depth, dim), 0.05),
        1.0 + rnd((depth, dim), 0.05), rnd((depth, dim), 0.05),
        1.0 + rnd((depth, dim), 0.05), rnd((depth, dim), 0.05),
    ], axis=1)                                             # (depth, 6, dim)

    return {
        "latents": rnd((1, num_queries, dim), 1.0 / math.sqrt(dim)),
        "proj_in_w": rnd((embedding_dim, dim), 0.05, bf16),
        "proj_in_b": rnd((1, dim), 0.05),
        "proj_out_w": rnd((dim, output_dim), 0.05, bf16),
        "proj_out_b": rnd((1, output_dim), 0.05),
        "norm_out_g": 1.0 + rnd((1, output_dim), 0.05),
        "norm_out_b": rnd((1, output_dim), 0.05),
        "ln": ln,
        "wqkv": rnd((depth, dim, 3 * inner), 0.05, bf16),  # to_q | to_kv fused
        "wo": rnd((depth, inner, dim), 0.05, bf16),
        "w1": rnd((depth, dim, inner_ff), 0.05, bf16),
        "w2": rnd((depth, inner_ff, dim), 0.05, bf16),
    }


# --------------------------- pure-JAX f32 reference --------------------------

def reference_forward(x, params, heads, dim_head):
    f32 = lambda a: a.astype(jnp.float32)

    def ln(v, g, b, eps=1e-5):
        mu = v.mean(-1, keepdims=True)
        var = ((v - mu) ** 2).mean(-1, keepdims=True)
        return (v - mu) / jnp.sqrt(var + eps) * g + b

    B = x.shape[0]
    inner = heads * dim_head
    lat = jnp.broadcast_to(params["latents"], (B,) + params["latents"].shape[1:])
    x = x @ f32(params["proj_in_w"]) + params["proj_in_b"]
    scale = 1.0 / math.sqrt(math.sqrt(dim_head))
    for d in range(params["wqkv"].shape[0]):
        g1, b1, g2, b2, fg, fb = [params["ln"][d, i] for i in range(6)]
        wq = f32(params["wqkv"][d, :, :inner])
        wkv = f32(params["wqkv"][d, :, inner:])
        wo = f32(params["wo"][d])
        w1 = f32(params["w1"][d])
        w2 = f32(params["w2"][d])

        xn = ln(x, g1, b1)
        lnl = ln(lat, g2, b2)
        q = lnl @ wq
        kv = jnp.concatenate([xn, lnl], axis=1) @ wkv
        k, v = kv[..., :inner], kv[..., inner:]

        def split(t):
            bsz, L, _ = t.shape
            return t.reshape(bsz, L, heads, dim_head).transpose(0, 2, 1, 3)

        qh, kh, vh = split(q), split(k), split(v)
        w_ = jnp.einsum("bhqd,bhkd->bhqk", qh * scale, kh * scale)
        w_ = jax.nn.softmax(w_, axis=-1)
        o = jnp.einsum("bhqk,bhkd->bhqd", w_, vh)
        o = o.transpose(0, 2, 1, 3).reshape(B, lat.shape[1], inner)
        lat = o @ wo + lat

        h = ln(lat, fg, fb) @ w1
        h = 0.5 * h * (1.0 + lax.erf(h * 0.7071067811865476))
        lat = h @ w2 + lat

    y = lat @ f32(params["proj_out_w"]) + params["proj_out_b"]
    return ln(y, params["norm_out_g"], params["norm_out_b"])


# ----------------------------------- main ------------------------------------

if __name__ == "__main__":
    # small but structurally faithful config
    B, SEQ = 2, 16
    DIM, DEPTH, DIM_HEAD, HEADS = 64, 2, 16, 4
    NUM_QUERIES, EMB_DIM, OUT_DIM, FF_MULT = 8, 32, 64, 2

    key = jax.random.PRNGKey(0)
    kx, kp = jax.random.split(key)
    x = jax.random.normal(kx, (B, SEQ, EMB_DIM), jnp.float32)
    params = init_params(kp, dim=DIM, depth=DEPTH, dim_head=DIM_HEAD, heads=HEADS,
                         num_queries=NUM_QUERIES, embedding_dim=EMB_DIM,
                         output_dim=OUT_DIM, ff_mult=FF_MULT)

    out = resampler_forward(x, params, heads=HEADS, dim_head=DIM_HEAD)
    out = jax.block_until_ready(out)

    ref = reference_forward(x, params, HEADS, DIM_HEAD)
    assert out.shape == (B, NUM_QUERIES, OUT_DIM), out.shape
    # bf16 MXU operands in the kernel vs. a pure-f32 reference => widened tolerance
    # (the final LayerNorm normalizes the output to ~unit scale).
    np.testing.assert_allclose(np.asarray(out), np.asarray(ref), rtol=5e-2, atol=5e-2)

    print("KERNEL_OK")
</pallas_src>

<mosaic_0001>
module attributes {stable_mosaic.version = 11 : i64} {
  func.func @kernel(%arg0: i32, %arg1: memref<2x16x32xf32, #tpu.memory_space<vmem>>, %arg2: memref<1x8x64xf32, #tpu.memory_space<vmem>>, %arg3: memref<32x64xbf16, #tpu.memory_space<vmem>>, %arg4: memref<1x64xf32, #tpu.memory_space<vmem>>, %arg5: memref<1x6x64xf32, #tpu.memory_space<vmem>>, %arg6: memref<1x64x192xbf16, #tpu.memory_space<vmem>>, %arg7: memref<1x64x64xbf16, #tpu.memory_space<vmem>>, %arg8: memref<1x64x128xbf16, #tpu.memory_space<vmem>>, %arg9: memref<1x128x64xbf16, #tpu.memory_space<vmem>>, %arg10: memref<2x8x64xf32, #tpu.memory_space<vmem>>, %arg11: memref<2x16x64xf32, #tpu.memory_space<vmem>>) attributes {dimension_semantics = [#tpu.dimension_semantics<arbitrary>], iteration_bounds = array<i64: 2>, scalar_prefetch = 0 : i64, scratch_operands = 1 : i64, tpu.core_type = #tpu.core_type<tc>, window_params = [{pipeline_mode = #tpu.pipeline_mode<synchronous>, transform_indices = @transform_0, window_bounds = array<i64: 2, 16, 32>}, {pipeline_mode = #tpu.pipeline_mode<synchronous>, transform_indices = @transform_1, window_bounds = array<i64: 1, 8, 64>}, {pipeline_mode = #tpu.pipeline_mode<synchronous>, transform_indices = @transform_2, window_bounds = array<i64: 32, 64>}, {pipeline_mode = #tpu.pipeline_mode<synchronous>, transform_indices = @transform_3, window_bounds = array<i64: 1, 64>}, {transform_indices = @transform_4, window_bounds = array<i64: 1, 6, 64>}, {transform_indices = @transform_5, window_bounds = array<i64: 1, 64, 192>}, {transform_indices = @transform_6, window_bounds = array<i64: 1, 64, 64>}, {transform_indices = @transform_7, window_bounds = array<i64: 1, 64, 128>}, {transform_indices = @transform_8, window_bounds = array<i64: 1, 128, 64>}, {pipeline_mode = #tpu.pipeline_mode<synchronous>, transform_indices = @transform_9, window_bounds = array<i64: 2, 8, 64>}]} {
    %c0_i32 = arith.constant 0 : i32
    %0 = arith.cmpi eq, %arg0, %c0_i32 : i32
    %1 = arith.extui %0 : i1 to i32
    %c0_i32_0 = arith.constant 0 : i32
    %2 = arith.cmpi ne, %1, %c0_i32_0 : i32
    scf.if %2 {
      %c0_79 = arith.constant 0 : index
      %c0_80 = arith.constant 0 : index
      %c0_81 = arith.constant 0 : index
      %271 = vector.load %arg2[%c0_79, %c0_80, %c0_81] : memref<1x8x64xf32, #tpu.memory_space<vmem>>, vector<1x8x64xf32>
      %272 = vector.shape_cast %271 : vector<1x8x64xf32> to vector<1x8x64xf32>
      %273 = vector.broadcast %272 : vector<1x8x64xf32> to vector<2x8x64xf32>
      %c0_82 = arith.constant 0 : index
      %c0_83 = arith.constant 0 : index
      %c0_84 = arith.constant 0 : index
      %274 = vector.load %arg10[%c0_82, %c0_83, %c0_84] : memref<2x8x64xf32, #tpu.memory_space<vmem>>, vector<2x8x64xf32>
      tpu.vector_store %arg10[%c0_82, %c0_83, %c0_84], %273 {strides = array<i32>} : memref<2x8x64xf32, #tpu.memory_space<vmem>>, vector<2x8x64xf32>,
      %c0_85 = arith.constant 0 : index
      %c0_86 = arith.constant 0 : index
      %c0_87 = arith.constant 0 : index
      %275 = vector.load %arg1[%c0_85, %c0_86, %c0_87] : memref<2x16x32xf32, #tpu.memory_space<vmem>>, vector<2x16x32xf32>
      %276 = vector.shape_cast %275 : vector<2x16x32xf32> to vector<32x32xf32>
      %277 = arith.truncf %276 : vector<32x32xf32> to vector<32x32xbf16>
      %c0_88 = arith.constant 0 : index
      %c0_89 = arith.constant 0 : index
      %278 = vector.load %arg3[%c0_88, %c0_89] : memref<32x64xbf16, #tpu.memory_space<vmem>>, vector<32x64xbf16>
      %cst_90 = arith.constant dense<0.000000e+00> : vector<32x64xf32>
      %279 = tpu.matmul %277, %278, %cst_90 {dimension_numbers = #tpu.dot_dimension_numbers<[1], [0], [0], [1], [0, 0, 1, 1], [], []>} : vector<32x32xbf16>, vector<32x64xbf16>, vector<32x64xf32> -> vector<32x64xf32>
      %c0_91 = arith.constant 0 : index
      %c0_92 = arith.constant 0 : index
      %280 = vector.load %arg4[%c0_91, %c0_92] : memref<1x64xf32, #tpu.memory_space<vmem>>, vector<1x64xf32>
      %281 = vector.broadcast %280 : vector<1x64xf32> to vector<32x64xf32>
      %282 = arith.addf %279, %281 : vector<32x64xf32>
      %283 = vector.shape_cast %282 : vector<32x64xf32> to vector<2x16x64xf32>
      %c0_93 = arith.constant 0 : index
      %c0_94 = arith.constant 0 : index
      %c0_95 = arith.constant 0 : index
      %284 = vector.load %arg11[%c0_93, %c0_94, %c0_95] : memref<2x16x64xf32, #tpu.memory_space<vmem>>, vector<2x16x64xf32>
      tpu.vector_store %arg11[%c0_93, %c0_94, %c0_95], %283 {strides = array<i32>} : memref<2x16x64xf32, #tpu.memory_space<vmem>>, vector<2x16x64xf32>,
    } else {
    }
    %c0 = arith.constant 0 : index
    %c0_1 = arith.constant 0 : index
    %c0_2 = arith.constant 0 : index
    %3 = vector.load %arg10[%c0, %c0_1, %c0_2] : memref<2x8x64xf32, #tpu.memory_space<vmem>>, vector<2x8x64xf32>
    %c0_3 = arith.constant 0 : index
    %c0_4 = arith.constant 0 : index
    %c0_5 = arith.constant 0 : index
    %4 = vector.load %arg11[%c0_3, %c0_4, %c0_5] : memref<2x16x64xf32, #tpu.memory_space<vmem>>, vector<2x16x64xf32>
    %c0_6 = arith.constant 0 : index
    %c0_7 = arith.constant 0 : index
    %c0_8 = arith.constant 0 : index
    %5 = vector.load %arg5[%c0_6, %c0_7, %c0_8] : memref<1x6x64xf32, #tpu.memory_space<vmem>>, vector<1x6x64xf32>
    %6 = vector.shape_cast %5 : vector<1x6x64xf32> to vector<6x64xf32>
    %7 = vector.extract_strided_slice %6 {offsets = [0, 0], sizes = [1, 64], strides = [1, 1]} : vector<6x64xf32> to vector<1x64xf32>
    %8 = vector.extract_strided_slice %6 {offsets = [1, 0], sizes = [1, 64], strides = [1, 1]} : vector<6x64xf32> to vector<1x64xf32>
    %9 = vector.extract_strided_slice %6 {offsets = [2, 0], sizes = [1, 64], strides = [1, 1]} : vector<6x64xf32> to vector<1x64xf32>
    %10 = vector.extract_strided_slice %6 {offsets = [3, 0], sizes = [1, 64], strides = [1, 1]} : vector<6x64xf32> to vector<1x64xf32>
    %11 = vector.extract_strided_slice %6 {offsets = [4, 0], sizes = [1, 64], strides = [1, 1]} : vector<6x64xf32> to vector<1x64xf32>
    %12 = vector.extract_strided_slice %6 {offsets = [5, 0], sizes = [1, 64], strides = [1, 1]} : vector<6x64xf32> to vector<1x64xf32>
    %cst = arith.constant dense<0.000000e+00> : vector<2x16xf32>
    %13 = vector.multi_reduction <add>, %4, %cst [2] : vector<2x16x64xf32> to vector<2x16xf32>
    %14 = vector.shape_cast %13 : vector<2x16xf32> to vector<2x16x1xf32>
    %cst_9 = arith.constant 6.400000e+01 : f32
    %15 = vector.broadcast %cst_9 : f32 to vector<2x16x1xf32>
    %16 = arith.divf %14, %15 : vector<2x16x1xf32>
    %17 = vector.broadcast %16 : vector<2x16x1xf32> to vector<2x16x64xf32>
    %18 = arith.subf %4, %17 : vector<2x16x64xf32>
    %19 = arith.mulf %18, %18 : vector<2x16x64xf32>
    %cst_10 = arith.constant dense<0.000000e+00> : vector<2x16xf32>
    %20 = vector.multi_reduction <add>, %19, %cst_10 [2] : vector<2x16x64xf32> to vector<2x16xf32>
    %21 = vector.shape_cast %20 : vector<2x16xf32> to vector<2x16x1xf32>
    %cst_11 = arith.constant 6.400000e+01 : f32
    %22 = vector.broadcast %cst_11 : f32 to vector<2x16x1xf32>
    %23 = arith.divf %21, %22 : vector<2x16x1xf32>
    %24 = vector.broadcast %16 : vector<2x16x1xf32> to vector<2x16x64xf32>
    %25 = arith.subf %4, %24 : vector<2x16x64xf32>
    %cst_12 = arith.constant 9.99999974E-6 : f32
    %26 = vector.broadcast %cst_12 : f32 to vector<2x16x1xf32>
    %27 = arith.addf %23, %26 : vector<2x16x1xf32>
    %28 = math.rsqrt %27 : vector<2x16x1xf32>
    %29 = vector.broadcast %28 : vector<2x16x1xf32> to vector<2x16x64xf32>
    %30 = arith.mulf %25, %29 : vector<2x16x64xf32>
    %31 = vector.shape_cast %7 : vector<1x64xf32> to vector<1x1x64xf32>
    %32 = vector.broadcast %31 : vector<1x1x64xf32> to vector<2x16x64xf32>
    %33 = arith.mulf %30, %32 : vector<2x16x64xf32>
    %34 = vector.shape_cast %8 : vector<1x64xf32> to vector<1x1x64xf32>
    %35 = vector.broadcast %34 : vector<1x1x64xf32> to vector<2x16x64xf32>
    %36 = arith.addf %33, %35 : vector<2x16x64xf32>
    %37 = vector.shape_cast %36 : vector<2x16x64xf32> to vector<32x64xf32>
    %38 = arith.truncf %37 : vector<32x64xf32> to vector<32x64xbf16>
    %cst_13 = arith.constant dense<0.000000e+00> : vector<2x8xf32>
    %39 = vector.multi_reduction <add>, %3, %cst_13 [2] : vector<2x8x64xf32> to vector<2x8xf32>
    %40 = vector.shape_cast %39 : vector<2x8xf32> to vector<2x8x1xf32>
    %cst_14 = arith.constant 6.400000e+01 : f32
    %41 = vector.broadcast %cst_14 : f32 to vector<2x8x1xf32>
    %42 = arith.divf %40, %41 : vector<2x8x1xf32>
    %43 = vector.broadcast %42 : vector<2x8x1xf32> to vector<2x8x64xf32>
    %44 = arith.subf %3, %43 : vector<2x8x64xf32>
    %45 = arith.mulf %44, %44 : vector<2x8x64xf32>
    %cst_15 = arith.constant dense<0.000000e+00> : vector<2x8xf32>
    %46 = vector.multi_reduction <add>, %45, %cst_15 [2] : vector<2x8x64xf32> to vector<2x8xf32>
    %47 = vector.shape_cast %46 : vector<2x8xf32> to vector<2x8x1xf32>
    %cst_16 = arith.constant 6.400000e+01 : f32
    %48 = vector.broadcast %cst_16 : f32 to vector<2x8x1xf32>
    %49 = arith.divf %47, %48 : vector<2x8x1xf32>
    %50 = vector.broadcast %42 : vector<2x8x1xf32> to vector<2x8x64xf32>
    %51 = arith.subf %3, %50 : vector<2x8x64xf32>
    %cst_17 = arith.constant 9.99999974E-6 : f32
    %52 = vector.broadcast %cst_17 : f32 to vector<2x8x1xf32>
    %53 = arith.addf %49, %52 : vector<2x8x1xf32>
    %54 = math.rsqrt %53 : vector<2x8x1xf32>
    %55 = vector.broadcast %54 : vector<2x8x1xf32> to vector<2x8x64xf32>
    %56 = arith.mulf %51, %55 : vector<2x8x64xf32>
    %57 = vector.shape_cast %9 : vector<1x64xf32> to vector<1x1x64xf32>
    %58 = vector.broadcast %57 : vector<1x1x64xf32> to vector<2x8x64xf32>
    %59 = arith.mulf %56, %58 : vector<2x8x64xf32>
    %60 = vector.shape_cast %10 : vector<1x64xf32> to vector<1x1x64xf32>
    %61 = vector.broadcast %60 : vector<1x1x64xf32> to vector<2x8x64xf32>
    %62 = arith.addf %59, %61 : vector<2x8x64xf32>
    %63 = vector.shape_cast %62 : vector<2x8x64xf32> to vector<16x64xf32>
    %64 = arith.truncf %63 : vector<16x64xf32> to vector<16x64xbf16>
    %c0_18 = arith.constant 0 : index
    %c0_19 = arith.constant 0 : index
    %c0_20 = arith.constant 0 : index
    %65 = vector.load %arg6[%c0_18, %c0_19, %c0_20] : memref<1x64x192xbf16, #tpu.memory_space<vmem>>, vector<1x64x192xbf16>
    %66 = vector.shape_cast %65 : vector<1x64x192xbf16> to vector<64x192xbf16>
    %cst_21 = arith.constant dense<0.000000e+00> : vector<16x192xf32>
    %67 = tpu.matmul %64, %66, %cst_21 {dimension_numbers = #tpu.dot_dimension_numbers<[1], [0], [0], [1], [0, 0, 1, 1], [], []>} : vector<16x64xbf16>, vector<64x192xbf16>, vector<16x192xf32> -> vector<16x192xf32>
    %68 = vector.extract_strided_slice %66 {offsets = [0, 64], sizes = [64, 128], strides = [1, 1]} : vector<64x192xbf16> to vector<64x128xbf16>
    %cst_22 = arith.constant dense<0.000000e+00> : vector<32x128xf32>
    %69 = tpu.matmul %38, %68, %cst_22 {dimension_numbers = #tpu.dot_dimension_numbers<[1], [0], [0], [1], [0, 0, 1, 1], [], []>} : vector<32x64xbf16>, vector<64x128xbf16>, vector<32x128xf32> -> vector<32x128xf32>
    %70 = vector.extract_strided_slice %67 {offsets = [0, 0], sizes = [16, 64], strides = [1, 1]} : vector<16x192xf32> to vector<16x64xf32>
    %cst_23 = arith.constant 2.500000e-01 : f32
    %71 = vector.broadcast %cst_23 : f32 to vector<16x64xf32>
    %72 = arith.mulf %70, %71 : vector<16x64xf32>
    %73 = arith.truncf %72 : vector<16x64xf32> to vector<16x64xbf16>
    %74 = vector.shape_cast %73 : vector<16x64xbf16> to vector<2x8x64xbf16>
    %75 = vector.extract_strided_slice %67 {offsets = [0, 64], sizes = [16, 64], strides = [1, 1]} : vector<16x192xf32> to vector<16x64xf32>
    %76 = arith.truncf %75 : vector<16x64xf32> to vector<16x64xbf16>
    %77 = vector.shape_cast %76 : vector<16x64xbf16> to vector<2x8x64xbf16>
    %78 = vector.extract_strided_slice %67 {offsets = [0, 128], sizes = [16, 64], strides = [1, 1]} : vector<16x192xf32> to vector<16x64xf32>
    %79 = arith.truncf %78 : vector<16x64xf32> to vector<16x64xbf16>
    %80 = vector.shape_cast %79 : vector<16x64xbf16> to vector<2x8x64xbf16>
    %81 = vector.extract_strided_slice %69 {offsets = [0, 0], sizes = [32, 64], strides = [1, 1]} : vector<32x128xf32> to vector<32x64xf32>
    %82 = arith.truncf %81 : vector<32x64xf32> to vector<32x64xbf16>
    %83 = vector.shape_cast %82 : vector<32x64xbf16> to vector<2x16x64xbf16>
    %84 = vector.extract_strided_slice %69 {offsets = [0, 64], sizes = [32, 64], strides = [1, 1]} : vector<32x128xf32> to vector<32x64xf32>
    %85 = arith.truncf %84 : vector<32x64xf32> to vector<32x64xbf16>
    %86 = vector.shape_cast %85 : vector<32x64xbf16> to vector<2x16x64xbf16>
    %87 = vector.extract_strided_slice %74 {offsets = [0, 0, 0], sizes = [2, 8, 16], strides = [1, 1, 1]} : vector<2x8x64xbf16> to vector<2x8x16xbf16>
    %88 = vector.extract_strided_slice %83 {offsets = [0, 0, 0], sizes = [2, 16, 16], strides = [1, 1, 1]} : vector<2x16x64xbf16> to vector<2x16x16xbf16>
    "tpu.trace_start"() <{level = 10 : i32, message = "bqd,bkd->bqk"}> : () -> ()
    %cst_24 = arith.constant dense<0.000000e+00> : vector<2x8x16xf32>
    %89 = tpu.matmul %87, %88, %cst_24 {dimension_numbers = #tpu.dot_dimension_numbers<[2], [2], [1], [1], [0, 0, 0, 1, 1, 1], [0], [0]>} : vector<2x8x16xbf16>, vector<2x16x16xbf16>, vector<2x8x16xf32> -> vector<2x8x16xf32>
    "tpu.trace_stop"() : () -> ()
    %90 = vector.extract_strided_slice %77 {offsets = [0, 0, 0], sizes = [2, 8, 16], strides = [1, 1, 1]} : vector<2x8x64xbf16> to vector<2x8x16xbf16>
    "tpu.trace_start"() <{level = 10 : i32, message = "bqd,bkd->bqk"}> : () -> ()
    %cst_25 = arith.constant dense<0.000000e+00> : vector<2x8x8xf32>
    %91 = tpu.matmul %87, %90, %cst_25 {dimension_numbers = #tpu.dot_dimension_numbers<[2], [2], [1], [1], [0, 0, 0, 1, 1, 1], [0], [0]>} : vector<2x8x16xbf16>, vector<2x8x16xbf16>, vector<2x8x8xf32> -> vector<2x8x8xf32>
    "tpu.trace_stop"() : () -> ()
    %cst_26 = arith.constant dense<0xFF800000> : vector<2x8xf32>
    %92 = vector.multi_reduction <maximumf>, %89, %cst_26 [2] : vector<2x8x16xf32> to vector<2x8xf32>
    %93 = vector.shape_cast %92 : vector<2x8xf32> to vector<2x8x1xf32>
    %cst_27 = arith.constant dense<0xFF800000> : vector<2x8xf32>
    %94 = vector.multi_reduction <maximumf>, %91, %cst_27 [2] : vector<2x8x8xf32> to vector<2x8xf32>
    %95 = vector.shape_cast %94 : vector<2x8xf32> to vector<2x8x1xf32>
    %96 = arith.maximumf %93, %95 : vector<2x8x1xf32>
    %97 = vector.broadcast %96 : vector<2x8x1xf32> to vector<2x8x16xf32>
    %98 = arith.subf %89, %97 : vector<2x8x16xf32>
    %99 = math.exp %98 : vector<2x8x16xf32>
    %100 = vector.broadcast %96 : vector<2x8x1xf32> to vector<2x8x8xf32>
    %101 = arith.subf %91, %100 : vector<2x8x8xf32>
    %102 = math.exp %101 : vector<2x8x8xf32>
    %cst_28 = arith.constant dense<0.000000e+00> : vector<2x8xf32>
    %103 = vector.multi_reduction <add>, %99, %cst_28 [2] : vector<2x8x16xf32> to vector<2x8xf32>
    %104 = vector.shape_cast %103 : vector<2x8xf32> to vector<2x8x1xf32>
    %cst_29 = arith.constant dense<0.000000e+00> : vector<2x8xf32>
    %105 = vector.multi_reduction <add>, %102, %cst_29 [2] : vector<2x8x8xf32> to vector<2x8xf32>
    %106 = vector.shape_cast %105 : vector<2x8xf32> to vector<2x8x1xf32>
    %107 = arith.addf %104, %106 : vector<2x8x1xf32>
    %108 = tpu.reciprocal %107 : vector<2x8x1xf32> -> vector<2x8x1xf32>
    %109 = vector.broadcast %108 : vector<2x8x1xf32> to vector<2x8x16xf32>
    %110 = arith.mulf %99, %109 : vector<2x8x16xf32>
    %111 = arith.truncf %110 : vector<2x8x16xf32> to vector<2x8x16xbf16>
    %112 = vector.extract_strided_slice %86 {offsets = [0, 0, 0], sizes = [2, 16, 16], strides = [1, 1, 1]} : vector<2x16x64xbf16> to vector<2x16x16xbf16>
    "tpu.trace_start"() <{level = 10 : i32, message = "bqk,bkd->bqd"}> : () -> ()
    %cst_30 = arith.constant dense<0.000000e+00> : vector<2x8x16xf32>
    %113 = tpu.matmul %111, %112, %cst_30 {dimension_numbers = #tpu.dot_dimension_numbers<[2], [1], [1], [2], [0, 0, 0, 1, 1, 2], [0], [0]>} : vector<2x8x16xbf16>, vector<2x16x16xbf16>, vector<2x8x16xf32> -> vector<2x8x16xf32>
    "tpu.trace_stop"() : () -> ()
    %114 = vector.broadcast %108 : vector<2x8x1xf32> to vector<2x8x8xf32>
    %115 = arith.mulf %102, %114 : vector<2x8x8xf32>
    %116 = arith.truncf %115 : vector<2x8x8xf32> to vector<2x8x8xbf16>
    %117 = vector.extract_strided_slice %80 {offsets = [0, 0, 0], sizes = [2, 8, 16], strides = [1, 1, 1]} : vector<2x8x64xbf16> to vector<2x8x16xbf16>
    "tpu.trace_start"() <{level = 10 : i32, message = "bqk,bkd->bqd"}> : () -> ()
    %cst_31 = arith.constant dense<0.000000e+00> : vector<2x8x16xf32>
    %118 = tpu.matmul %116, %117, %cst_31 {dimension_numbers = #tpu.dot_dimension_numbers<[2], [1], [1], [2], [0, 0, 0, 1, 1, 2], [0], [0]>} : vector<2x8x8xbf16>, vector<2x8x16xbf16>, vector<2x8x16xf32> -> vector<2x8x16xf32>
    "tpu.trace_stop"() : () -> ()
    %119 = arith.addf %113, %118 : vector<2x8x16xf32>
    %120 = vector.extract_strided_slice %74 {offsets = [0, 0, 16], sizes = [2, 8, 16], strides = [1, 1, 1]} : vector<2x8x64xbf16> to vector<2x8x16xbf16>
    %121 = vector.extract_strided_slice %83 {offsets = [0, 0, 16], sizes = [2, 16, 16], strides = [1, 1, 1]} : vector<2x16x64xbf16> to vector<2x16x16xbf16>
    "tpu.trace_start"() <{level = 10 : i32, message = "bqd,bkd->bqk"}> : () -> ()
    %cst_32 = arith.constant dense<0.000000e+00> : vector<2x8x16xf32>
    %122 = tpu.matmul %120, %121, %cst_32 {dimension_numbers = #tpu.dot_dimension_numbers<[2], [2], [1], [1], [0, 0, 0, 1, 1, 1], [0], [0]>} : vector<2x8x16xbf16>, vector<2x16x16xbf16>, vector<2x8x16xf32> -> vector<2x8x16xf32>
    "tpu.trace_stop"() : () -> ()
    %123 = vector.extract_strided_slice %77 {offsets = [0, 0, 16], sizes = [2, 8, 16], strides = [1, 1, 1]} : vector<2x8x64xbf16> to vector<2x8x16xbf16>
    "tpu.trace_start"() <{level = 10 : i32, message = "bqd,bkd->bqk"}> : () -> ()
    %cst_33 = arith.constant dense<0.000000e+00> : vector<2x8x8xf32>
    %124 = tpu.matmul %120, %123, %cst_33 {dimension_numbers = #tpu.dot_dimension_numbers<[2], [2], [1], [1], [0, 0, 0, 1, 1, 1], [0], [0]>} : vector<2x8x16xbf16>, vector<2x8x16xbf16>, vector<2x8x8xf32> -> vector<2x8x8xf32>
    "tpu.trace_stop"() : () -> ()
    %cst_34 = arith.constant dense<0xFF800000> : vector<2x8xf32>
    %125 = vector.multi_reduction <maximumf>, %122, %cst_34 [2] : vector<2x8x16xf32> to vector<2x8xf32>
    %126 = vector.shape_cast %125 : vector<2x8xf32> to vector<2x8x1xf32>
    %cst_35 = arith.constant dense<0xFF800000> : vector<2x8xf32>
    %127 = vector.multi_reduction <maximumf>, %124, %cst_35 [2] : vector<2x8x8xf32> to vector<2x8xf32>
    %128 = vector.shape_cast %127 : vector<2x8xf32> to vector<2x8x1xf32>
    %129 = arith.maximumf %126, %128 : vector<2x8x1xf32>
    %130 = vector.broadcast %129 : vector<2x8x1xf32> to vector<2x8x16xf32>
    %131 = arith.subf %122, %130 : vector<2x8x16xf32>
    %132 = math.exp %131 : vector<2x8x16xf32>
    %133 = vector.broadcast %129 : vector<2x8x1xf32> to vector<2x8x8xf32>
    %134 = arith.subf %124, %133 : vector<2x8x8xf32>
    %135 = math.exp %134 : vector<2x8x8xf32>
    %cst_36 = arith.constant dense<0.000000e+00> : vector<2x8xf32>
    %136 = vector.multi_reduction <add>, %132, %cst_36 [2] : vector<2x8x16xf32> to vector<2x8xf32>
    %137 = vector.shape_cast %136 : vector<2x8xf32> to vector<2x8x1xf32>
    %cst_37 = arith.constant dense<0.000000e+00> : vector<2x8xf32>
    %138 = vector.multi_reduction <add>, %135, %cst_37 [2] : vector<2x8x8xf32> to vector<2x8xf32>
    %139 = vector.shape_cast %138 : vector<2x8xf32> to vector<2x8x1xf32>
    %140 = arith.addf %137, %139 : vector<2x8x1xf32>
    %141 = tpu.reciprocal %140 : vector<2x8x1xf32> -> vector<2x8x1xf32>
    %142 = vector.broadcast %141 : vector<2x8x1xf32> to vector<2x8x16xf32>
    %143 = arith.mulf %132, %142 : vector<2x8x16xf32>
    %144 = arith.truncf %143 : vector<2x8x16xf32> to vector<2x8x16xbf16>
    %145 = vector.extract_strided_slice %86 {offsets = [0, 0, 16], sizes = [2, 16, 16], strides = [1, 1, 1]} : vector<2x16x64xbf16> to vector<2x16x16xbf16>
    "tpu.trace_start"() <{level = 10 : i32, message = "bqk,bkd->bqd"}> : () -> ()
    %cst_38 = arith.constant dense<0.000000e+00> : vector<2x8x16xf32>
    %146 = tpu.matmul %144, %145, %cst_38 {dimension_numbers = #tpu.dot_dimension_numbers<[2], [1], [1], [2], [0, 0, 0, 1, 1, 2], [0], [0]>} : vector<2x8x16xbf16>, vector<2x16x16xbf16>, vector<2x8x16xf32> -> vector<2x8x16xf32>
    "tpu.trace_stop"() : () -> ()
    %147 = vector.broadcast %141 : vector<2x8x1xf32> to vector<2x8x8xf32>
    %148 = arith.mulf %135, %147 : vector<2x8x8xf32>
    %149 = arith.truncf %148 : vector<2x8x8xf32> to vector<2x8x8xbf16>
    %150 = vector.extract_strided_slice %80 {offsets = [0, 0, 16], sizes = [2, 8, 16], strides = [1, 1, 1]} : vector<2x8x64xbf16> to vector<2x8x16xbf16>
    "tpu.trace_start"() <{level = 10 : i32, message = "bqk,bkd->bqd"}> : () -> ()
    %cst_39 = arith.constant dense<0.000000e+00> : vector<2x8x16xf32>
    %151 = tpu.matmul %149, %150, %cst_39 {dimension_numbers = #tpu.dot_dimension_numbers<[2], [1], [1], [2], [0, 0, 0, 1, 1, 2], [0], [0]>} : vector<2x8x8xbf16>, vector<2x8x16xbf16>, vector<2x8x16xf32> -> vector<2x8x16xf32>
    "tpu.trace_stop"() : () -> ()
    %152 = arith.addf %146, %151 : vector<2x8x16xf32>
    %153 = vector.extract_strided_slice %74 {offsets = [0, 0, 32], sizes = [2, 8, 16], strides = [1, 1, 1]} : vector<2x8x64xbf16> to vector<2x8x16xbf16>
    %154 = vector.extract_strided_slice %83 {offsets = [0, 0, 32], sizes = [2, 16, 16], strides = [1, 1, 1]} : vector<2x16x64xbf16> to vector<2x16x16xbf16>
    "tpu.trace_start"() <{level = 10 : i32, message = "bqd,bkd->bqk"}> : () -> ()
    %cst_40 = arith.constant dense<0.000000e+00> : vector<2x8x16xf32>
    %155 = tpu.matmul %153, %154, %cst_40 {dimension_numbers = #tpu.dot_dimension_numbers<[2], [2], [1], [1], [0, 0, 0, 1, 1, 1], [0], [0]>} : vector<2x8x16xbf16>, vector<2x16x16xbf16>, vector<2x8x16xf32> -> vector<2x8x16xf32>
    "tpu.trace_stop"() : () -> ()
    %156 = vector.extract_strided_slice %77 {offsets = [0, 0, 32], sizes = [2, 8, 16], strides = [1, 1, 1]} : vector<2x8x64xbf16> to vector<2x8x16xbf16>
    "tpu.trace_start"() <{level = 10 : i32, message = "bqd,bkd->bqk"}> : () -> ()
    %cst_41 = arith.constant dense<0.000000e+00> : vector<2x8x8xf32>
    %157 = tpu.matmul %153, %156, %cst_41 {dimension_numbers = #tpu.dot_dimension_numbers<[2], [2], [1], [1], [0, 0, 0, 1, 1, 1], [0], [0]>} : vector<2x8x16xbf16>, vector<2x8x16xbf16>, vector<2x8x8xf32> -> vector<2x8x8xf32>
    "tpu.trace_stop"() : () -> ()
    %cst_42 = arith.constant dense<0xFF800000> : vector<2x8xf32>
    %158 = vector.multi_reduction <maximumf>, %155, %cst_42 [2] : vector<2x8x16xf32> to vector<2x8xf32>
    %159 = vector.shape_cast %158 : vector<2x8xf32> to vector<2x8x1xf32>
    %cst_43 = arith.constant dense<0xFF800000> : vector<2x8xf32>
    %160 = vector.multi_reduction <maximumf>, %157, %cst_43 [2] : vector<2x8x8xf32> to vector<2x8xf32>
    %161 = vector.shape_cast %160 : vector<2x8xf32> to vector<2x8x1xf32>
    %162 = arith.maximumf %159, %161 : vector<2x8x1xf32>
    %163 = vector.broadcast %162 : vector<2x8x1xf32> to vector<2x8x16xf32>
    %164 = arith.subf %155, %163 : vector<2x8x16xf32>
    %165 = math.exp %164 : vector<2x8x16xf32>
    %166 = vector.broadcast %162 : vector<2x8x1xf32> to vector<2x8x8xf32>
    %167 = arith.subf %157, %166 : vector<2x8x8xf32>
    %168 = math.exp %167 : vector<2x8x8xf32>
    %cst_44 = arith.constant dense<0.000000e+00> : vector<2x8xf32>
    %169 = vector.multi_reduction <add>, %165, %cst_44 [2] : vector<2x8x16xf32> to vector<2x8xf32>
    %170 = vector.shape_cast %169 : vector<2x8xf32> to vector<2x8x1xf32>
    %cst_45 = arith.constant dense<0.000000e+00> : vector<2x8xf32>
    %171 = vector.multi_reduction <add>, %168, %cst_45 [2] : vector<2x8x8xf32> to vector<2x8xf32>
    %172 = vector.shape_cast %171 : vector<2x8xf32> to vector<2x8x1xf32>
    %173 = arith.addf %170, %172 : vector<2x8x1xf32>
    %174 = tpu.reciprocal %173 : vector<2x8x1xf32> -> vector<2x8x1xf32>
    %175 = vector.broadcast %174 : vector<2x8x1xf32> to vector<2x8x16xf32>
    %176 = arith.mulf %165, %175 : vector<2x8x16xf32>
    %177 = arith.truncf %176 : vector<2x8x16xf32> to vector<2x8x16xbf16>
    %178 = vector.extract_strided_slice %86 {offsets = [0, 0, 32], sizes = [2, 16, 16], strides = [1, 1, 1]} : vector<2x16x64xbf16> to vector<2x16x16xbf16>
    "tpu.trace_start"() <{level = 10 : i32, message = "bqk,bkd->bqd"}> : () -> ()
    %cst_46 = arith.constant dense<0.000000e+00> : vector<2x8x16xf32>
    %179 = tpu.matmul %177, %178, %cst_46 {dimension_numbers = #tpu.dot_dimension_numbers<[2], [1], [1], [2], [0, 0, 0, 1, 1, 2], [0], [0]>} : vector<2x8x16xbf16>, vector<2x16x16xbf16>, vector<2x8x16xf32> -> vector<2x8x16xf32>
    "tpu.trace_stop"() : () -> ()
    %180 = vector.broadcast %174 : vector<2x8x1xf32> to vector<2x8x8xf32>
    %181 = arith.mulf %168, %180 : vector<2x8x8xf32>
    %182 = arith.truncf %181 : vector<2x8x8xf32> to vector<2x8x8xbf16>
    %183 = vector.extract_strided_slice %80 {offsets = [0, 0, 32], sizes = [2, 8, 16], strides = [1, 1, 1]} : vector<2x8x64xbf16> to vector<2x8x16xbf16>
    "tpu.trace_start"() <{level = 10 : i32, message = "bqk,bkd->bqd"}> : () -> ()
    %cst_47 = arith.constant dense<0.000000e+00> : vector<2x8x16xf32>
    %184 = tpu.matmul %182, %183, %cst_47 {dimension_numbers = #tpu.dot_dimension_numbers<[2], [1], [1], [2], [0, 0, 0, 1, 1, 2], [0], [0]>} : vector<2x8x8xbf16>, vector<2x8x16xbf16>, vector<2x8x16xf32> -> vector<2x8x16xf32>
    "tpu.trace_stop"() : () -> ()
    %185 = arith.addf %179, %184 : vector<2x8x16xf32>
    %186 = vector.extract_strided_slice %74 {offsets = [0, 0, 48], sizes = [2, 8, 16], strides = [1, 1, 1]} : vector<2x8x64xbf16> to vector<2x8x16xbf16>
    %187 = vector.extract_strided_slice %83 {offsets = [0, 0, 48], sizes = [2, 16, 16], strides = [1, 1, 1]} : vector<2x16x64xbf16> to vector<2x16x16xbf16>
    "tpu.trace_start"() <{level = 10 : i32, message = "bqd,bkd->bqk"}> : () -> ()
    %cst_48 = arith.constant dense<0.000000e+00> : vector<2x8x16xf32>
    %188 = tpu.matmul %186, %187, %cst_48 {dimension_numbers = #tpu.dot_dimension_numbers<[2], [2], [1], [1], [0, 0, 0, 1, 1, 1], [0], [0]>} : vector<2x8x16xbf16>, vector<2x16x16xbf16>, vector<2x8x16xf32> -> vector<2x8x16xf32>
    "tpu.trace_stop"() : () -> ()
    %189 = vector.extract_strided_slice %77 {offsets = [0, 0, 48], sizes = [2, 8, 16], strides = [1, 1, 1]} : vector<2x8x64xbf16> to vector<2x8x16xbf16>
    "tpu.trace_start"() <{level = 10 : i32, message = "bqd,bkd->bqk"}> : () -> ()
    %cst_49 = arith.constant dense<0.000000e+00> : vector<2x8x8xf32>
    %190 = tpu.matmul %186, %189, %cst_49 {dimension_numbers = #tpu.dot_dimension_numbers<[2], [2], [1], [1], [0, 0, 0, 1, 1, 1], [0], [0]>} : vector<2x8x16xbf16>, vector<2x8x16xbf16>, vector<2x8x8xf32> -> vector<2x8x8xf32>
    "tpu.trace_stop"() : () -> ()
    %cst_50 = arith.constant dense<0xFF800000> : vector<2x8xf32>
    %191 = vector.multi_reduction <maximumf>, %188, %cst_50 [2] : vector<2x8x16xf32> to vector<2x8xf32>
    %192 = vector.shape_cast %191 : vector<2x8xf32> to vector<2x8x1xf32>
    %cst_51 = arith.constant dense<0xFF800000> : vector<2x8xf32>
    %193 = vector.multi_reduction <maximumf>, %190, %cst_51 [2] : vector<2x8x8xf32> to vector<2x8xf32>
    %194 = vector.shape_cast %193 : vector<2x8xf32> to vector<2x8x1xf32>
    %195 = arith.maximumf %192, %194 : vector<2x8x1xf32>
    %196 = vector.broadcast %195 : vector<2x8x1xf32> to vector<2x8x16xf32>
    %197 = arith.subf %188, %196 : vector<2x8x16xf32>
    %198 = math.exp %197 : vector<2x8x16xf32>
    %199 = vector.broadcast %195 : vector<2x8x1xf32> to vector<2x8x8xf32>
    %200 = arith.subf %190, %199 : vector<2x8x8xf32>
    %201 = math.exp %200 : vector<2x8x8xf32>
    %cst_52 = arith.constant dense<0.000000e+00> : vector<2x8xf32>
    %202 = vector.multi_reduction <add>, %198, %cst_52 [2] : vector<2x8x16xf32> to vector<2x8xf32>
    %203 = vector.shape_cast %202 : vector<2x8xf32> to vector<2x8x1xf32>
    %cst_53 = arith.constant dense<0.000000e+00> : vector<2x8xf32>
    %204 = vector.multi_reduction <add>, %201, %cst_53 [2] : vector<2x8x8xf32> to vector<2x8xf32>
    %205 = vector.shape_cast %204 : vector<2x8xf32> to vector<2x8x1xf32>
    %206 = arith.addf %203, %205 : vector<2x8x1xf32>
    %207 = tpu.reciprocal %206 : vector<2x8x1xf32> -> vector<2x8x1xf32>
    %208 = vector.broadcast %207 : vector<2x8x1xf32> to vector<2x8x16xf32>
    %209 = arith.mulf %198, %208 : vector<2x8x16xf32>
    %210 = arith.truncf %209 : vector<2x8x16xf32> to vector<2x8x16xbf16>
    %211 = vector.extract_strided_slice %86 {offsets = [0, 0, 48], sizes = [2, 16, 16], strides = [1, 1, 1]} : vector<2x16x64xbf16> to vector<2x16x16xbf16>
    "tpu.trace_start"() <{level = 10 : i32, message = "bqk,bkd->bqd"}> : () -> ()
    %cst_54 = arith.constant dense<0.000000e+00> : vector<2x8x16xf32>
    %212 = tpu.matmul %210, %211, %cst_54 {dimension_numbers = #tpu.dot_dimension_numbers<[2], [1], [1], [2], [0, 0, 0, 1, 1, 2], [0], [0]>} : vector<2x8x16xbf16>, vector<2x16x16xbf16>, vector<2x8x16xf32> -> vector<2x8x16xf32>
    "tpu.trace_stop"() : () -> ()
    %213 = vector.broadcast %207 : vector<2x8x1xf32> to vector<2x8x8xf32>
    %214 = arith.mulf %201, %213 : vector<2x8x8xf32>
    %215 = arith.truncf %214 : vector<2x8x8xf32> to vector<2x8x8xbf16>
    %216 = vector.extract_strided_slice %80 {offsets = [0, 0, 48], sizes = [2, 8, 16], strides = [1, 1, 1]} : vector<2x8x64xbf16> to vector<2x8x16xbf16>
    "tpu.trace_start"() <{level = 10 : i32, message = "bqk,bkd->bqd"}> : () -> ()
    %cst_55 = arith.constant dense<0.000000e+00> : vector<2x8x16xf32>
    %217 = tpu.matmul %215, %216, %cst_55 {dimension_numbers = #tpu.dot_dimension_numbers<[2], [1], [1], [2], [0, 0, 0, 1, 1, 2], [0], [0]>} : vector<2x8x8xbf16>, vector<2x8x16xbf16>, vector<2x8x16xf32> -> vector<2x8x16xf32>
    "tpu.trace_stop"() : () -> ()
    %218 = arith.addf %212, %217 : vector<2x8x16xf32>
    %219 = tpu.concatenate %119, %152, %185, %218 in 2 : vector<2x8x16xf32>, vector<2x8x16xf32>, vector<2x8x16xf32>, vector<2x8x16xf32> -> vector<2x8x64xf32>
    %220 = vector.shape_cast %219 : vector<2x8x64xf32> to vector<16x64xf32>
    %221 = arith.truncf %220 : vector<16x64xf32> to vector<16x64xbf16>
    %c0_56 = arith.constant 0 : index
    %c0_57 = arith.constant 0 : index
    %c0_58 = arith.constant 0 : index
    %222 = vector.load %arg7[%c0_56, %c0_57, %c0_58] : memref<1x64x64xbf16, #tpu.memory_space<vmem>>, vector<1x64x64xbf16>
    %223 = vector.shape_cast %222 : vector<1x64x64xbf16> to vector<64x64xbf16>
    %cst_59 = arith.constant dense<0.000000e+00> : vector<16x64xf32>
    %224 = tpu.matmul %221, %223, %cst_59 {dimension_numbers = #tpu.dot_dimension_numbers<[1], [0], [0], [1], [0, 0, 1, 1], [], []>} : vector<16x64xbf16>, vector<64x64xbf16>, vector<16x64xf32> -> vector<16x64xf32>
    %225 = vector.shape_cast %224 : vector<16x64xf32> to vector<2x8x64xf32>
    %226 = arith.addf %3, %225 : vector<2x8x64xf32>
    %cst_60 = arith.constant dense<0.000000e+00> : vector<2x8xf32>
    %227 = vector.multi_reduction <add>, %226, %cst_60 [2] : vector<2x8x64xf32> to vector<2x8xf32>
    %228 = vector.shape_cast %227 : vector<2x8xf32> to vector<2x8x1xf32>
    %cst_61 = arith.constant 6.400000e+01 : f32
    %229 = vector.broadcast %cst_61 : f32 to vector<2x8x1xf32>
    %230 = arith.divf %228, %229 : vector<2x8x1xf32>
    %231 = vector.broadcast %230 : vector<2x8x1xf32> to vector<2x8x64xf32>
    %232 = arith.subf %226, %231 : vector<2x8x64xf32>
    %233 = arith.mulf %232, %232 : vector<2x8x64xf32>
    %cst_62 = arith.constant dense<0.000000e+00> : vector<2x8xf32>
    %234 = vector.multi_reduction <add>, %233, %cst_62 [2] : vector<2x8x64xf32> to vector<2x8xf32>
    %235 = vector.shape_cast %234 : vector<2x8xf32> to vector<2x8x1xf32>
    %cst_63 = arith.constant 6.400000e+01 : f32
    %236 = vector.broadcast %cst_63 : f32 to vector<2x8x1xf32>
    %237 = arith.divf %235, %236 : vector<2x8x1xf32>
    %238 = vector.broadcast %230 : vector<2x8x1xf32> to vector<2x8x64xf32>
    %239 = arith.subf %226, %238 : vector<2x8x64xf32>
    %cst_64 = arith.constant 9.99999974E-6 : f32
    %240 = vector.broadcast %cst_64 : f32 to vector<2x8x1xf32>
    %241 = arith.addf %237, %240 : vector<2x8x1xf32>
    %242 = math.rsqrt %241 : vector<2x8x1xf32>
    %243 = vector.broadcast %242 : vector<2x8x1xf32> to vector<2x8x64xf32>
    %244 = arith.mulf %239, %243 : vector<2x8x64xf32>
    %245 = vector.shape_cast %11 : vector<1x64xf32> to vector<1x1x64xf32>
    %246 = vector.broadcast %245 : vector<1x1x64xf32> to vector<2x8x64xf32>
    %247 = arith.mulf %244, %246 : vector<2x8x64xf32>
    %248 = vector.shape_cast %12 : vector<1x64xf32> to vector<1x1x64xf32>
    %249 = vector.broadcast %248 : vector<1x1x64xf32> to vector<2x8x64xf32>
    %250 = arith.addf %247, %249 : vector<2x8x64xf32>
    %251 = vector.shape_cast %250 : vector<2x8x64xf32> to vector<16x64xf32>
    %252 = arith.truncf %251 : vector<16x64xf32> to vector<16x64xbf16>
    %c0_65 = arith.constant 0 : index
    %c0_66 = arith.constant 0 : index
    %c0_67 = arith.constant 0 : index
    %253 = vector.load %arg8[%c0_65, %c0_66, %c0_67] : memref<1x64x128xbf16, #tpu.memory_space<vmem>>, vector<1x64x128xbf16>
    %254 = vector.shape_cast %253 : vector<1x64x128xbf16> to vector<64x128xbf16>
    %cst_68 = arith.constant dense<0.000000e+00> : vector<16x128xf32>
    %255 = tpu.matmul %252, %254, %cst_68 {dimension_numbers = #tpu.dot_dimension_numbers<[1], [0], [0], [1], [0, 0, 1, 1], [], []>} : vector<16x64xbf16>, vector<64x128xbf16>, vector<16x128xf32> -> vector<16x128xf32>
    %cst_69 = arith.constant 5.000000e-01 : f32
    %256 = vector.broadcast %cst_69 : f32 to vector<16x128xf32>
    %257 = arith.mulf %256, %255 : vector<16x128xf32>
    %cst_70 = arith.constant 0.707106769 : f32
    %258 = vector.broadcast %cst_70 : f32 to vector<16x128xf32>
    %259 = arith.mulf %255, %258 : vector<16x128xf32>
    %260 = math.erf %259 : vector<16x128xf32>
    %cst_71 = arith.constant 1.000000e+00 : f32
    %261 = vector.broadcast %cst_71 : f32 to vector<16x128xf32>
    %262 = arith.addf %261, %260 : vector<16x128xf32>
    %263 = arith.mulf %257, %262 : vector<16x128xf32>
    %264 = arith.truncf %263 : vector<16x128xf32> to vector<16x128xbf16>
    %c0_72 = arith.constant 0 : index
    %c0_73 = arith.constant 0 : index
    %c0_74 = arith.constant 0 : index
    %265 = vector.load %arg9[%c0_72, %c0_73, %c0_74] : memref<1x128x64xbf16, #tpu.memory_space<vmem>>, vector<1x128x64xbf16>
    %266 = vector.shape_cast %265 : vector<1x128x64xbf16> to vector<128x64xbf16>
    %cst_75 = arith.constant dense<0.000000e+00> : vector<16x64xf32>
    %267 = tpu.matmul %264, %266, %cst_75 {dimension_numbers = #tpu.dot_dimension_numbers<[1], [0], [0], [1], [0, 0, 1, 1], [], []>} : vector<16x128xbf16>, vector<128x64xbf16>, vector<16x64xf32> -> vector<16x64xf32>
    %268 = vector.shape_cast %267 : vector<16x64xf32> to vector<2x8x64xf32>
    %269 = arith.addf %226, %268 : vector<2x8x64xf32>
    %c0_76 = arith.constant 0 : index
    %c0_77 = arith.constant 0 : index
    %c0_78 = arith.constant 0 : index
    %270 = vector.load %arg10[%c0_76, %c0_77, %c0_78] : memref<2x8x64xf32, #tpu.memory_space<vmem>>, vector<2x8x64xf32>
    tpu.vector_store %arg10[%c0_76, %c0_77, %c0_78], %269 {strides = array<i32>} : memref<2x8x64xf32, #tpu.memory_space<vmem>>, vector<2x8x64xf32>,
    return
  }
  func.func @transform_0(%arg0: i32) -> (i32, i32, i32) {
    %c0_i32 = arith.constant 0 : i32
    %c0_i32_0 = arith.constant 0 : i32
    %c0_i32_1 = arith.constant 0 : i32
    %c0_i32_2 = arith.constant 0 : i32
    return %c0_i32, %c0_i32_0, %c0_i32_1 : i32, i32, i32
  }
  func.func @transform_1(%arg0: i32) -> (i32, i32, i32) {
    %c0_i32 = arith.constant 0 : i32
    %c0_i32_0 = arith.constant 0 : i32
    %c0_i32_1 = arith.constant 0 : i32
    %c0_i32_2 = arith.constant 0 : i32
    return %c0_i32, %c0_i32_0, %c0_i32_1 : i32, i32, i32
  }
  func.func @transform_2(%arg0: i32) -> (i32, i32) {
    %c0_i32 = arith.constant 0 : i32
    %c0_i32_0 = arith.constant 0 : i32
    %c0_i32_1 = arith.constant 0 : i32
    return %c0_i32, %c0_i32_0 : i32, i32
  }
  func.func @transform_3(%arg0: i32) -> (i32, i32) {
    %c0_i32 = arith.constant 0 : i32
    %c0_i32_0 = arith.constant 0 : i32
    %c0_i32_1 = arith.constant 0 : i32
    return %c0_i32, %c0_i32_0 : i32, i32
  }
  func.func @transform_4(%arg0: i32) -> (i32, i32, i32) {
    %c0_i32 = arith.constant 0 : i32
    %c0_i32_0 = arith.constant 0 : i32
    %c0_i32_1 = arith.constant 0 : i32
    return %arg0, %c0_i32, %c0_i32_0 : i32, i32, i32
  }
  func.func @transform_5(%arg0: i32) -> (i32, i32, i32) {
    %c0_i32 = arith.constant 0 : i32
    %c0_i32_0 = arith.constant 0 : i32
    %c0_i32_1 = arith.constant 0 : i32
    return %arg0, %c0_i32, %c0_i32_0 : i32, i32, i32
  }
  func.func @transform_6(%arg0: i32) -> (i32, i32, i32) {
    %c0_i32 = arith.constant 0 : i32
    %c0_i32_0 = arith.constant 0 : i32
    %c0_i32_1 = arith.constant 0 : i32
    return %arg0, %c0_i32, %c0_i32_0 : i32, i32, i32
  }
  func.func @transform_7(%arg0: i32) -> (i32, i32, i32) {
    %c0_i32 = arith.constant 0 : i32
    %c0_i32_0 = arith.constant 0 : i32
    %c0_i32_1 = arith.constant 0 : i32
    return %arg0, %c0_i32, %c0_i32_0 : i32, i32, i32
  }
  func.func @transform_8(%arg0: i32) -> (i32, i32, i32) {
    %c0_i32 = arith.constant 0 : i32
    %c0_i32_0 = arith.constant 0 : i32
    %c0_i32_1 = arith.constant 0 : i32
    return %arg0, %c0_i32, %c0_i32_0 : i32, i32, i32
  }
  func.func @transform_9(%arg0: i32) -> (i32, i32, i32) {
    %c0_i32 = arith.constant 0 : i32
    %c0_i32_0 = arith.constant 0 : i32
    %c0_i32_1 = arith.constant 0 : i32
    %c0_i32_2 = arith.constant 0 : i32
    return %c0_i32, %c0_i32_0, %c0_i32_1 : i32, i32, i32
  }
}

</mosaic_0001>

<llo_original>
// kernel: tpu_custom_call.1
$region0: #{tpu_custom_call.1}
  #allocation0 [shape = 'u32[]', space=smem, size = 0x4, offset = 0x4, fixed_abs, tag = 'smem constant byte address 0x4 - core index']
  #allocation1 [shape = 'u32[144,128]{1,0:T(1,128)}', space=vmem, size = 0x12000, scoped, tag = 'internal scratch']
  #allocation2 [shape = 'f32[2,16,64]{2,1,0:T(8,128)}', space=vmem, size = 0x4000, scoped, tag = 'scratch operand']
  %s0 = inlined_call_operand.vmem [shape: f32[2,16,32], index: 0, kind: input, shape index: {}]
  %s1 = inlined_call_operand.vmem [shape: f32[1,8,64], index: 1, kind: input, shape index: {}]
  %s2 = inlined_call_operand.hbm [shape: bf16[32,64], index: 2, kind: input, shape index: {}]
  %s3 = inlined_call_operand.vmem [shape: f32[1,64], index: 3, kind: input, shape index: {}]
  %s4 = inlined_call_operand.vmem [shape: f32[2,6,64], index: 4, kind: input, shape index: {}]
  %s5 = inlined_call_operand.vmem [shape: bf16[2,64,192], index: 5, kind: input, shape index: {}]
  %s6 = inlined_call_operand.vmem [shape: bf16[2,64,64], index: 6, kind: input, shape index: {}]
  %s7 = inlined_call_operand.hbm [shape: bf16[2,64,128], index: 7, kind: input, shape index: {}]
  %s8 = inlined_call_operand.vmem [shape: bf16[2,128,64], index: 8, kind: input, shape index: {}]
  %s9 = inlined_call_operand.hbm [shape: f32[2,8,64], index: 9, kind: output, shape index: {}]
  %s10 = sld [smem:[#allocation0]]
  $region81: #{tpu_custom_call.1} parent=0
    _
  %s12 = ssub.s32 1, %s10
  %s13 = scalar_select 0, %s12, %s10
  $region1: #{tpu_custom_call.1} parent=0
    #allocation3 [shape = 'u8[8192]{0}', space=vmem, size = 0x2000, scoped, tag = 'input window, operand 2, single buffered']
    #allocation4 [shape = 's32[2]{0}', space=sflag, size = 0x8, scoped, tag = 'scoped memory for tpu_custom_call.1']
    #allocation5 [shape = 's32[2]{0}', space=sflag, size = 0x8, scoped, tag = 'scoped memory for tpu_custom_call.1']
    #allocation6 [shape = 'u8[32768]{0}', space=vmem, size = 0x8000, scoped, tag = 'input window, operand 7']
    #allocation7 [shape = 's32[2]{0}', space=sflag, size = 0x8, scoped, tag = 'scoped memory for tpu_custom_call.1']
    #allocation8 [shape = 'u8[8192]{0}', space=vmem, size = 0x2000, scoped, tag = 'output window, operand 0, single buffered']
    %14 = vsyncpa [#allocation4], 0
    %15 = vsyncpa [#allocation7], 0
    %s16 = scalar_lea.sflag [#allocation7], 1
    %17 = vsyncpa %s16, 0
    %18 = vsyncpa [#allocation5], 0
    loop: start=0, step=1, limit=4
    $region2: #{tpu_custom_call.1} parent=1 // loop_pre_header
      _
    $region3: #{tpu_custom_call.1} parent=1 // loop_header
      %s20 = sphi 0, %s24
      %p21 = scmp.ge.s32.totalorder %s20, 4
      %s28 = sphi 0, %s28
      %s30 = sphi 0, %s28
      %s31 = sphi 0, %s30
      %s45 = sphi 0, %s31
      %s49 = sphi 0, %s49
      %s51 = sphi 0, %s49
      %s52 = sphi 0, %s51
      %s66 = sphi 0, %s52
      %s70 = sphi 0, %s70
      %s72 = sphi 0, %s70
      %s73 = sphi 0, %s72
      %s87 = sphi 0, %s73
      %s91 = sphi 0, %s91
      %s93 = sphi 0, %s91
      %s94 = sphi 0, %s93
      %s108 = sphi 0, %s94
      %s114 = sphi 0, %s116
      %s117 = sphi 0, %s114
      %s118 = sphi 0, %s117
      %s134 = sphi 0, %s118
      %s140 = sphi 0, %s142
      %s143 = sphi 0, %s140
      %s144 = sphi 0, %s143
      %s160 = sphi 0, %s144
      %s166 = sphi 0, %s168
      %s169 = sphi 0, %s166
      %s170 = sphi 0, %s169
      %s186 = sphi 0, %s170
      %s192 = sphi 0, %s194
      %s195 = sphi 0, %s192
      %s196 = sphi 0, %s195
      %s212 = sphi 0, %s196
      %s218 = sphi 0, %s220
      %s221 = sphi 0, %s218
      %s222 = sphi 0, %s221
      %s238 = sphi 0, %s222
      %s242 = sphi 0, %s242
      %s244 = sphi 0, %s242
      %s245 = sphi 0, %s244
      %s259 = sphi 0, %s245
    $region4: #{tpu_custom_call.1} parent=1 // loop_header_branch
      %23 = sbr.rel (%p21) target = $region8
    $region5: #{tpu_custom_call.1} parent=1 // loop_body
      %s25 = ssub.s32 %s20, 1
      %s26 = ssub.s32 %s20, 2
      %s27 = sadd.s32 %s20, 1
      %s29 = sadd.s32 %s28, 1
      %p32 = scmp.eq.s32.totalorder %s20, 1
      %p33 = scmp.ne.s32.totalorder %s28, %s30
      %p34 = scmp.eq.s32.totalorder %s20, 0
      %p35 = por %p33, %p34
      %p36 = scmp.ne.s32.totalorder %s28, %s30
      %p37 = scmp.eq.s32.totalorder %s25, 1
      %p38 = por %p36, %p37
      %p39 = scmp.ne.s32.totalorder %s30, %s31
      %p40 = scmp.eq.s32.totalorder %s25, 0
      %p41 = por %p39, %p40
      %p42 = scmp.ne.s32.totalorder %s30, %s31
      %p43 = scmp.eq.s32.totalorder %s26, 1
      %p44 = por %p42, %p43
      %p46 = scmp.ne.s32.totalorder %s31, %s45
      %p47 = scmp.eq.s32.totalorder %s26, 0
      %p48 = por %p46, %p47
      %s50 = sadd.s32 %s49, 1
      %p53 = scmp.eq.s32.totalorder %s20, 1
      %p54 = scmp.ne.s32.totalorder %s49, %s51
      %p55 = scmp.eq.s32.totalorder %s20, 0
      %p56 = por %p54, %p55
      %p57 = scmp.ne.s32.totalorder %s49, %s51
      %p58 = scmp.eq.s32.totalorder %s25, 1
      %p59 = por %p57, %p58
      %p60 = scmp.ne.s32.totalorder %s51, %s52
      %p61 = scmp.eq.s32.totalorder %s25, 0
      %p62 = por %p60, %p61
      %p63 = scmp.ne.s32.totalorder %s51, %s52
      %p64 = scmp.eq.s32.totalorder %s26, 1
      %p65 = por %p63, %p64
      %p67 = scmp.ne.s32.totalorder %s52, %s66
      %p68 = scmp.eq.s32.totalorder %s26, 0
      %p69 = por %p67, %p68
      %s71 = sadd.s32 %s70, 1
      %p74 = scmp.eq.s32.totalorder %s20, 1
      %p75 = scmp.ne.s32.totalorder %s70, %s72
      %p76 = scmp.eq.s32.totalorder %s20, 0
      %p77 = por %p75, %p76
      %p78 = scmp.ne.s32.totalorder %s70, %s72
      %p79 = scmp.eq.s32.totalorder %s25, 1
      %p80 = por %p78, %p79
      %p81 = scmp.ne.s32.totalorder %s72, %s73
      %p82 = scmp.eq.s32.totalorder %s25, 0
      %p83 = por %p81, %p82
      %p84 = scmp.ne.s32.totalorder %s72, %s73
      %p85 = scmp.eq.s32.totalorder %s26, 1
      %p86 = por %p84, %p85
      %p88 = scmp.ne.s32.totalorder %s73, %s87
      %p89 = scmp.eq.s32.totalorder %s26, 0
      %p90 = por %p88, %p89
      %s92 = sadd.s32 %s91, 1
      %p95 = scmp.eq.s32.totalorder %s20, 1
      %p96 = scmp.ne.s32.totalorder %s91, %s93
      %p97 = scmp.eq.s32.totalorder %s20, 0
      %p98 = por %p96, %p97
      %p99 = scmp.ne.s32.totalorder %s91, %s93
      %p100 = scmp.eq.s32.totalorder %s25, 1
      %p101 = por %p99, %p100
      %p102 = scmp.ne.s32.totalorder %s93, %s94
      %p103 = scmp.eq.s32.totalorder %s25, 0
      %p104 = por %p102, %p103
      %p105 = scmp.ne.s32.totalorder %s93, %s94
      %p106 = scmp.eq.s32.totalorder %s26, 1
      %p107 = por %p105, %p106
      %p109 = scmp.ne.s32.totalorder %s94, %s108
      %p110 = scmp.eq.s32.totalorder %s26, 0
      %p111 = por %p109, %p110
      %s112 = ssub.s32 %s20, %s27
      %p113 = scmp.eq.s32.totalorder %s112, 0
      %s115 = sadd.s32 %s114, 1
      %s116 = scalar_select %p113, %s114, %s115
      %p119 = pneg %p113
      %p120 = scmp.eq.s32.totalorder %s20, 1
      %p121 = por %p119, %p120
      %p122 = scmp.ne.s32.totalorder %s114, %s117
      %p123 = scmp.eq.s32.totalorder %s20, 0
      %p124 = por %p122, %p123
      %p125 = scmp.ne.s32.totalorder %s114, %s117
      %p126 = scmp.eq.s32.totalorder %s25, 1
      %p127 = por %p125, %p126
      %p128 = scmp.ne.s32.totalorder %s117, %s118
      %p129 = scmp.eq.s32.totalorder %s25, 0
      %p130 = por %p128, %p129
      %p131 = scmp.ne.s32.totalorder %s117, %s118
      %p132 = scmp.eq.s32.totalorder %s26, 1
      %p133 = por %p131, %p132
      %p135 = scmp.ne.s32.totalorder %s118, %s134
      %p136 = scmp.eq.s32.totalorder %s26, 0
      %p137 = por %p135, %p136
      %s138 = ssub.s32 %s20, %s27
      %p139 = scmp.eq.s32.totalorder %s138, 0
      %s141 = sadd.s32 %s140, 1
      %s142 = scalar_select %p139, %s140, %s141
      %p145 = pneg %p139
      %p146 = scmp.eq.s32.totalorder %s20, 1
      %p147 = por %p145, %p146
      %p148 = scmp.ne.s32.totalorder %s140, %s143
      %p149 = scmp.eq.s32.totalorder %s20, 0
      %p150 = por %p148, %p149
      %p151 = scmp.ne.s32.totalorder %s140, %s143
      %p152 = scmp.eq.s32.totalorder %s25, 1
      %p153 = por %p151, %p152
      %p154 = scmp.ne.s32.totalorder %s143, %s144
      %p155 = scmp.eq.s32.totalorder %s25, 0
      %p156 = por %p154, %p155
      %p157 = scmp.ne.s32.totalorder %s143, %s144
      %p158 = scmp.eq.s32.totalorder %s26, 1
      %p159 = por %p157, %p158
      %p161 = scmp.ne.s32.totalorder %s144, %s160
      %p162 = scmp.eq.s32.totalorder %s26, 0
      %p163 = por %p161, %p162
      %s164 = ssub.s32 %s20, %s27
      %p165 = scmp.eq.s32.totalorder %s164, 0
      %s167 = sadd.s32 %s166, 1
      %s168 = scalar_select %p165, %s166, %s167
      %p171 = pneg %p165
      %p172 = scmp.eq.s32.totalorder %s20, 1
      %p173 = por %p171, %p172
      %p174 = scmp.ne.s32.totalorder %s166, %s169
      %p175 = scmp.eq.s32.totalorder %s20, 0
      %p176 = por %p174, %p175
      %p177 = scmp.ne.s32.totalorder %s166, %s169
      %p178 = scmp.eq.s32.totalorder %s25, 1
      %p179 = por %p177, %p178
      %p180 = scmp.ne.s32.totalorder %s169, %s170
      %p181 = scmp.eq.s32.totalorder %s25, 0
      %p182 = por %p180, %p181
      %p183 = scmp.ne.s32.totalorder %s169, %s170
      %p184 = scmp.eq.s32.totalorder %s26, 1
      %p185 = por %p183, %p184
      %p187 = scmp.ne.s32.totalorder %s170, %s186
      %p188 = scmp.eq.s32.totalorder %s26, 0
      %p189 = por %p187, %p188
      %s190 = ssub.s32 %s20, %s27
      %p191 = scmp.eq.s32.totalorder %s190, 0
      %s193 = sadd.s32 %s192, 1
      %s194 = scalar_select %p191, %s192, %s193
      %p197 = pneg %p191
      %p198 = scmp.eq.s32.totalorder %s20, 1
      %p199 = por %p197, %p198
      %p200 = scmp.ne.s32.totalorder %s192, %s195
      %p201 = scmp.eq.s32.totalorder %s20, 0
      %p202 = por %p200, %p201
      %p203 = scmp.ne.s32.totalorder %s192, %s195
      %p204 = scmp.eq.s32.totalorder %s25, 1
      %p205 = por %p203, %p204
      %p206 = scmp.ne.s32.totalorder %s195, %s196
      %p207 = scmp.eq.s32.totalorder %s25, 0
      %p208 = por %p206, %p207
      %p209 = scmp.ne.s32.totalorder %s195, %s196
      %p210 = scmp.eq.s32.totalorder %s26, 1
      %p211 = por %p209, %p210
      %p213 = scmp.ne.s32.totalorder %s196, %s212
      %p214 = scmp.eq.s32.totalorder %s26, 0
      %p215 = por %p213, %p214
      %s216 = ssub.s32 %s20, %s27
      %p217 = scmp.eq.s32.totalorder %s216, 0
      %s219 = sadd.s32 %s218, 1
      %s220 = scalar_select %p217, %s218, %s219
      %p223 = pneg %p217
      %p224 = scmp.eq.s32.totalorder %s20, 1
      %p225 = por %p223, %p224
      %p226 = scmp.ne.s32.totalorder %s218, %s221
      %p227 = scmp.eq.s32.totalorder %s20, 0
      %p228 = por %p226, %p227
      %p229 = scmp.ne.s32.totalorder %s218, %s221
      %p230 = scmp.eq.s32.totalorder %s25, 1
      %p231 = por %p229, %p230
      %p232 = scmp.ne.s32.totalorder %s221, %s222
      %p233 = scmp.eq.s32.totalorder %s25, 0
      %p234 = por %p232, %p233
      %p235 = scmp.ne.s32.totalorder %s221, %s222
      %p236 = scmp.eq.s32.totalorder %s26, 1
      %p237 = por %p235, %p236
      %p239 = scmp.ne.s32.totalorder %s222, %s238
      %p240 = scmp.eq.s32.totalorder %s26, 0
      %p241 = por %p239, %p240
      %s243 = sadd.s32 %s242, 1
      %p246 = scmp.eq.s32.totalorder %s20, 1
      %p247 = scmp.ne.s32.totalorder %s242, %s244
      %p248 = scmp.eq.s32.totalorder %s20, 0
      %p249 = por %p247, %p248
      %p250 = scmp.ne.s32.totalorder %s242, %s244
      %p251 = scmp.eq.s32.totalorder %s25, 1
      %p252 = por %p250, %p251
      %p253 = scmp.ne.s32.totalorder %s244, %s245
      %p254 = scmp.eq.s32.totalorder %s25, 0
      %p255 = por %p253, %p254
      %p256 = scmp.ne.s32.totalorder %s244, %s245
      %p257 = scmp.eq.s32.totalorder %s26, 1
      %p258 = por %p256, %p257
      %p260 = scmp.ne.s32.totalorder %s245, %s259
      %p261 = scmp.eq.s32.totalorder %s26, 0
      %p262 = por %p260, %p261
      %p263 = scmp.le.s32.totalorder 1, %s20
      %p264 = scmp.lt.s32.totalorder %s20, 3
      %p265 = pnand %p263, %p264
      %p266 = pneg %p265
      // Predicated region
      $region9: #{tpu_custom_call.1} parent=5 // pred_check
        _
      $region10: #{tpu_custom_call.1} parent=5 // pred_check_branch
        %268 = sbr.rel (%p265) target = $region12
      $region11: #{tpu_custom_call.1} parent=5 // pred_region
        %s269 = ssub.s32 %s20, 1
        // Predicated region
        $region13: #{tpu_custom_call.1} parent=11 // pred_check
          %p270 = pneg %p41
        $region14: #{tpu_custom_call.1} parent=11 // pred_check_branch
          %272 = sbr.rel (%p270) target = $region16
        $region15: #{tpu_custom_call.1} parent=11 // pred_region
          _
        $region16: #{tpu_custom_call.1} parent=11 // pred_fallthru
          _
        // Predicated region
        $region17: #{tpu_custom_call.1} parent=11 // pred_check
          %p273 = pneg %p62
        $region18: #{tpu_custom_call.1} parent=11 // pred_check_branch
          %275 = sbr.rel (%p273) target = $region20
        $region19: #{tpu_custom_call.1} parent=11 // pred_region
          _
        $region20: #{tpu_custom_call.1} parent=11 // pred_fallthru
          _
        // Predicated region
        $region21: #{tpu_custom_call.1} parent=11 // pred_check
          %p276 = pneg %p83
        $region22: #{tpu_custom_call.1} parent=11 // pred_check_branch
          %278 = sbr.rel (%p276) target = $region24
        $region23: #{tpu_custom_call.1} parent=11 // pred_region
          %s280 = ssub.s32 256, 256
          %281 = vsyncadd [#allocation4], %s280
          %s282 = sshll.u32 [#allocation3], 4
          %s283 = int_to_ptr.vmem [resolvable:$true] %s282
          %288 = dma.hbm_to_vmem [thread:$0]  %s2, 256, %s283, [#allocation4], 64, 64, 4
        $region24: #{tpu_custom_call.1} parent=11 // pred_fallthru
          _
        // Predicated region
        $region25: #{tpu_custom_call.1} parent=11 // pred_check
          %p289 = pneg %p104
        $region26: #{tpu_custom_call.1} parent=11 // pred_check_branch
          %291 = sbr.rel (%p289) target = $region28
        $region27: #{tpu_custom_call.1} parent=11 // pred_region
          _
        $region28: #{tpu_custom_call.1} parent=11 // pred_fallthru
          _
      $region12: #{tpu_custom_call.1} parent=5 // pred_fallthru
        _
      %p292 = scmp.lt.s32.totalorder %s20, 2
      // Predicated region
      $region29: #{tpu_custom_call.1} parent=5 // pred_check
        %p293 = pneg %p292
      $region30: #{tpu_custom_call.1} parent=5 // pred_check_branch
        %295 = sbr.rel (%p293) target = $region32
      $region31: #{tpu_custom_call.1} parent=5 // pred_region
        // Predicated region
        $region33: #{tpu_custom_call.1} parent=31 // pred_check
          %p296 = pneg %p124
        $region34: #{tpu_custom_call.1} parent=31 // pred_check_branch
          %298 = sbr.rel (%p296) target = $region36
        $region35: #{tpu_custom_call.1} parent=31 // pred_region
          %p299 = scmp.lt.s32.totalorder %s20, 1
          %s300 = scalar_select %p299, %s20, 1
          %s301 = smul.addr %s300, 8
          %s302 = scalar_lea.vmem %s4, %s301
        $region36: #{tpu_custom_call.1} parent=31 // pred_fallthru
          _
        // Predicated region
        $region37: #{tpu_custom_call.1} parent=31 // pred_check
          %p303 = pneg %p150
        $region38: #{tpu_custom_call.1} parent=31 // pred_check_branch
          %305 = sbr.rel (%p303) target = $region40
        $region39: #{tpu_custom_call.1} parent=31 // pred_region
          %p306 = scmp.lt.s32.totalorder %s20, 1
          %s307 = scalar_select %p306, %s20, 1
          %s308 = smul.addr %s307, 16
          %s309 = smul.addr %s308, 4
          %s310 = scalar_lea.vmem %s5, %s309
        $region40: #{tpu_custom_call.1} parent=31 // pred_fallthru
          _
        // Predicated region
        $region41: #{tpu_custom_call.1} parent=31 // pred_check
          %p311 = pneg %p176
        $region42: #{tpu_custom_call.1} parent=31 // pred_check_branch
          %313 = sbr.rel (%p311) target = $region44
        $region43: #{tpu_custom_call.1} parent=31 // pred_region
          %p314 = scmp.lt.s32.totalorder %s20, 1
          %s315 = scalar_select %p314, %s20, 1
          %s316 = smul.addr %s315, 8
          %s317 = smul.addr %s316, 4
          %s318 = scalar_lea.vmem %s6, %s317
        $region44: #{tpu_custom_call.1} parent=31 // pred_fallthru
          _
        // Predicated region
        $region45: #{tpu_custom_call.1} parent=31 // pred_check
          %p319 = pneg %p202
        $region46: #{tpu_custom_call.1} parent=31 // pred_check_branch
          %321 = sbr.rel (%p319) target = $region48
        $region47: #{tpu_custom_call.1} parent=31 // pred_region
          %s322 = sand.u32 %s192, 1
          %s323 = scalar_lea.sflag [#allocation7], %s322
          %s324 = sand.u32 %s192, 1
          %s325 = smul.addr %s324, 32
          %s326 = scalar_lea.vmem [#allocation6], %s325
          %s328 = ssub.s32 512, 512
          %329 = vsyncadd %s323, %s328
          %s330 = smul.addr %s20, 8
          %s331 = smul.addr %s330, 64
          %s332 = scalar_lea.hbm %s7, %s331
          %s333 = sshll.u32 %s326, 4
          %s334 = int_to_ptr.vmem [resolvable:$true] %s333
          %339 = dma.hbm_to_vmem [thread:$0]  %s332, 512, %s334, %s323, 64, 64, 4
        $region48: #{tpu_custom_call.1} parent=31 // pred_fallthru
          _
        // Predicated region
        $region49: #{tpu_custom_call.1} parent=31 // pred_check
          %p340 = pneg %p228
        $region50: #{tpu_custom_call.1} parent=31 // pred_check_branch
          %342 = sbr.rel (%p340) target = $region52
        $region51: #{tpu_custom_call.1} parent=31 // pred_region
          %p343 = scmp.lt.s32.totalorder %s20, 1
          %s344 = scalar_select %p343, %s20, 1
          %s345 = smul.addr %s344, 16
          %s346 = smul.addr %s345, 4
          %s347 = scalar_lea.vmem %s8, %s346
        $region52: #{tpu_custom_call.1} parent=31 // pred_fallthru
          _
      $region32: #{tpu_custom_call.1} parent=5 // pred_fallthru
        _
      %p348 = scmp.le.s32.totalorder 1, %s20
      %p349 = scmp.lt.s32.totalorder %s20, 3
      %p350 = pnand %p348, %p349
      %p351 = pneg %p350
      // Predicated region
      $region53: #{tpu_custom_call.1} parent=5 // pred_check
        _
      $region54: #{tpu_custom_call.1} parent=5 // pred_check_branch
        %353 = sbr.rel (%p350) target = $region56
      $region55: #{tpu_custom_call.1} parent=5 // pred_region
        %s354 = ssub.s32 %s20, 1
        // Predicated region
        $region57: #{tpu_custom_call.1} parent=55 // pred_check
          %p355 = pneg %p83
        $region58: #{tpu_custom_call.1} parent=55 // pred_check_branch
          %357 = sbr.rel (%p355) target = $region60
        $region59: #{tpu_custom_call.1} parent=55 // pred_region
          %358 = dma.done [#allocation4], 256
        $region60: #{tpu_custom_call.1} parent=55 // pred_fallthru
          _
        %s359 = sand.u32 %s195, 1
        %s360 = scalar_lea.sflag [#allocation7], %s359
        %s361 = sand.u32 %s195, 1
        %s362 = smul.addr %s361, 32
        %s363 = scalar_lea.vmem [#allocation6], %s362
        // Predicated region
        $region61: #{tpu_custom_call.1} parent=55 // pred_check
          %p364 = pneg %p208
        $region62: #{tpu_custom_call.1} parent=55 // pred_check_branch
          %366 = sbr.rel (%p364) target = $region64
        $region63: #{tpu_custom_call.1} parent=55 // pred_region
          %367 = dma.done %s360, 512
        $region64: #{tpu_custom_call.1} parent=55 // pred_fallthru
          _
        %p368 = pneg %p41
        %p369 = pneg %p38
        %p370 = pneg %p62
        %p371 = pneg %p59
        %p372 = pneg %p83
        %p373 = pneg %p80
        %p374 = pneg %p104
        %p375 = pneg %p101
        %p376 = scmp.lt.s32.totalorder %s25, 1
        %s377 = scalar_select %p376, %s25, 1
        %s378 = smul.addr %s377, 8
        %s379 = scalar_lea.vmem %s4, %s378
        %p380 = pneg %p130
        %p381 = pneg %p127
        %p382 = scmp.lt.s32.totalorder %s25, 1
        %s383 = scalar_select %p382, %s25, 1
        %s384 = smul.addr %s383, 16
        %s385 = smul.addr %s384, 4
        %s386 = scalar_lea.vmem %s5, %s385
        %p387 = pneg %p156
        %p388 = pneg %p153
        %p389 = scmp.lt.s32.totalorder %s25, 1
        %s390 = scalar_select %p389, %s25, 1
        %s391 = smul.addr %s390, 8
        %s392 = smul.addr %s391, 4
        %s393 = scalar_lea.vmem %s6, %s392
        %p394 = pneg %p182
        %p395 = pneg %p179
        %s396 = sand.u32 %s195, 1
        %s397 = scalar_lea.sflag [#allocation7], %s396
        %s398 = sand.u32 %s195, 1
        %s399 = smul.addr %s398, 32
        %s400 = scalar_lea.vmem [#allocation6], %s399
        %p401 = pneg %p208
        %p402 = pneg %p205
        %p403 = scmp.lt.s32.totalorder %s25, 1
        %s404 = scalar_select %p403, %s25, 1
        %s405 = smul.addr %s404, 16
        %s406 = smul.addr %s405, 4
        %s407 = scalar_lea.vmem %s8, %s406
        %p408 = pneg %p234
        %p409 = pneg %p231
        %p410 = pneg %p255
        %p411 = pneg %p252
        %p412 = scmp.lt.s32.totalorder %s25, 1
        %s413 = scalar_select %p412, %s25, 1
        %s414 = smul.addr %s413, 8
        %s415 = scalar_lea.vmem %s4, %s414
        %p416 = scmp.lt.s32.totalorder %s25, 1
        %s417 = scalar_select %p416, %s25, 1
        %s418 = smul.addr %s417, 16
        %s419 = smul.addr %s418, 4
        %s420 = scalar_lea.vmem %s5, %s419
        %p421 = scmp.lt.s32.totalorder %s25, 1
        %s422 = scalar_select %p421, %s25, 1
        %s423 = smul.addr %s422, 8
        %s424 = smul.addr %s423, 4
        %s425 = scalar_lea.vmem %s6, %s424
        %p426 = scmp.lt.s32.totalorder %s25, 1
        %s427 = scalar_select %p426, %s25, 1
        %s428 = smul.addr %s427, 16
        %s429 = smul.addr %s428, 4
        %s430 = scalar_lea.vmem %s8, %s429
        %p432 = scmp.eq.s32.totalorder %s25, 0
        // Predicated region
        $region65: #{tpu_custom_call.1} parent=55 // pred_check
          %p433 = pneg %p432
        $region66: #{tpu_custom_call.1} parent=55 // pred_check_branch
          %435 = sbr.rel (%p433) target = $region68
        $region67: #{tpu_custom_call.1} parent=55 // pred_region
          %v436 = vld [vmem:[%s1] sm:$0xff]
          %vm437 = vcmask 523264
          %438 = vst.msk [vmem:[#allocation8] sm:$0xff] %vm437, %v436
          %439 = vst.msk [vmem:[#allocation8 + $0x8] sm:$0xff] %vm437, %v436
          %v440 = vld [vmem:[%s0] sm:$0xff]
          %v441 = vld [vmem:[%s0 + $0x8] sm:$0xff]
          %v442 = vld [vmem:[%s0 + $0x10] sm:$0xff]
          %v443 = vld [vmem:[%s0 + $0x18] sm:$0xff]
          %v444 = vpack.c.bf16 %v441, %v440
          %v445 = vpack.c.bf16 %v443, %v442
          %v446 = vld [vmem:[#allocation3] sm:$0xf]
          %v447 = vld [vmem:[#allocation3 + $0x4] sm:$0xf]
          %v448 = vld [vmem:[#allocation3 + $0x8] sm:$0xf]
          %v449 = vld [vmem:[#allocation3 + $0xc] sm:$0xf]
          %v450 = vld [vmem:[%s3] sm:$0x1]
          %v452 = vlaneseq
          %v453 = vshrl.u32 %v452, 7
          %v454 = vsub.s32 0, %v453
          %v455 = vrot.slane %v450, %v454
          %v461 = vunpack.c.l.b16 %v446
          %v462 = vunpack.c.l.b16 %v447
          %v463 = vunpack.c.l.b16 %v448
          %v464 = vunpack.c.l.b16 %v449
          %v465 = vpack.c.b16 %v462, %v461
          %v466 = vpack.c.b16 %v464, %v463
          %vm469 = vcmask 261120
          %v471 = vsel %vm469, %v444, 0
          %v474 = vsel %vm469, %v445, 0
          %476 = vmatprep.subr.bf16.mxu0 0
          %477 = vmatpush1.bf16.msra.mxu0 %v465
          %478 = vmatprep.subr.bf16.mxu0 0
          %479 = vmatpush1.bf16.msra.mxu0 %v466
          %480 = vmatprep.subr.bf16.mxu0 0
          %481 = vmatpush1.bf16.msra.mxu0 0
          %482 = vmatprep.subr.bf16.mxu0 0
          %483 = vmatpush1.bf16.msra.mxu0 0
          %484 = vmatprep.subr.bf16.mxu0 0
          %485 = vmatpush1.bf16.msra.mxu0 0
          %486 = vmatprep.subr.bf16.mxu0 0
          %487 = vmatpush1.bf16.msra.mxu0 0
          %488 = vmatprep.subr.bf16.mxu0 0
          %489 = vmatpush1.bf16.msra.mxu0 0
          %490 = vmatprep.subr.bf16.mxu0 0
          %491 = vmatpush1.bf16.msra.mxu0 0
          %492 = vmatprep.subr.bf16.mxu0 0
          %493 = vmatpush1.bf16.msra.mxu0 0
          %494 = vmatprep.subr.bf16.mxu0 0
          %495 = vmatpush1.bf16.msra.mxu0 0
          %496 = vmatprep.subr.bf16.mxu0 0
          %497 = vmatpush1.bf16.msra.mxu0 0
          %498 = vmatprep.subr.bf16.mxu0 0
          %499 = vmatpush1.bf16.msra.mxu0 0
          %500 = vmatprep.subr.bf16.mxu0 0
          %501 = vmatpush1.bf16.msra.mxu0 0
          %502 = vmatprep.subr.bf16.mxu0 0
          %503 = vmatpush1.bf16.msra.mxu0 0
          %504 = vmatprep.subr.bf16.mxu0 0
          %505 = vmatpush1.bf16.msra.mxu0 0
          %506 = vmatprep.subr.bf16.mxu0 0
          %507 = vmatpush1.bf16.msra.mxu0 0
          %508 = vmatprep.mubr.bf16.mxu0 0
          %509 = vmatmul.mubr.bf16.gmra.mrb[0].mxu0 %v471
          %v510 = vpop.f32.mrb[0].mxu0
          %v511 = vadd.f32 %v455, %v510
          %v512 = vpop.f32.mrb[0].mxu0
          %v513 = vpop.f32.mrb[0].mxu0
          %v514 = vadd.f32 %v455, %v513
          %v515 = vpop.f32.mrb[0].mxu0
          %516 = vmatprep.mubr.bf16.mxu0 0
          %517 = vmatmul.mubr.bf16.gmra.mrb[0].mxu0 %v474
          %v518 = vpop.f32.mrb[0].mxu0
          %v519 = vadd.f32 %v455, %v518
          %v520 = vpop.f32.mrb[0].mxu0
          %v521 = vpop.f32.mrb[0].mxu0
          %v522 = vadd.f32 %v455, %v521
          %v523 = vpop.f32.mrb[0].mxu0
          %524 = vdwg.mxu0
          %525 = vst.msk [vmem:[#allocation2] sm:$0xff] %vm437, %v511
          %526 = vst.msk [vmem:[#allocation2 + $0x8] sm:$0xff] %vm437, %v514
          %527 = vst.msk [vmem:[#allocation2 + $0x10] sm:$0xff] %vm437, %v519
          %528 = vst.msk [vmem:[#allocation2 + $0x18] sm:$0xff] %vm437, %v522
        $region68: #{tpu_custom_call.1} parent=55 // pred_fallthru
          _
        %v529 = vld [vmem:[#allocation8] sm:$0xff]
        %v530 = vld [vmem:[#allocation8 + $0x8] sm:$0xff]
        %v531 = vld [vmem:[#allocation2] sm:$0xff]
        %v532 = vld [vmem:[#allocation2 + $0x8] sm:$0xff]
        %v533 = vld [vmem:[#allocation2 + $0x10] sm:$0xff]
        %v534 = vld [vmem:[#allocation2 + $0x18] sm:$0xff]
        %v535 = vld [vmem:[%s415] sm:$0x3f]
        %vm536 = vcmask 523264
        %v537 = vsel %vm536, %v531, 0.0
        %538 = vadd.xlane.f32.xlu0 %v537
        %v539 = vpop.xlane.xlu0 %538
        %v540 = vsel %vm536, %v532, 0.0
        %541 = vadd.xlane.f32.xlu0 %v540
        %v542 = vpop.xlane.xlu0 %541
        %v543 = vsel %vm536, %v533, 0.0
        %544 = vadd.xlane.f32.xlu0 %v543
        %v545 = vpop.xlane.xlu0 %544
        %v546 = vsel %vm536, %v534, 0.0
        %547 = vadd.xlane.f32.xlu0 %v546
        %v548 = vpop.xlane.xlu0 %547
        %v549 = vrcp.pop 64.0
        %v550 = vmul.f32 %v539, %v549
        %v551 = vmul.f32 %v542, %v549
        %v552 = vmul.f32 %v545, %v549
        %v553 = vmul.f32 %v548, %v549
        %v554 = vsub.f32 %v531, %v550
        %v555 = vsub.f32 %v532, %v551
        %v556 = vsub.f32 %v533, %v552
        %v557 = vsub.f32 %v534, %v553
        %v558 = vmul.f32 %v554, %v554
        %v559 = vmul.f32 %v555, %v555
        %v560 = vmul.f32 %v556, %v556
        %v561 = vmul.f32 %v557, %v557
        %v562 = vsel %vm536, %v558, 0.0
        %563 = vadd.xlane.f32.xlu0 %v562
        %v564 = vpop.xlane.xlu0 %563
        %v565 = vsel %vm536, %v559, 0.0
        %566 = vadd.xlane.f32.xlu0 %v565
        %v567 = vpop.xlane.xlu0 %566
        %v568 = vsel %vm536, %v560, 0.0
        %569 = vadd.xlane.f32.xlu0 %v568
        %v570 = vpop.xlane.xlu0 %569
        %v571 = vsel %vm536, %v561, 0.0
        %572 = vadd.xlane.f32.xlu0 %v571
        %v573 = vpop.xlane.xlu0 %572
        %v574 = vmul.f32 %v564, %v549
        %v575 = vmul.f32 %v567, %v549
        %v576 = vmul.f32 %v570, %v549
        %v577 = vmul.f32 %v573, %v549
        %v578 = vadd.f32 %v574, 1e-05
        %v579 = vadd.f32 %v575, 1e-05
        %v580 = vadd.f32 %v576, 1e-05
        %v581 = vadd.f32 %v577, 1e-05
        %v582 = vrsqrt.pop %v578
        %v583 = vrsqrt.pop %v579
        %v584 = vrsqrt.pop %v580
        %v585 = vrsqrt.pop %v581
        %v586 = vmul.f32 %v554, %v582
        %v587 = vmul.f32 %v555, %v583
        %v588 = vmul.f32 %v556, %v584
        %v589 = vmul.f32 %v557, %v585
        %v590 = vlaneseq
        %v591 = vshrl.u32 %v590, 7
        %v592 = vsub.s32 0, %v591
        %v593 = vrot.slane %v535, %v592
        %v594 = vmul.f32 %v586, %v593
        %v595 = vmul.f32 %v587, %v593
        %v596 = vmul.f32 %v588, %v593
        %v597 = vmul.f32 %v589, %v593
        %v598 = vlaneseq
        %v599 = vshrl.u32 %v598, 7
        %v600 = vsub.s32 1, %v599
        %v601 = vrot.slane %v535, %v600
        %v602 = vadd.f32 %v594, %v601
        %v603 = vadd.f32 %v595, %v601
        %v604 = vadd.f32 %v596, %v601
        %v605 = vadd.f32 %v597, %v601
        %v606 = vpack.c.bf16 %v603, %v602
        %v607 = vpack.c.bf16 %v605, %v604
        %v608 = vsel %vm536, %v529, 0.0
        %609 = vadd.xlane.f32.xlu0 %v608
        %v610 = vpop.xlane.xlu0 %609
        %v611 = vsel %vm536, %v530, 0.0
        %612 = vadd.xlane.f32.xlu0 %v611
        %v613 = vpop.xlane.xlu0 %612
        %v614 = vmul.f32 %v610, %v549
        %v615 = vmul.f32 %v613, %v549
        %v616 = vsub.f32 %v529, %v614
        %v617 = vsub.f32 %v530, %v615
        %v618 = vmul.f32 %v616, %v616
        %v619 = vmul.f32 %v617, %v617
        %v620 = vsel %vm536, %v618, 0.0
        %621 = vadd.xlane.f32.xlu0 %v620
        %v622 = vpop.xlane.xlu0 %621
        %v623 = vsel %vm536, %v619, 0.0
        %624 = vadd.xlane.f32.xlu0 %v623
        %v625 = vpop.xlane.xlu0 %624
        %v626 = vmul.f32 %v622, %v549
        %v627 = vmul.f32 %v625, %v549
        %v628 = vadd.f32 %v626, 1e-05
        %v629 = vadd.f32 %v627, 1e-05
        %v630 = vrsqrt.pop %v628
        %v631 = vrsqrt.pop %v629
        %v632 = vmul.f32 %v616, %v630
        %v633 = vmul.f32 %v617, %v631
        %v634 = vlaneseq
        %v635 = vshrl.u32 %v634, 7
        %v636 = vsub.s32 2, %v635
        %v637 = vrot.slane %v535, %v636
        %v638 = vmul.f32 %v632, %v637
        %v639 = vmul.f32 %v633, %v637
        %v640 = vlaneseq
        %v641 = vshrl.u32 %v640, 7
        %v642 = vsub.s32 3, %v641
        %v643 = vrot.slane %v535, %v642
        %v644 = vadd.f32 %v638, %v643
        %v645 = vadd.f32 %v639, %v643
        %v646 = vpack.c.bf16 %v645, %v644
        %v647 = vld [vmem:[%s420] sm:$0xff]
        %v648 = vld [vmem:[%s420 + $0x8] sm:$0xff]
        %v649 = vld [vmem:[%s420 + $0x10] sm:$0xff]
        %v650 = vld [vmem:[%s420 + $0x18] sm:$0xff]
        %v651 = vld [vmem:[%s420 + $0x20] sm:$0xff]
        %v652 = vld [vmem:[%s420 + $0x28] sm:$0xff]
        %v653 = vld [vmem:[%s420 + $0x30] sm:$0xff]
        %v654 = vld [vmem:[%s420 + $0x38] sm:$0xff]
        %v663 = vunpack.c.l.b16 %v647
        %v664 = vunpack.c.h.b16 %v647
        %v665 = vunpack.c.l.b16 %v648
        %v666 = vunpack.c.h.b16 %v648
        %v667 = vunpack.c.l.b16 %v649
        %v668 = vunpack.c.h.b16 %v649
        %v669 = vunpack.c.l.b16 %v650
        %v670 = vunpack.c.h.b16 %v650
        %v671 = vunpack.c.l.b16 %v651
        %v672 = vunpack.c.h.b16 %v651
        %v673 = vunpack.c.l.b16 %v652
        %v674 = vunpack.c.h.b16 %v652
        %v675 = vunpack.c.l.b16 %v653
        %v676 = vunpack.c.h.b16 %v653
        %v677 = vunpack.c.l.b16 %v654
        %v678 = vunpack.c.h.b16 %v654
        %v679 = vpack.c.b16 %v665, %v663
        %v680 = vpack.c.b16 %v666, %v664
        %v681 = vpack.c.b16 %v669, %v667
        %v682 = vpack.c.b16 %v670, %v668
        %v683 = vpack.c.b16 %v673, %v671
        %v684 = vpack.c.b16 %v674, %v672
        %v685 = vpack.c.b16 %v677, %v675
        %v686 = vpack.c.b16 %v678, %v676
        %v696 = vsel %vm536, %v646, 0
        %698 = vmatprep.subr.bf16.mxu0 %v680
        %699 = vmatpush1.bf16.msra.mxu0 %v679
        %700 = vmatprep.subr.bf16.mxu0 %v682
        %701 = vmatpush1.bf16.msra.mxu0 %v681
        %702 = vmatprep.subr.bf16.mxu0 %v684
        %703 = vmatpush1.bf16.msra.mxu0 %v683
        %704 = vmatprep.subr.bf16.mxu0 %v686
        %705 = vmatpush1.bf16.msra.mxu0 %v685
        %706 = vmatprep.subr.bf16.mxu0 0
        %707 = vmatpush1.bf16.msra.mxu0 0
        %708 = vmatprep.subr.bf16.mxu0 0
        %709 = vmatpush1.bf16.msra.mxu0 0
        %710 = vmatprep.subr.bf16.mxu0 0
        %711 = vmatpush1.bf16.msra.mxu0 0
        %712 = vmatprep.subr.bf16.mxu0 0
        %713 = vmatpush1.bf16.msra.mxu0 0
        %714 = vmatprep.subr.bf16.mxu0 0
        %715 = vmatpush1.bf16.msra.mxu0 0
        %716 = vmatprep.subr.bf16.mxu0 0
        %717 = vmatpush1.bf16.msra.mxu0 0
        %718 = vmatprep.subr.bf16.mxu0 0
        %719 = vmatpush1.bf16.msra.mxu0 0
        %720 = vmatprep.subr.bf16.mxu0 0
        %721 = vmatpush1.bf16.msra.mxu0 0
        %722 = vmatprep.subr.bf16.mxu0 0
        %723 = vmatpush1.bf16.msra.mxu0 0
        %724 = vmatprep.subr.bf16.mxu0 0
        %725 = vmatpush1.bf16.msra.mxu0 0
        %726 = vmatprep.subr.bf16.mxu0 0
        %727 = vmatpush1.bf16.msra.mxu0 0
        %728 = vmatprep.subr.bf16.mxu0 0
        %729 = vmatpush1.bf16.msra.mxu0 0
        %730 = vmatprep.mubr.bf16.mxu0 0
        %731 = vmatmul.mubr.bf16.gmra.mrb[0].mxu0 %v696
        %v732 = vpop.f32.mrb[0].mxu0
        %v733 = vadd.f32 0.0, %v732
        %v734 = vpop.f32.mrb[0].mxu0
        %v735 = vadd.f32 0.0, %v734
        %v736 = vpop.f32.mrb[0].mxu0
        %v737 = vadd.f32 0.0, %v736
        %v738 = vpop.f32.mrb[0].mxu0
        %v739 = vadd.f32 0.0, %v738
        %740 = vdwg.mxu0
        %741 = vrot.lane.b32.xlu0 %v679, 64
        %v742 = vpop.permute.xlu0 %741
        %743 = vrot.lane.b32.xlu0 %v680, 64
        %v744 = vpop.permute.xlu0 %743
        %745 = vrot.lane.b32.xlu0 %v681, 64
        %v746 = vpop.permute.xlu0 %745
        %747 = vrot.lane.b32.xlu0 %v682, 64
        %v748 = vpop.permute.xlu0 %747
        %749 = vrot.lane.b32.xlu0 %v683, 64
        %v750 = vpop.permute.xlu0 %749
        %751 = vrot.lane.b32.xlu0 %v684, 64
        %v752 = vpop.permute.xlu0 %751
        %753 = vrot.lane.b32.xlu0 %v685, 64
        %v754 = vpop.permute.xlu0 %753
        %755 = vrot.lane.b32.xlu0 %v686, 64
        %v756 = vpop.permute.xlu0 %755
        %vm757 = vcmask 523264
        %v758 = vsel %vm757, %v742, %v744
        %v759 = vsel %vm757, %v746, %v748
        %v760 = vsel %vm757, %v750, %v752
        %v761 = vsel %vm757, %v754, %v756
        %v767 = vsel %vm536, %v606, 0
        %v770 = vsel %vm536, %v607, 0
        %772 = vmatprep.subr.bf16.mxu0 0
        %773 = vmatpush1.bf16.msra.mxu0 %v758
        %774 = vmatprep.subr.bf16.mxu0 0
        %775 = vmatpush1.bf16.msra.mxu0 %v759
        %776 = vmatprep.subr.bf16.mxu0 0
        %777 = vmatpush1.bf16.msra.mxu0 %v760
        %778 = vmatprep.subr.bf16.mxu0 0
        %779 = vmatpush1.bf16.msra.mxu0 %v761
        %780 = vmatprep.subr.bf16.mxu0 0
        %781 = vmatpush1.bf16.msra.mxu0 0
        %782 = vmatprep.subr.bf16.mxu0 0
        %783 = vmatpush1.bf16.msra.mxu0 0
        %784 = vmatprep.subr.bf16.mxu0 0
        %785 = vmatpush1.bf16.msra.mxu0 0
        %786 = vmatprep.subr.bf16.mxu0 0
        %787 = vmatpush1.bf16.msra.mxu0 0
        %788 = vmatprep.subr.bf16.mxu0 0
        %789 = vmatpush1.bf16.msra.mxu0 0
        %790 = vmatprep.subr.bf16.mxu0 0
        %791 = vmatpush1.bf16.msra.mxu0 0
        %792 = vmatprep.subr.bf16.mxu0 0
        %793 = vmatpush1.bf16.msra.mxu0 0
        %794 = vmatprep.subr.bf16.mxu0 0
        %795 = vmatpush1.bf16.msra.mxu0 0
        %796 = vmatprep.subr.bf16.mxu0 0
        %797 = vmatpush1.bf16.msra.mxu0 0
        %798 = vmatprep.subr.bf16.mxu0 0
        %799 = vmatpush1.bf16.msra.mxu0 0
        %800 = vmatprep.subr.bf16.mxu0 0
        %801 = vmatpush1.bf16.msra.mxu0 0
        %802 = vmatprep.subr.bf16.mxu0 0
        %803 = vmatpush1.bf16.msra.mxu0 0
        %804 = vmatprep.mubr.bf16.mxu0 0
        %805 = vmatmul.mubr.bf16.gmra.mrb[0].mxu0 %v767
        %v806 = vpop.f32.mrb[0].mxu0
        %v807 = vadd.f32 0.0, %v806
        %v808 = vpop.f32.mrb[0].mxu0
        %v809 = vpop.f32.mrb[0].mxu0
        %v810 = vadd.f32 0.0, %v809
        %v811 = vpop.f32.mrb[0].mxu0
        %812 = vmatprep.mubr.bf16.mxu0 0
        %813 = vmatmul.mubr.bf16.gmra.mrb[0].mxu0 %v770
        %v814 = vpop.f32.mrb[0].mxu0
        %v815 = vadd.f32 0.0, %v814
        %v816 = vpop.f32.mrb[0].mxu0
        %v817 = vpop.f32.mrb[0].mxu0
        %v818 = vadd.f32 0.0, %v817
        %v819 = vpop.f32.mrb[0].mxu0
        %820 = vdwg.mxu0
        %v821 = vmul.f32 %v733, 0.25
        %v822 = vmul.f32 %v737, 0.25
        %v823 = vpack.c.bf16 %v822, %v821
        %v825 = vunpack.c.l.b16 %v823
        %v826 = vunpack.c.h.b16 %v823
        %v827 = vpack.c.b16 %v825, %v825
        %v828 = vpack.c.b16 %v826, %v826
        %v829 = vpack.c.bf16 %v737, %v733
        %v831 = vunpack.c.l.b16 %v829
        %v832 = vunpack.c.h.b16 %v829
        %v833 = vpack.c.bf16 %v739, %v735
        %v835 = vunpack.c.l.b16 %v833
        %v836 = vunpack.c.h.b16 %v833
        %v837 = vpack.c.b16 %v835, %v835
        %v838 = vpack.c.b16 %v836, %v836
        %v839 = vpack.c.bf16 %v810, %v807
        %v840 = vpack.c.bf16 %v818, %v815
        %vm841 = vcmask 130048
        %v843 = vsel %vm841, %v827, 0
        %v846 = vsel %vm841, %v839, 0
        %848 = vmatprep.subr.bf16.mxu0 0
        %849 = vmatpush1.bf16.xpose.msra.mxu0 %v846
        %850 = vmatprep.subr.bf16.mxu0 0
        %851 = vmatpush1.bf16.xpose.msra.mxu0 0
        %852 = vmatprep.subr.bf16.mxu0 0
        %853 = vmatpush1.bf16.xpose.msra.mxu0 0
        %854 = vmatprep.subr.bf16.mxu0 0
        %855 = vmatpush1.bf16.xpose.msra.mxu0 0
        %856 = vmatprep.subr.bf16.mxu0 0
        %857 = vmatpush1.bf16.xpose.msra.mxu0 0
        %858 = vmatprep.subr.bf16.mxu0 0
        %859 = vmatpush1.bf16.xpose.msra.mxu0 0
        %860 = vmatprep.subr.bf16.mxu0 0
        %861 = vmatpush1.bf16.xpose.msra.mxu0 0
        %862 = vmatprep.subr.bf16.mxu0 0
        %863 = vmatpush1.bf16.xpose.msra.mxu0 0
        %864 = vmatprep.subr.bf16.mxu0 0
        %865 = vmatpush1.bf16.xpose.msra.mxu0 0
        %866 = vmatprep.subr.bf16.mxu0 0
        %867 = vmatpush1.bf16.xpose.msra.mxu0 0
        %868 = vmatprep.subr.bf16.mxu0 0
        %869 = vmatpush1.bf16.xpose.msra.mxu0 0
        %870 = vmatprep.subr.bf16.mxu0 0
        %871 = vmatpush1.bf16.xpose.msra.mxu0 0
        %872 = vmatprep.subr.bf16.mxu0 0
        %873 = vmatpush1.bf16.xpose.msra.mxu0 0
        %874 = vmatprep.subr.bf16.mxu0 0
        %875 = vmatpush1.bf16.xpose.msra.mxu0 0
        %876 = vmatprep.subr.bf16.mxu0 0
        %877 = vmatpush1.bf16.xpose.msra.mxu0 0
        %878 = vmatprep.subr.bf16.mxu0 0
        %879 = vmatpush1.bf16.xpose.msra.mxu0 0
        %880 = vmatprep.mubr.bf16.mxu0 0
        %881 = vmatmul.mubr.bf16.gmra.mrb[0].mxu0 %v843
        %v882 = vpop.f32.mrb[0].mxu0
        %v883 = vadd.f32 0.0, %v882
        %v884 = vpop.f32.mrb[0].mxu0
        %v885 = vpop.f32.mrb[0].mxu0
        %v886 = vpop.f32.mrb[0].mxu0
        %887 = vdwg.mxu0
        %v889 = vsel %vm841, %v828, 0
        %v892 = vsel %vm841, %v840, 0
        %894 = vmatprep.subr.bf16.mxu0 0
        %895 = vmatpush1.bf16.xpose.msra.mxu0 %v892
        %896 = vmatprep.subr.bf16.mxu0 0
        %897 = vmatpush1.bf16.xpose.msra.mxu0 0
        %898 = vmatprep.subr.bf16.mxu0 0
        %899 = vmatpush1.bf16.xpose.msra.mxu0 0
        %900 = vmatprep.subr.bf16.mxu0 0
        %901 = vmatpush1.bf16.xpose.msra.mxu0 0
        %902 = vmatprep.subr.bf16.mxu0 0
        %903 = vmatpush1.bf16.xpose.msra.mxu0 0
        %904 = vmatprep.subr.bf16.mxu0 0
        %905 = vmatpush1.bf16.xpose.msra.mxu0 0
        %906 = vmatprep.subr.bf16.mxu0 0
        %907 = vmatpush1.bf16.xpose.msra.mxu0 0
        %908 = vmatprep.subr.bf16.mxu0 0
        %909 = vmatpush1.bf16.xpose.msra.mxu0 0
        %910 = vmatprep.subr.bf16.mxu0 0
        %911 = vmatpush1.bf16.xpose.msra.mxu0 0
        %912 = vmatprep.subr.bf16.mxu0 0
        %913 = vmatpush1.bf16.xpose.msra.mxu0 0
        %914 = vmatprep.subr.bf16.mxu0 0
        %915 = vmatpush1.bf16.xpose.msra.mxu0 0
        %916 = vmatprep.subr.bf16.mxu0 0
        %917 = vmatpush1.bf16.xpose.msra.mxu0 0
        %918 = vmatprep.subr.bf16.mxu0 0
        %919 = vmatpush1.bf16.xpose.msra.mxu0 0
        %920 = vmatprep.subr.bf16.mxu0 0
        %921 = vmatpush1.bf16.xpose.msra.mxu0 0
        %922 = vmatprep.subr.bf16.mxu0 0
        %923 = vmatpush1.bf16.xpose.msra.mxu0 0
        %924 = vmatprep.subr.bf16.mxu0 0
        %925 = vmatpush1.bf16.xpose.msra.mxu0 0
        %926 = vmatprep.mubr.bf16.mxu0 0
        %927 = vmatmul.mubr.bf16.gmra.mrb[0].mxu0 %v889
        %v928 = vpop.f32.mrb[0].mxu0
        %v929 = vadd.f32 0.0, %v928
        %v930 = vpop.f32.mrb[0].mxu0
        %v931 = vpop.f32.mrb[0].mxu0
        %v932 = vpop.f32.mrb[0].mxu0
        %933 = vdwg.mxu0
        %v934 = vpack.c.b16 %v831, %v831
        %935 = vrot.lane.b32.xlu0 %v934, 64
        %v936 = vpop.permute.xlu0 %935
        %v938 = vsel %vm841, %v936, 0
        %940 = vmatprep.subr.bf16.mxu0 0
        %941 = vmatpush1.bf16.xpose.msra.mxu0 %v938
        %942 = vmatprep.subr.bf16.mxu0 0
        %943 = vmatpush1.bf16.xpose.msra.mxu0 0
        %944 = vmatprep.subr.bf16.mxu0 0
        %945 = vmatpush1.bf16.xpose.msra.mxu0 0
        %946 = vmatprep.subr.bf16.mxu0 0
        %947 = vmatpush1.bf16.xpose.msra.mxu0 0
        %948 = vmatprep.subr.bf16.mxu0 0
        %949 = vmatpush1.bf16.xpose.msra.mxu0 0
        %950 = vmatprep.subr.bf16.mxu0 0
        %951 = vmatpush1.bf16.xpose.msra.mxu0 0
        %952 = vmatprep.subr.bf16.mxu0 0
        %953 = vmatpush1.bf16.xpose.msra.mxu0 0
        %954 = vmatprep.subr.bf16.mxu0 0
        %955 = vmatpush1.bf16.xpose.msra.mxu0 0
        %956 = vmatprep.subr.bf16.mxu0 0
        %957 = vmatpush1.bf16.xpose.msra.mxu0 0
        %958 = vmatprep.subr.bf16.mxu0 0
        %959 = vmatpush1.bf16.xpose.msra.mxu0 0
        %960 = vmatprep.subr.bf16.mxu0 0
        %961 = vmatpush1.bf16.xpose.msra.mxu0 0
        %962 = vmatprep.subr.bf16.mxu0 0
        %963 = vmatpush1.bf16.xpose.msra.mxu0 0
        %964 = vmatprep.subr.bf16.mxu0 0
        %965 = vmatpush1.bf16.xpose.msra.mxu0 0
        %966 = vmatprep.subr.bf16.mxu0 0
        %967 = vmatpush1.bf16.xpose.msra.mxu0 0
        %968 = vmatprep.subr.bf16.mxu0 0
        %969 = vmatpush1.bf16.xpose.msra.mxu0 0
        %970 = vmatprep.subr.bf16.mxu0 0
        %971 = vmatpush1.bf16.xpose.msra.mxu0 0
        %972 = vmatprep.mubr.bf16.mxu0 0
        %973 = vmatmul.mubr.bf16.gmra.mrb[0].mxu0 %v843
        %v974 = vpop.f32.mrb[0].mxu0
        %v975 = vadd.f32 0.0, %v974
        %v976 = vpop.f32.mrb[0].mxu0
        %v977 = vpop.f32.mrb[0].mxu0
        %v978 = vpop.f32.mrb[0].mxu0
        %979 = vdwg.mxu0
        %v980 = vpack.c.b16 %v832, %v832
        %981 = vrot.lane.b32.xlu0 %v980, 64
        %v982 = vpop.permute.xlu0 %981
        %v984 = vsel %vm841, %v982, 0
        %986 = vmatprep.subr.bf16.mxu0 0
        %987 = vmatpush1.bf16.xpose.msra.mxu0 %v984
        %988 = vmatprep.subr.bf16.mxu0 0
        %989 = vmatpush1.bf16.xpose.msra.mxu0 0
        %990 = vmatprep.subr.bf16.mxu0 0
        %991 = vmatpush1.bf16.xpose.msra.mxu0 0
        %992 = vmatprep.subr.bf16.mxu0 0
        %993 = vmatpush1.bf16.xpose.msra.mxu0 0
        %994 = vmatprep.subr.bf16.mxu0 0
        %995 = vmatpush1.bf16.xpose.msra.mxu0 0
        %996 = vmatprep.subr.bf16.mxu0 0
        %997 = vmatpush1.bf16.xpose.msra.mxu0 0
        %998 = vmatprep.subr.bf16.mxu0 0
        %999 = vmatpush1.bf16.xpose.msra.mxu0 0
        %1000 = vmatprep.subr.bf16.mxu0 0
        %1001 = vmatpush1.bf16.xpose.msra.mxu0 0
        %1002 = vmatprep.subr.bf16.mxu0 0
        %1003 = vmatpush1.bf16.xpose.msra.mxu0 0
        %1004 = vmatprep.subr.bf16.mxu0 0
        %1005 = vmatpush1.bf16.xpose.msra.mxu0 0
        %1006 = vmatprep.subr.bf16.mxu0 0
        %1007 = vmatpush1.bf16.xpose.msra.mxu0 0
        %1008 = vmatprep.subr.bf16.mxu0 0
        %1009 = vmatpush1.bf16.xpose.msra.mxu0 0
        %1010 = vmatprep.subr.bf16.mxu0 0
        %1011 = vmatpush1.bf16.xpose.msra.mxu0 0
        %1012 = vmatprep.subr.bf16.mxu0 0
        %1013 = vmatpush1.bf16.xpose.msra.mxu0 0
        %1014 = vmatprep.subr.bf16.mxu0 0
        %1015 = vmatpush1.bf16.xpose.msra.mxu0 0
        %1016 = vmatprep.subr.bf16.mxu0 0
        %1017 = vmatpush1.bf16.xpose.msra.mxu0 0
        %1018 = vmatprep.mubr.bf16.mxu0 0
        %1019 = vmatmul.mubr.bf16.gmra.mrb[0].mxu0 %v889
        %v1020 = vpop.f32.mrb[0].mxu0
        %v1021 = vadd.f32 0.0, %v1020
        %v1022 = vpop.f32.mrb[0].mxu0
        %v1023 = vpop.f32.mrb[0].mxu0
        %v1024 = vpop.f32.mrb[0].mxu0
        %1025 = vdwg.mxu0
        %v1026 = vsel %vm841, %v883, -inf
        %1027 = vmax.xlane.f32.xlu0 %v1026
        %v1028 = vpop.xlane.xlu0 %1027
        %v1029 = vsel %vm841, %v929, -inf
        %1030 = vmax.xlane.f32.xlu0 %v1029
        %v1031 = vpop.xlane.xlu0 %1030
        %vm1032 = vcmask 64512
        %v1033 = vsel %vm1032, %v975, -inf
        %1034 = vmax.xlane.f32.xlu0 %v1033
        %v1035 = vpop.xlane.xlu0 %1034
        %v1036 = vsel %vm1032, %v1021, -inf
        %1037 = vmax.xlane.f32.xlu0 %v1036
        %v1038 = vpop.xlane.xlu0 %1037
        %v1039 = vmax.f32 %v1028, %v1035
        %v1040 = vmax.f32 %v1031, %v1038
        %v1041 = vsub.f32 %v883, %v1039
        %v1042 = vsub.f32 %v929, %v1040
        %v1043 = vmul.f32 %v1041, 1.442695
        %v1044 = vpow.pop %v1043
        %v1045 = vmul.f32 %v1042, 1.442695
        %v1046 = vpow.pop %v1045
        %v1047 = vsub.f32 %v975, %v1039
        %v1048 = vsub.f32 %v1021, %v1040
        %v1049 = vmul.f32 %v1047, 1.442695
        %v1050 = vpow.pop %v1049
        %v1051 = vmul.f32 %v1048, 1.442695
        %v1052 = vpow.pop %v1051
        %v1053 = vsel %vm841, %v1044, 0.0
        %1054 = vadd.xlane.f32.xlu0 %v1053
        %v1055 = vpop.xlane.xlu0 %1054
        %v1056 = vsel %vm841, %v1046, 0.0
        %1057 = vadd.xlane.f32.xlu0 %v1056
        %v1058 = vpop.xlane.xlu0 %1057
        %v1059 = vsel %vm1032, %v1050, 0.0
        %1060 = vadd.xlane.f32.xlu0 %v1059
        %v1061 = vpop.xlane.xlu0 %1060
        %v1062 = vsel %vm1032, %v1052, 0.0
        %1063 = vadd.xlane.f32.xlu0 %v1062
        %v1064 = vpop.xlane.xlu0 %1063
        %v1065 = vadd.f32 %v1055, %v1061
        %v1066 = vadd.f32 %v1058, %v1064
        %v1067 = vrcp.pop %v1065
        %v1068 = vrcp.pop %v1066
        %v1069 = vmul.f32 %v1044, %v1067
        %v1070 = vmul.f32 %v1046, %v1068
        %v1071 = vpack.c.bf16 %v1069, %v1069
        %v1072 = vpack.c.bf16 %v1070, %v1070
        %v1073 = vmul.f32 %v1050, %v1067
        %v1074 = vmul.f32 %v1052, %v1068
        %v1075 = vpack.c.bf16 %v1073, %v1073
        %v1076 = vpack.c.bf16 %v1074, %v1074
        %v1078 = vsel %vm1032, %v1075, 0
        %vm1080 = vcmask 1043456
        %v1082 = vsel %vm1080, %v837, 0
        %1084 = vmatprep.subr.bf16.mxu0 0
        %1085 = vmatpush1.bf16.msra.mxu0 %v1082
        %1086 = vmatprep.subr.bf16.mxu0 0
        %1087 = vmatpush1.bf16.msra.mxu0 0
        %1088 = vmatprep.subr.bf16.mxu0 0
        %1089 = vmatpush1.bf16.msra.mxu0 0
        %1090 = vmatprep.subr.bf16.mxu0 0
        %1091 = vmatpush1.bf16.msra.mxu0 0
        %1092 = vmatprep.subr.bf16.mxu0 0
        %1093 = vmatpush1.bf16.msra.mxu0 0
        %1094 = vmatprep.subr.bf16.mxu0 0
        %1095 = vmatpush1.bf16.msra.mxu0 0
        %1096 = vmatprep.subr.bf16.mxu0 0
        %1097 = vmatpush1.bf16.msra.mxu0 0
        %1098 = vmatprep.subr.bf16.mxu0 0
        %1099 = vmatpush1.bf16.msra.mxu0 0
        %1100 = vmatprep.subr.bf16.mxu0 0
        %1101 = vmatpush1.bf16.msra.mxu0 0
        %1102 = vmatprep.subr.bf16.mxu0 0
        %1103 = vmatpush1.bf16.msra.mxu0 0
        %1104 = vmatprep.subr.bf16.mxu0 0
        %1105 = vmatpush1.bf16.msra.mxu0 0
        %1106 = vmatprep.subr.bf16.mxu0 0
        %1107 = vmatpush1.bf16.msra.mxu0 0
        %1108 = vmatprep.subr.bf16.mxu0 0
        %1109 = vmatpush1.bf16.msra.mxu0 0
        %1110 = vmatprep.subr.bf16.mxu0 0
        %1111 = vmatpush1.bf16.msra.mxu0 0
        %1112 = vmatprep.subr.bf16.mxu0 0
        %1113 = vmatpush1.bf16.msra.mxu0 0
        %1114 = vmatprep.subr.bf16.mxu0 0
        %1115 = vmatpush1.bf16.msra.mxu0 0
        %1116 = vmatprep.mubr.bf16.mxu0 0
        %1117 = vmatmul.mubr.bf16.gmra.mrb[0].mxu0 %v1078
        %v1118 = vpop.f32.mrb[0].mxu0
        %v1119 = vadd.f32 0.0, %v1118
        %v1120 = vpop.f32.mrb[0].mxu0
        %v1121 = vpop.f32.mrb[0].mxu0
        %v1122 = vpop.f32.mrb[0].mxu0
        %1123 = vdwg.mxu0
        %v1125 = vsel %vm1032, %v1076, 0
        %v1128 = vsel %vm1080, %v838, 0
        %1130 = vmatprep.subr.bf16.mxu0 0
        %1131 = vmatpush1.bf16.msra.mxu0 %v1128
        %1132 = vmatprep.subr.bf16.mxu0 0
        %1133 = vmatpush1.bf16.msra.mxu0 0
        %1134 = vmatprep.subr.bf16.mxu0 0
        %1135 = vmatpush1.bf16.msra.mxu0 0
        %1136 = vmatprep.subr.bf16.mxu0 0
        %1137 = vmatpush1.bf16.msra.mxu0 0
        %1138 = vmatprep.subr.bf16.mxu0 0
        %1139 = vmatpush1.bf16.msra.mxu0 0
        %1140 = vmatprep.subr.bf16.mxu0 0
        %1141 = vmatpush1.bf16.msra.mxu0 0
        %1142 = vmatprep.subr.bf16.mxu0 0
        %1143 = vmatpush1.bf16.msra.mxu0 0
        %1144 = vmatprep.subr.bf16.mxu0 0
        %1145 = vmatpush1.bf16.msra.mxu0 0
        %1146 = vmatprep.subr.bf16.mxu0 0
        %1147 = vmatpush1.bf16.msra.mxu0 0
        %1148 = vmatprep.subr.bf16.mxu0 0
        %1149 = vmatpush1.bf16.msra.mxu0 0
        %1150 = vmatprep.subr.bf16.mxu0 0
        %1151 = vmatpush1.bf16.msra.mxu0 0
        %1152 = vmatprep.subr.bf16.mxu0 0
        %1153 = vmatpush1.bf16.msra.mxu0 0
        %1154 = vmatprep.subr.bf16.mxu0 0
        %1155 = vmatpush1.bf16.msra.mxu0 0
        %1156 = vmatprep.subr.bf16.mxu0 0
        %1157 = vmatpush1.bf16.msra.mxu0 0
        %1158 = vmatprep.subr.bf16.mxu0 0
        %1159 = vmatpush1.bf16.msra.mxu0 0
        %1160 = vmatprep.subr.bf16.mxu0 0
        %1161 = vmatpush1.bf16.msra.mxu0 0
        %1162 = vmatprep.mubr.bf16.mxu0 0
        %1163 = vmatmul.mubr.bf16.gmra.mrb[0].mxu0 %v1125
        %v1164 = vpop.f32.mrb[0].mxu0
        %v1165 = vadd.f32 0.0, %v1164
        %v1166 = vpop.f32.mrb[0].mxu0
        %v1167 = vpop.f32.mrb[0].mxu0
        %v1168 = vpop.f32.mrb[0].mxu0
        %1169 = vdwg.mxu0
        %1171 = vrot.lane.b32.xlu0 %v839, 64
        %v1172 = vpop.permute.xlu0 %1171
        %v1175 = vsel %vm841, %v1071, 0
        %1177 = vmatprep.subr.bf16.mxu0 0
        %1178 = vmatpush1.bf16.msra.mxu0 %v1172
        %1179 = vmatprep.subr.bf16.mxu0 0
        %1180 = vmatpush1.bf16.msra.mxu0 0
        %1181 = vmatprep.subr.bf16.mxu0 0
        %1182 = vmatpush1.bf16.msra.mxu0 0
        %1183 = vmatprep.subr.bf16.mxu0 0
        %1184 = vmatpush1.bf16.msra.mxu0 0
        %1185 = vmatprep.subr.bf16.mxu0 0
        %1186 = vmatpush1.bf16.msra.mxu0 0
        %1187 = vmatprep.subr.bf16.mxu0 0
        %1188 = vmatpush1.bf16.msra.mxu0 0
        %1189 = vmatprep.subr.bf16.mxu0 0
        %1190 = vmatpush1.bf16.msra.mxu0 0
        %1191 = vmatprep.subr.bf16.mxu0 0
        %1192 = vmatpush1.bf16.msra.mxu0 0
        %1193 = vmatprep.subr.bf16.mxu0 0
        %1194 = vmatpush1.bf16.msra.mxu0 0
        %1195 = vmatprep.subr.bf16.mxu0 0
        %1196 = vmatpush1.bf16.msra.mxu0 0
        %1197 = vmatprep.subr.bf16.mxu0 0
        %1198 = vmatpush1.bf16.msra.mxu0 0
        %1199 = vmatprep.subr.bf16.mxu0 0
        %1200 = vmatpush1.bf16.msra.mxu0 0
        %1201 = vmatprep.subr.bf16.mxu0 0
        %1202 = vmatpush1.bf16.msra.mxu0 0
        %1203 = vmatprep.subr.bf16.mxu0 0
        %1204 = vmatpush1.bf16.msra.mxu0 0
        %1205 = vmatprep.subr.bf16.mxu0 0
        %1206 = vmatpush1.bf16.msra.mxu0 0
        %1207 = vmatprep.subr.bf16.mxu0 0
        %1208 = vmatpush1.bf16.msra.mxu0 0
        %1209 = vmatprep.mubr.bf16.mxu0 0
        %1210 = vmatmul.mubr.bf16.gmra.mrb[0].mxu0 %v1175
        %v1211 = vpop.f32.mrb[0].mxu0
        %v1212 = vadd.f32 %v1119, %v1211
        %v1213 = vpop.f32.mrb[0].mxu0
        %v1214 = vpop.f32.mrb[0].mxu0
        %v1215 = vpop.f32.mrb[0].mxu0
        %1216 = vdwg.mxu0
        %1218 = vrot.lane.b32.xlu0 %v840, 64
        %v1219 = vpop.permute.xlu0 %1218
        %v1222 = vsel %vm841, %v1072, 0
        %1224 = vmatprep.subr.bf16.mxu0 0
        %1225 = vmatpush1.bf16.msra.mxu0 %v1219
        %1226 = vmatprep.subr.bf16.mxu0 0
        %1227 = vmatpush1.bf16.msra.mxu0 0
        %1228 = vmatprep.subr.bf16.mxu0 0
        %1229 = vmatpush1.bf16.msra.mxu0 0
        %1230 = vmatprep.subr.bf16.mxu0 0
        %1231 = vmatpush1.bf16.msra.mxu0 0
        %1232 = vmatprep.subr.bf16.mxu0 0
        %1233 = vmatpush1.bf16.msra.mxu0 0
        %1234 = vmatprep.subr.bf16.mxu0 0
        %1235 = vmatpush1.bf16.msra.mxu0 0
        %1236 = vmatprep.subr.bf16.mxu0 0
        %1237 = vmatpush1.bf16.msra.mxu0 0
        %1238 = vmatprep.subr.bf16.mxu0 0
        %1239 = vmatpush1.bf16.msra.mxu0 0
        %1240 = vmatprep.subr.bf16.mxu0 0
        %1241 = vmatpush1.bf16.msra.mxu0 0
        %1242 = vmatprep.subr.bf16.mxu0 0
        %1243 = vmatpush1.bf16.msra.mxu0 0
        %1244 = vmatprep.subr.bf16.mxu0 0
        %1245 = vmatpush1.bf16.msra.mxu0 0
        %1246 = vmatprep.subr.bf16.mxu0 0
        %1247 = vmatpush1.bf16.msra.mxu0 0
        %1248 = vmatprep.subr.bf16.mxu0 0
        %1249 = vmatpush1.bf16.msra.mxu0 0
        %1250 = vmatprep.subr.bf16.mxu0 0
        %1251 = vmatpush1.bf16.msra.mxu0 0
        %1252 = vmatprep.subr.bf16.mxu0 0
        %1253 = vmatpush1.bf16.msra.mxu0 0
        %1254 = vmatprep.subr.bf16.mxu0 0
        %1255 = vmatpush1.bf16.msra.mxu0 0
        %1256 = vmatprep.mubr.bf16.mxu0 0
        %1257 = vmatmul.mubr.bf16.gmra.mrb[0].mxu0 %v1222
        %v1258 = vpop.f32.mrb[0].mxu0
        %v1259 = vadd.f32 %v1165, %v1258
        %v1260 = vpop.f32.mrb[0].mxu0
        %v1261 = vpop.f32.mrb[0].mxu0
        %v1262 = vpop.f32.mrb[0].mxu0
        %1263 = vdwg.mxu0
        %1264 = vrot.lane.b32.xlu0 %v827, 112
        %v1265 = vpop.permute.xlu0 %1264
        %1266 = vrot.lane.b32.xlu0 %v839, 112
        %v1267 = vpop.permute.xlu0 %1266
        %v1269 = vsel %vm841, %v1265, 0
        %v1272 = vsel %vm841, %v1267, 0
        %1274 = vmatprep.subr.bf16.mxu0 0
        %1275 = vmatpush1.bf16.xpose.msra.mxu0 %v1272
        %1276 = vmatprep.subr.bf16.mxu0 0
        %1277 = vmatpush1.bf16.xpose.msra.mxu0 0
        %1278 = vmatprep.subr.bf16.mxu0 0
        %1279 = vmatpush1.bf16.xpose.msra.mxu0 0
        %1280 = vmatprep.subr.bf16.mxu0 0
        %1281 = vmatpush1.bf16.xpose.msra.mxu0 0
        %1282 = vmatprep.subr.bf16.mxu0 0
        %1283 = vmatpush1.bf16.xpose.msra.mxu0 0
        %1284 = vmatprep.subr.bf16.mxu0 0
        %1285 = vmatpush1.bf16.xpose.msra.mxu0 0
        %1286 = vmatprep.subr.bf16.mxu0 0
        %1287 = vmatpush1.bf16.xpose.msra.mxu0 0
        %1288 = vmatprep.subr.bf16.mxu0 0
        %1289 = vmatpush1.bf16.xpose.msra.mxu0 0
        %1290 = vmatprep.subr.bf16.mxu0 0
        %1291 = vmatpush1.bf16.xpose.msra.mxu0 0
        %1292 = vmatprep.subr.bf16.mxu0 0
        %1293 = vmatpush1.bf16.xpose.msra.mxu0 0
        %1294 = vmatprep.subr.bf16.mxu0 0
        %1295 = vmatpush1.bf16.xpose.msra.mxu0 0
        %1296 = vmatprep.subr.bf16.mxu0 0
        %1297 = vmatpush1.bf16.xpose.msra.mxu0 0
        %1298 = vmatprep.subr.bf16.mxu0 0
        %1299 = vmatpush1.bf16.xpose.msra.mxu0 0
        %1300 = vmatprep.subr.bf16.mxu0 0
        %1301 = vmatpush1.bf16.xpose.msra.mxu0 0
        %1302 = vmatprep.subr.bf16.mxu0 0
        %1303 = vmatpush1.bf16.xpose.msra.mxu0 0
        %1304 = vmatprep.subr.bf16.mxu0 0
        %1305 = vmatpush1.bf16.xpose.msra.mxu0 0
        %1306 = vmatprep.mubr.bf16.mxu0 0
        %1307 = vmatmul.mubr.bf16.gmra.mrb[0].mxu0 %v1269
        %v1308 = vpop.f32.mrb[0].mxu0
        %v1309 = vadd.f32 0.0, %v1308
        %v1310 = vpop.f32.mrb[0].mxu0
        %v1311 = vpop.f32.mrb[0].mxu0
        %v1312 = vpop.f32.mrb[0].mxu0
        %1313 = vdwg.mxu0
        %1314 = vrot.lane.b32.xlu0 %v828, 112
        %v1315 = vpop.permute.xlu0 %1314
        %1316 = vrot.lane.b32.xlu0 %v840, 112
        %v1317 = vpop.permute.xlu0 %1316
        %v1319 = vsel %vm841, %v1315, 0
        %v1322 = vsel %vm841, %v1317, 0
        %1324 = vmatprep.subr.bf16.mxu0 0
        %1325 = vmatpush1.bf16.xpose.msra.mxu0 %v1322
        %1326 = vmatprep.subr.bf16.mxu0 0
        %1327 = vmatpush1.bf16.xpose.msra.mxu0 0
        %1328 = vmatprep.subr.bf16.mxu0 0
        %1329 = vmatpush1.bf16.xpose.msra.mxu0 0
        %1330 = vmatprep.subr.bf16.mxu0 0
        %1331 = vmatpush1.bf16.xpose.msra.mxu0 0
        %1332 = vmatprep.subr.bf16.mxu0 0
        %1333 = vmatpush1.bf16.xpose.msra.mxu0 0
        %1334 = vmatprep.subr.bf16.mxu0 0
        %1335 = vmatpush1.bf16.xpose.msra.mxu0 0
        %1336 = vmatprep.subr.bf16.mxu0 0
        %1337 = vmatpush1.bf16.xpose.msra.mxu0 0
        %1338 = vmatprep.subr.bf16.mxu0 0
        %1339 = vmatpush1.bf16.xpose.msra.mxu0 0
        %1340 = vmatprep.subr.bf16.mxu0 0
        %1341 = vmatpush1.bf16.xpose.msra.mxu0 0
        %1342 = vmatprep.subr.bf16.mxu0 0
        %1343 = vmatpush1.bf16.xpose.msra.mxu0 0
        %1344 = vmatprep.subr.bf16.mxu0 0
        %1345 = vmatpush1.bf16.xpose.msra.mxu0 0
        %1346 = vmatprep.subr.bf16.mxu0 0
        %1347 = vmatpush1.bf16.xpose.msra.mxu0 0
        %1348 = vmatprep.subr.bf16.mxu0 0
        %1349 = vmatpush1.bf16.xpose.msra.mxu0 0
        %1350 = vmatprep.subr.bf16.mxu0 0
        %1351 = vmatpush1.bf16.xpose.msra.mxu0 0
        %1352 = vmatprep.subr.bf16.mxu0 0
        %1353 = vmatpush1.bf16.xpose.msra.mxu0 0
        %1354 = vmatprep.subr.bf16.mxu0 0
        %1355 = vmatpush1.bf16.xpose.msra.mxu0 0
        %1356 = vmatprep.mubr.bf16.mxu0 0
        %1357 = vmatmul.mubr.bf16.gmra.mrb[0].mxu0 %v1319
        %v1358 = vpop.f32.mrb[0].mxu0
        %v1359 = vadd.f32 0.0, %v1358
        %v1360 = vpop.f32.mrb[0].mxu0
        %v1361 = vpop.f32.mrb[0].mxu0
        %v1362 = vpop.f32.mrb[0].mxu0
        %1363 = vdwg.mxu0
        %1364 = vrot.lane.b32.xlu0 %v934, 48
        %v1365 = vpop.permute.xlu0 %1364
        %v1367 = vsel %vm841, %v1365, 0
        %1369 = vmatprep.subr.bf16.mxu0 0
        %1370 = vmatpush1.bf16.xpose.msra.mxu0 %v1367
        %1371 = vmatprep.subr.bf16.mxu0 0
        %1372 = vmatpush1.bf16.xpose.msra.mxu0 0
        %1373 = vmatprep.subr.bf16.mxu0 0
        %1374 = vmatpush1.bf16.xpose.msra.mxu0 0
        %1375 = vmatprep.subr.bf16.mxu0 0
        %1376 = vmatpush1.bf16.xpose.msra.mxu0 0
        %1377 = vmatprep.subr.bf16.mxu0 0
        %1378 = vmatpush1.bf16.xpose.msra.mxu0 0
        %1379 = vmatprep.subr.bf16.mxu0 0
        %1380 = vmatpush1.bf16.xpose.msra.mxu0 0
        %1381 = vmatprep.subr.bf16.mxu0 0
        %1382 = vmatpush1.bf16.xpose.msra.mxu0 0
        %1383 = vmatprep.subr.bf16.mxu0 0
        %1384 = vmatpush1.bf16.xpose.msra.mxu0 0
        %1385 = vmatprep.subr.bf16.mxu0 0
        %1386 = vmatpush1.bf16.xpose.msra.mxu0 0
        %1387 = vmatprep.subr.bf16.mxu0 0
        %1388 = vmatpush1.bf16.xpose.msra.mxu0 0
        %1389 = vmatprep.subr.bf16.mxu0 0
        %1390 = vmatpush1.bf16.xpose.msra.mxu0 0
        %1391 = vmatprep.subr.bf16.mxu0 0
        %1392 = vmatpush1.bf16.xpose.msra.mxu0 0
        %1393 = vmatprep.subr.bf16.mxu0 0
        %1394 = vmatpush1.bf16.xpose.msra.mxu0 0
        %1395 = vmatprep.subr.bf16.mxu0 0
        %1396 = vmatpush1.bf16.xpose.msra.mxu0 0
        %1397 = vmatprep.subr.bf16.mxu0 0
        %1398 = vmatpush1.bf16.xpose.msra.mxu0 0
        %1399 = vmatprep.subr.bf16.mxu0 0
        %1400 = vmatpush1.bf16.xpose.msra.mxu0 0
        %1401 = vmatprep.mubr.bf16.mxu0 0
        %1402 = vmatmul.mubr.bf16.gmra.mrb[0].mxu0 %v1269
        %v1403 = vpop.f32.mrb[0].mxu0
        %v1404 = vadd.f32 0.0, %v1403
        %v1405 = vpop.f32.mrb[0].mxu0
        %v1406 = vpop.f32.mrb[0].mxu0
        %v1407 = vpop.f32.mrb[0].mxu0
        %1408 = vdwg.mxu0
        %1409 = vrot.lane.b32.xlu0 %v980, 48
        %v1410 = vpop.permute.xlu0 %1409
        %v1412 = vsel %vm841, %v1410, 0
        %1414 = vmatprep.subr.bf16.mxu0 0
        %1415 = vmatpush1.bf16.xpose.msra.mxu0 %v1412
        %1416 = vmatprep.subr.bf16.mxu0 0
        %1417 = vmatpush1.bf16.xpose.msra.mxu0 0
        %1418 = vmatprep.subr.bf16.mxu0 0
        %1419 = vmatpush1.bf16.xpose.msra.mxu0 0
        %1420 = vmatprep.subr.bf16.mxu0 0
        %1421 = vmatpush1.bf16.xpose.msra.mxu0 0
        %1422 = vmatprep.subr.bf16.mxu0 0
        %1423 = vmatpush1.bf16.xpose.msra.mxu0 0
        %1424 = vmatprep.subr.bf16.mxu0 0
        %1425 = vmatpush1.bf16.xpose.msra.mxu0 0
        %1426 = vmatprep.subr.bf16.mxu0 0
        %1427 = vmatpush1.bf16.xpose.msra.mxu0 0
        %1428 = vmatprep.subr.bf16.mxu0 0
        %1429 = vmatpush1.bf16.xpose.msra.mxu0 0
        %1430 = vmatprep.subr.bf16.mxu0 0
        %1431 = vmatpush1.bf16.xpose.msra.mxu0 0
        %1432 = vmatprep.subr.bf16.mxu0 0
        %1433 = vmatpush1.bf16.xpose.msra.mxu0 0
        %1434 = vmatprep.subr.bf16.mxu0 0
        %1435 = vmatpush1.bf16.xpose.msra.mxu0 0
        %1436 = vmatprep.subr.bf16.mxu0 0
        %1437 = vmatpush1.bf16.xpose.msra.mxu0 0
        %1438 = vmatprep.subr.bf16.mxu0 0
        %1439 = vmatpush1.bf16.xpose.msra.mxu0 0
        %1440 = vmatprep.subr.bf16.mxu0 0
        %1441 = vmatpush1.bf16.xpose.msra.mxu0 0
        %1442 = vmatprep.subr.bf16.mxu0 0
        %1443 = vmatpush1.bf16.xpose.msra.mxu0 0
        %1444 = vmatprep.subr.bf16.mxu0 0
        %1445 = vmatpush1.bf16.xpose.msra.mxu0 0
        %1446 = vmatprep.mubr.bf16.mxu0 0
        %1447 = vmatmul.mubr.bf16.gmra.mrb[0].mxu0 %v1319
        %v1448 = vpop.f32.mrb[0].mxu0
        %v1449 = vadd.f32 0.0, %v1448
        %v1450 = vpop.f32.mrb[0].mxu0
        %v1451 = vpop.f32.mrb[0].mxu0
        %v1452 = vpop.f32.mrb[0].mxu0
        %1453 = vdwg.mxu0
        %v1454 = vsel %vm841, %v1309, -inf
        %1455 = vmax.xlane.f32.xlu0 %v1454
        %v1456 = vpop.xlane.xlu0 %1455
        %v1457 = vsel %vm841, %v1359, -inf
        %1458 = vmax.xlane.f32.xlu0 %v1457
        %v1459 = vpop.xlane.xlu0 %1458
        %v1460 = vsel %vm1032, %v1404, -inf
        %1461 = vmax.xlane.f32.xlu0 %v1460
        %v1462 = vpop.xlane.xlu0 %1461
        %v1463 = vsel %vm1032, %v1449, -inf
        %1464 = vmax.xlane.f32.xlu0 %v1463
        %v1465 = vpop.xlane.xlu0 %1464
        %v1466 = vmax.f32 %v1456, %v1462
        %v1467 = vmax.f32 %v1459, %v1465
        %v1468 = vsub.f32 %v1309, %v1466
        %v1469 = vsub.f32 %v1359, %v1467
        %v1470 = vmul.f32 %v1468, 1.442695
        %v1471 = vpow.pop %v1470
        %v1472 = vmul.f32 %v1469, 1.442695
        %v1473 = vpow.pop %v1472
        %v1474 = vsub.f32 %v1404, %v1466
        %v1475 = vsub.f32 %v1449, %v1467
        %v1476 = vmul.f32 %v1474, 1.442695
        %v1477 = vpow.pop %v1476
        %v1478 = vmul.f32 %v1475, 1.442695
        %v1479 = vpow.pop %v1478
        %v1480 = vsel %vm841, %v1471, 0.0
        %1481 = vadd.xlane.f32.xlu0 %v1480
        %v1482 = vpop.xlane.xlu0 %1481
        %v1483 = vsel %vm841, %v1473, 0.0
        %1484 = vadd.xlane.f32.xlu0 %v1483
        %v1485 = vpop.xlane.xlu0 %1484
        %v1486 = vsel %vm1032, %v1477, 0.0
        %1487 = vadd.xlane.f32.xlu0 %v1486
        %v1488 = vpop.xlane.xlu0 %1487
        %v1489 = vsel %vm1032, %v1479, 0.0
        %1490 = vadd.xlane.f32.xlu0 %v1489
        %v1491 = vpop.xlane.xlu0 %1490
        %v1492 = vadd.f32 %v1482, %v1488
        %v1493 = vadd.f32 %v1485, %v1491
        %v1494 = vrcp.pop %v1492
        %v1495 = vrcp.pop %v1493
        %v1496 = vmul.f32 %v1471, %v1494
        %v1497 = vmul.f32 %v1473, %v1495
        %v1498 = vpack.c.bf16 %v1496, %v1496
        %v1499 = vpack.c.bf16 %v1497, %v1497
        %v1500 = vmul.f32 %v1477, %v1494
        %v1501 = vmul.f32 %v1479, %v1495
        %v1502 = vpack.c.bf16 %v1500, %v1500
        %v1503 = vpack.c.bf16 %v1501, %v1501
        %1504 = vrot.lane.b32.xlu0 %v837, 112
        %v1505 = vpop.permute.xlu0 %1504
        %v1507 = vsel %vm1032, %v1502, 0
        %v1510 = vsel %vm1080, %v1505, 0
        %1512 = vmatprep.subr.bf16.mxu0 0
        %1513 = vmatpush1.bf16.msra.mxu0 %v1510
        %1514 = vmatprep.subr.bf16.mxu0 0
        %1515 = vmatpush1.bf16.msra.mxu0 0
        %1516 = vmatprep.subr.bf16.mxu0 0
        %1517 = vmatpush1.bf16.msra.mxu0 0
        %1518 = vmatprep.subr.bf16.mxu0 0
        %1519 = vmatpush1.bf16.msra.mxu0 0
        %1520 = vmatprep.subr.bf16.mxu0 0
        %1521 = vmatpush1.bf16.msra.mxu0 0
        %1522 = vmatprep.subr.bf16.mxu0 0
        %1523 = vmatpush1.bf16.msra.mxu0 0
        %1524 = vmatprep.subr.bf16.mxu0 0
        %1525 = vmatpush1.bf16.msra.mxu0 0
        %1526 = vmatprep.subr.bf16.mxu0 0
        %1527 = vmatpush1.bf16.msra.mxu0 0
        %1528 = vmatprep.subr.bf16.mxu0 0
        %1529 = vmatpush1.bf16.msra.mxu0 0
        %1530 = vmatprep.subr.bf16.mxu0 0
        %1531 = vmatpush1.bf16.msra.mxu0 0
        %1532 = vmatprep.subr.bf16.mxu0 0
        %1533 = vmatpush1.bf16.msra.mxu0 0
        %1534 = vmatprep.subr.bf16.mxu0 0
        %1535 = vmatpush1.bf16.msra.mxu0 0
        %1536 = vmatprep.subr.bf16.mxu0 0
        %1537 = vmatpush1.bf16.msra.mxu0 0
        %1538 = vmatprep.subr.bf16.mxu0 0
        %1539 = vmatpush1.bf16.msra.mxu0 0
        %1540 = vmatprep.subr.bf16.mxu0 0
        %1541 = vmatpush1.bf16.msra.mxu0 0
        %1542 = vmatprep.subr.bf16.mxu0 0
        %1543 = vmatpush1.bf16.msra.mxu0 0
        %1544 = vmatprep.mubr.bf16.mxu0 0
        %1545 = vmatmul.mubr.bf16.gmra.mrb[0].mxu0 %v1507
        %v1546 = vpop.f32.mrb[0].mxu0
        %v1547 = vadd.f32 0.0, %v1546
        %v1548 = vpop.f32.mrb[0].mxu0
        %v1549 = vpop.f32.mrb[0].mxu0
        %v1550 = vpop.f32.mrb[0].mxu0
        %1551 = vdwg.mxu0
        %1552 = vrot.lane.b32.xlu0 %v838, 112
        %v1553 = vpop.permute.xlu0 %1552
        %v1555 = vsel %vm1032, %v1503, 0
        %v1558 = vsel %vm1080, %v1553, 0
        %1560 = vmatprep.subr.bf16.mxu0 0
        %1561 = vmatpush1.bf16.msra.mxu0 %v1558
        %1562 = vmatprep.subr.bf16.mxu0 0
        %1563 = vmatpush1.bf16.msra.mxu0 0
        %1564 = vmatprep.subr.bf16.mxu0 0
        %1565 = vmatpush1.bf16.msra.mxu0 0
        %1566 = vmatprep.subr.bf16.mxu0 0
        %1567 = vmatpush1.bf16.msra.mxu0 0
        %1568 = vmatprep.subr.bf16.mxu0 0
        %1569 = vmatpush1.bf16.msra.mxu0 0
        %1570 = vmatprep.subr.bf16.mxu0 0
        %1571 = vmatpush1.bf16.msra.mxu0 0
        %1572 = vmatprep.subr.bf16.mxu0 0
        %1573 = vmatpush1.bf16.msra.mxu0 0
        %1574 = vmatprep.subr.bf16.mxu0 0
        %1575 = vmatpush1.bf16.msra.mxu0 0
        %1576 = vmatprep.subr.bf16.mxu0 0
        %1577 = vmatpush1.bf16.msra.mxu0 0
        %1578 = vmatprep.subr.bf16.mxu0 0
        %1579 = vmatpush1.bf16.msra.mxu0 0
        %1580 = vmatprep.subr.bf16.mxu0 0
        %1581 = vmatpush1.bf16.msra.mxu0 0
        %1582 = vmatprep.subr.bf16.mxu0 0
        %1583 = vmatpush1.bf16.msra.mxu0 0
        %1584 = vmatprep.subr.bf16.mxu0 0
        %1585 = vmatpush1.bf16.msra.mxu0 0
        %1586 = vmatprep.subr.bf16.mxu0 0
        %1587 = vmatpush1.bf16.msra.mxu0 0
        %1588 = vmatprep.subr.bf16.mxu0 0
        %1589 = vmatpush1.bf16.msra.mxu0 0
        %1590 = vmatprep.subr.bf16.mxu0 0
        %1591 = vmatpush1.bf16.msra.mxu0 0
        %1592 = vmatprep.mubr.bf16.mxu0 0
        %1593 = vmatmul.mubr.bf16.gmra.mrb[0].mxu0 %v1555
        %v1594 = vpop.f32.mrb[0].mxu0
        %v1595 = vadd.f32 0.0, %v1594
        %v1596 = vpop.f32.mrb[0].mxu0
        %v1597 = vpop.f32.mrb[0].mxu0
        %v1598 = vpop.f32.mrb[0].mxu0
        %1599 = vdwg.mxu0
        %1600 = vrot.lane.b32.xlu0 %v839, 48
        %v1601 = vpop.permute.xlu0 %1600
        %v1604 = vsel %vm841, %v1498, 0
        %1606 = vmatprep.subr.bf16.mxu0 0
        %1607 = vmatpush1.bf16.msra.mxu0 %v1601
        %1608 = vmatprep.subr.bf16.mxu0 0
        %1609 = vmatpush1.bf16.msra.mxu0 0
        %1610 = vmatprep.subr.bf16.mxu0 0
        %1611 = vmatpush1.bf16.msra.mxu0 0
        %1612 = vmatprep.subr.bf16.mxu0 0
        %1613 = vmatpush1.bf16.msra.mxu0 0
        %1614 = vmatprep.subr.bf16.mxu0 0
        %1615 = vmatpush1.bf16.msra.mxu0 0
        %1616 = vmatprep.subr.bf16.mxu0 0
        %1617 = vmatpush1.bf16.msra.mxu0 0
        %1618 = vmatprep.subr.bf16.mxu0 0
        %1619 = vmatpush1.bf16.msra.mxu0 0
        %1620 = vmatprep.subr.bf16.mxu0 0
        %1621 = vmatpush1.bf16.msra.mxu0 0
        %1622 = vmatprep.subr.bf16.mxu0 0
        %1623 = vmatpush1.bf16.msra.mxu0 0
        %1624 = vmatprep.subr.bf16.mxu0 0
        %1625 = vmatpush1.bf16.msra.mxu0 0
        %1626 = vmatprep.subr.bf16.mxu0 0
        %1627 = vmatpush1.bf16.msra.mxu0 0
        %1628 = vmatprep.subr.bf16.mxu0 0
        %1629 = vmatpush1.bf16.msra.mxu0 0
        %1630 = vmatprep.subr.bf16.mxu0 0
        %1631 = vmatpush1.bf16.msra.mxu0 0
        %1632 = vmatprep.subr.bf16.mxu0 0
        %1633 = vmatpush1.bf16.msra.mxu0 0
        %1634 = vmatprep.subr.bf16.mxu0 0
        %1635 = vmatpush1.bf16.msra.mxu0 0
        %1636 = vmatprep.subr.bf16.mxu0 0
        %1637 = vmatpush1.bf16.msra.mxu0 0
        %1638 = vmatprep.mubr.bf16.mxu0 0
        %1639 = vmatmul.mubr.bf16.gmra.mrb[0].mxu0 %v1604
        %v1640 = vpop.f32.mrb[0].mxu0
        %v1641 = vadd.f32 %v1547, %v1640
        %v1642 = vpop.f32.mrb[0].mxu0
        %v1643 = vpop.f32.mrb[0].mxu0
        %v1644 = vpop.f32.mrb[0].mxu0
        %1645 = vdwg.mxu0
        %1646 = vrot.lane.b32.xlu0 %v840, 48
        %v1647 = vpop.permute.xlu0 %1646
        %v1650 = vsel %vm841, %v1499, 0
        %1652 = vmatprep.subr.bf16.mxu0 0
        %1653 = vmatpush1.bf16.msra.mxu0 %v1647
        %1654 = vmatprep.subr.bf16.mxu0 0
        %1655 = vmatpush1.bf16.msra.mxu0 0
        %1656 = vmatprep.subr.bf16.mxu0 0
        %1657 = vmatpush1.bf16.msra.mxu0 0
        %1658 = vmatprep.subr.bf16.mxu0 0
        %1659 = vmatpush1.bf16.msra.mxu0 0
        %1660 = vmatprep.subr.bf16.mxu0 0
        %1661 = vmatpush1.bf16.msra.mxu0 0
        %1662 = vmatprep.subr.bf16.mxu0 0
        %1663 = vmatpush1.bf16.msra.mxu0 0
        %1664 = vmatprep.subr.bf16.mxu0 0
        %1665 = vmatpush1.bf16.msra.mxu0 0
        %1666 = vmatprep.subr.bf16.mxu0 0
        %1667 = vmatpush1.bf16.msra.mxu0 0
        %1668 = vmatprep.subr.bf16.mxu0 0
        %1669 = vmatpush1.bf16.msra.mxu0 0
        %1670 = vmatprep.subr.bf16.mxu0 0
        %1671 = vmatpush1.bf16.msra.mxu0 0
        %1672 = vmatprep.subr.bf16.mxu0 0
        %1673 = vmatpush1.bf16.msra.mxu0 0
        %1674 = vmatprep.subr.bf16.mxu0 0
        %1675 = vmatpush1.bf16.msra.mxu0 0
        %1676 = vmatprep.subr.bf16.mxu0 0
        %1677 = vmatpush1.bf16.msra.mxu0 0
        %1678 = vmatprep.subr.bf16.mxu0 0
        %1679 = vmatpush1.bf16.msra.mxu0 0
        %1680 = vmatprep.subr.bf16.mxu0 0
        %1681 = vmatpush1.bf16.msra.mxu0 0
        %1682 = vmatprep.subr.bf16.mxu0 0
        %1683 = vmatpush1.bf16.msra.mxu0 0
        %1684 = vmatprep.mubr.bf16.mxu0 0
        %1685 = vmatmul.mubr.bf16.gmra.mrb[0].mxu0 %v1650
        %v1686 = vpop.f32.mrb[0].mxu0
        %v1687 = vadd.f32 %v1595, %v1686
        %v1688 = vpop.f32.mrb[0].mxu0
        %v1689 = vpop.f32.mrb[0].mxu0
        %v1690 = vpop.f32.mrb[0].mxu0
        %1691 = vdwg.mxu0
        %1692 = vrot.lane.b32.xlu0 %v827, 96
        %v1693 = vpop.permute.xlu0 %1692
        %1694 = vrot.lane.b32.xlu0 %v839, 96
        %v1695 = vpop.permute.xlu0 %1694
        %v1697 = vsel %vm841, %v1693, 0
        %v1700 = vsel %vm841, %v1695, 0
        %1702 = vmatprep.subr.bf16.mxu0 0
        %1703 = vmatpush1.bf16.xpose.msra.mxu0 %v1700
        %1704 = vmatprep.subr.bf16.mxu0 0
        %1705 = vmatpush1.bf16.xpose.msra.mxu0 0
        %1706 = vmatprep.subr.bf16.mxu0 0
        %1707 = vmatpush1.bf16.xpose.msra.mxu0 0
        %1708 = vmatprep.subr.bf16.mxu0 0
        %1709 = vmatpush1.bf16.xpose.msra.mxu0 0
        %1710 = vmatprep.subr.bf16.mxu0 0
        %1711 = vmatpush1.bf16.xpose.msra.mxu0 0
        %1712 = vmatprep.subr.bf16.mxu0 0
        %1713 = vmatpush1.bf16.xpose.msra.mxu0 0
        %1714 = vmatprep.subr.bf16.mxu0 0
        %1715 = vmatpush1.bf16.xpose.msra.mxu0 0
        %1716 = vmatprep.subr.bf16.mxu0 0
        %1717 = vmatpush1.bf16.xpose.msra.mxu0 0
        %1718 = vmatprep.subr.bf16.mxu0 0
        %1719 = vmatpush1.bf16.xpose.msra.mxu0 0
        %1720 = vmatprep.subr.bf16.mxu0 0
        %1721 = vmatpush1.bf16.xpose.msra.mxu0 0
        %1722 = vmatprep.subr.bf16.mxu0 0
        %1723 = vmatpush1.bf16.xpose.msra.mxu0 0
        %1724 = vmatprep.subr.bf16.mxu0 0
        %1725 = vmatpush1.bf16.xpose.msra.mxu0 0
        %1726 = vmatprep.subr.bf16.mxu0 0
        %1727 = vmatpush1.bf16.xpose.msra.mxu0 0
        %1728 = vmatprep.subr.bf16.mxu0 0
        %1729 = vmatpush1.bf16.xpose.msra.mxu0 0
        %1730 = vmatprep.subr.bf16.mxu0 0
        %1731 = vmatpush1.bf16.xpose.msra.mxu0 0
        %1732 = vmatprep.subr.bf16.mxu0 0
        %1733 = vmatpush1.bf16.xpose.msra.mxu0 0
        %1734 = vmatprep.mubr.bf16.mxu0 0
        %1735 = vmatmul.mubr.bf16.gmra.mrb[0].mxu0 %v1697
        %v1736 = vpop.f32.mrb[0].mxu0
        %v1737 = vadd.f32 0.0, %v1736
        %v1738 = vpop.f32.mrb[0].mxu0
        %v1739 = vpop.f32.mrb[0].mxu0
        %v1740 = vpop.f32.mrb[0].mxu0
        %1741 = vdwg.mxu0
        %1742 = vrot.lane.b32.xlu0 %v828, 96
        %v1743 = vpop.permute.xlu0 %1742
        %1744 = vrot.lane.b32.xlu0 %v840, 96
        %v1745 = vpop.permute.xlu0 %1744
        %v1747 = vsel %vm841, %v1743, 0
        %v1750 = vsel %vm841, %v1745, 0
        %1752 = vmatprep.subr.bf16.mxu0 0
        %1753 = vmatpush1.bf16.xpose.msra.mxu0 %v1750
        %1754 = vmatprep.subr.bf16.mxu0 0
        %1755 = vmatpush1.bf16.xpose.msra.mxu0 0
        %1756 = vmatprep.subr.bf16.mxu0 0
        %1757 = vmatpush1.bf16.xpose.msra.mxu0 0
        %1758 = vmatprep.subr.bf16.mxu0 0
        %1759 = vmatpush1.bf16.xpose.msra.mxu0 0
        %1760 = vmatprep.subr.bf16.mxu0 0
        %1761 = vmatpush1.bf16.xpose.msra.mxu0 0
        %1762 = vmatprep.subr.bf16.mxu0 0
        %1763 = vmatpush1.bf16.xpose.msra.mxu0 0
        %1764 = vmatprep.subr.bf16.mxu0 0
        %1765 = vmatpush1.bf16.xpose.msra.mxu0 0
        %1766 = vmatprep.subr.bf16.mxu0 0
        %1767 = vmatpush1.bf16.xpose.msra.mxu0 0
        %1768 = vmatprep.subr.bf16.mxu0 0
        %1769 = vmatpush1.bf16.xpose.msra.mxu0 0
        %1770 = vmatprep.subr.bf16.mxu0 0
        %1771 = vmatpush1.bf16.xpose.msra.mxu0 0
        %1772 = vmatprep.subr.bf16.mxu0 0
        %1773 = vmatpush1.bf16.xpose.msra.mxu0 0
        %1774 = vmatprep.subr.bf16.mxu0 0
        %1775 = vmatpush1.bf16.xpose.msra.mxu0 0
        %1776 = vmatprep.subr.bf16.mxu0 0
        %1777 = vmatpush1.bf16.xpose.msra.mxu0 0
        %1778 = vmatprep.subr.bf16.mxu0 0
        %1779 = vmatpush1.bf16.xpose.msra.mxu0 0
        %1780 = vmatprep.subr.bf16.mxu0 0
        %1781 = vmatpush1.bf16.xpose.msra.mxu0 0
        %1782 = vmatprep.subr.bf16.mxu0 0
        %1783 = vmatpush1.bf16.xpose.msra.mxu0 0
        %1784 = vmatprep.mubr.bf16.mxu0 0
        %1785 = vmatmul.mubr.bf16.gmra.mrb[0].mxu0 %v1747
        %v1786 = vpop.f32.mrb[0].mxu0
        %v1787 = vadd.f32 0.0, %v1786
        %v1788 = vpop.f32.mrb[0].mxu0
        %v1789 = vpop.f32.mrb[0].mxu0
        %v1790 = vpop.f32.mrb[0].mxu0
        %1791 = vdwg.mxu0
        %1792 = vrot.lane.b32.xlu0 %v934, 32
        %v1793 = vpop.permute.xlu0 %1792
        %v1795 = vsel %vm841, %v1793, 0
        %1797 = vmatprep.subr.bf16.mxu0 0
        %1798 = vmatpush1.bf16.xpose.msra.mxu0 %v1795
        %1799 = vmatprep.subr.bf16.mxu0 0
        %1800 = vmatpush1.bf16.xpose.msra.mxu0 0
        %1801 = vmatprep.subr.bf16.mxu0 0
        %1802 = vmatpush1.bf16.xpose.msra.mxu0 0
        %1803 = vmatprep.subr.bf16.mxu0 0
        %1804 = vmatpush1.bf16.xpose.msra.mxu0 0
        %1805 = vmatprep.subr.bf16.mxu0 0
        %1806 = vmatpush1.bf16.xpose.msra.mxu0 0
        %1807 = vmatprep.subr.bf16.mxu0 0
        %1808 = vmatpush1.bf16.xpose.msra.mxu0 0
        %1809 = vmatprep.subr.bf16.mxu0 0
        %1810 = vmatpush1.bf16.xpose.msra.mxu0 0
        %1811 = vmatprep.subr.bf16.mxu0 0
        %1812 = vmatpush1.bf16.xpose.msra.mxu0 0
        %1813 = vmatprep.subr.bf16.mxu0 0
        %1814 = vmatpush1.bf16.xpose.msra.mxu0 0
        %1815 = vmatprep.subr.bf16.mxu0 0
        %1816 = vmatpush1.bf16.xpose.msra.mxu0 0
        %1817 = vmatprep.subr.bf16.mxu0 0
        %1818 = vmatpush1.bf16.xpose.msra.mxu0 0
        %1819 = vmatprep.subr.bf16.mxu0 0
        %1820 = vmatpush1.bf16.xpose.msra.mxu0 0
        %1821 = vmatprep.subr.bf16.mxu0 0
        %1822 = vmatpush1.bf16.xpose.msra.mxu0 0
        %1823 = vmatprep.subr.bf16.mxu0 0
        %1824 = vmatpush1.bf16.xpose.msra.mxu0 0
        %1825 = vmatprep.subr.bf16.mxu0 0
        %1826 = vmatpush1.bf16.xpose.msra.mxu0 0
        %1827 = vmatprep.subr.bf16.mxu0 0
        %1828 = vmatpush1.bf16.xpose.msra.mxu0 0
        %1829 = vmatprep.mubr.bf16.mxu0 0
        %1830 = vmatmul.mubr.bf16.gmra.mrb[0].mxu0 %v1697
        %v1831 = vpop.f32.mrb[0].mxu0
        %v1832 = vadd.f32 0.0, %v1831
        %v1833 = vpop.f32.mrb[0].mxu0
        %v1834 = vpop.f32.mrb[0].mxu0
        %v1835 = vpop.f32.mrb[0].mxu0
        %1836 = vdwg.mxu0
        %1837 = vrot.lane.b32.xlu0 %v980, 32
        %v1838 = vpop.permute.xlu0 %1837
        %v1840 = vsel %vm841, %v1838, 0
        %1842 = vmatprep.subr.bf16.mxu0 0
        %1843 = vmatpush1.bf16.xpose.msra.mxu0 %v1840
        %1844 = vmatprep.subr.bf16.mxu0 0
        %1845 = vmatpush1.bf16.xpose.msra.mxu0 0
        %1846 = vmatprep.subr.bf16.mxu0 0
        %1847 = vmatpush1.bf16.xpose.msra.mxu0 0
        %1848 = vmatprep.subr.bf16.mxu0 0
        %1849 = vmatpush1.bf16.xpose.msra.mxu0 0
        %1850 = vmatprep.subr.bf16.mxu0 0
        %1851 = vmatpush1.bf16.xpose.msra.mxu0 0
        %1852 = vmatprep.subr.bf16.mxu0 0
        %1853 = vmatpush1.bf16.xpose.msra.mxu0 0
        %1854 = vmatprep.subr.bf16.mxu0 0
        %1855 = vmatpush1.bf16.xpose.msra.mxu0 0
        %1856 = vmatprep.subr.bf16.mxu0 0
        %1857 = vmatpush1.bf16.xpose.msra.mxu0 0
        %1858 = vmatprep.subr.bf16.mxu0 0
        %1859 = vmatpush1.bf16.xpose.msra.mxu0 0
        %1860 = vmatprep.subr.bf16.mxu0 0
        %1861 = vmatpush1.bf16.xpose.msra.mxu0 0
        %1862 = vmatprep.subr.bf16.mxu0 0
        %1863 = vmatpush1.bf16.xpose.msra.mxu0 0
        %1864 = vmatprep.subr.bf16.mxu0 0
        %1865 = vmatpush1.bf16.xpose.msra.mxu0 0
        %1866 = vmatprep.subr.bf16.mxu0 0
        %1867 = vmatpush1.bf16.xpose.msra.mxu0 0
        %1868 = vmatprep.subr.bf16.mxu0 0
        %1869 = vmatpush1.bf16.xpose.msra.mxu0 0
        %1870 = vmatprep.subr.bf16.mxu0 0
        %1871 = vmatpush1.bf16.xpose.msra.mxu0 0
        %1872 = vmatprep.subr.bf16.mxu0 0
        %1873 = vmatpush1.bf16.xpose.msra.mxu0 0
        %1874 = vmatprep.mubr.bf16.mxu0 0
        %1875 = vmatmul.mubr.bf16.gmra.mrb[0].mxu0 %v1747
        %v1876 = vpop.f32.mrb[0].mxu0
        %v1877 = vadd.f32 0.0, %v1876
        %v1878 = vpop.f32.mrb[0].mxu0
        %v1879 = vpop.f32.mrb[0].mxu0
        %v1880 = vpop.f32.mrb[0].mxu0
        %1881 = vdwg.mxu0
        %v1882 = vsel %vm841, %v1737, -inf
        %1883 = vmax.xlane.f32.xlu0 %v1882
        %v1884 = vpop.xlane.xlu0 %1883
        %v1885 = vsel %vm841, %v1787, -inf
        %1886 = vmax.xlane.f32.xlu0 %v1885
        %v1887 = vpop.xlane.xlu0 %1886
        %v1888 = vsel %vm1032, %v1832, -inf
        %1889 = vmax.xlane.f32.xlu0 %v1888
        %v1890 = vpop.xlane.xlu0 %1889
        %v1891 = vsel %vm1032, %v1877, -inf
        %1892 = vmax.xlane.f32.xlu0 %v1891
        %v1893 = vpop.xlane.xlu0 %1892
        %v1894 = vmax.f32 %v1884, %v1890
        %v1895 = vmax.f32 %v1887, %v1893
        %v1896 = vsub.f32 %v1737, %v1894
        %v1897 = vsub.f32 %v1787, %v1895
        %v1898 = vmul.f32 %v1896, 1.442695
        %v1899 = vpow.pop %v1898
        %v1900 = vmul.f32 %v1897, 1.442695
        %v1901 = vpow.pop %v1900
        %v1902 = vsub.f32 %v1832, %v1894
        %v1903 = vsub.f32 %v1877, %v1895
        %v1904 = vmul.f32 %v1902, 1.442695
        %v1905 = vpow.pop %v1904
        %v1906 = vmul.f32 %v1903, 1.442695
        %v1907 = vpow.pop %v1906
        %v1908 = vsel %vm841, %v1899, 0.0
        %1909 = vadd.xlane.f32.xlu0 %v1908
        %v1910 = vpop.xlane.xlu0 %1909
        %v1911 = vsel %vm841, %v1901, 0.0
        %1912 = vadd.xlane.f32.xlu0 %v1911
        %v1913 = vpop.xlane.xlu0 %1912
        %v1914 = vsel %vm1032, %v1905, 0.0
        %1915 = vadd.xlane.f32.xlu0 %v1914
        %v1916 = vpop.xlane.xlu0 %1915
        %v1917 = vsel %vm1032, %v1907, 0.0
        %1918 = vadd.xlane.f32.xlu0 %v1917
        %v1919 = vpop.xlane.xlu0 %1918
        %v1920 = vadd.f32 %v1910, %v1916
        %v1921 = vadd.f32 %v1913, %v1919
        %v1922 = vrcp.pop %v1920
        %v1923 = vrcp.pop %v1921
        %v1924 = vmul.f32 %v1899, %v1922
        %v1925 = vmul.f32 %v1901, %v1923
        %v1926 = vpack.c.bf16 %v1924, %v1924
        %v1927 = vpack.c.bf16 %v1925, %v1925
        %v1928 = vmul.f32 %v1905, %v1922
        %v1929 = vmul.f32 %v1907, %v1923
        %v1930 = vpack.c.bf16 %v1928, %v1928
        %v1931 = vpack.c.bf16 %v1929, %v1929
        %1932 = vrot.lane.b32.xlu0 %v837, 96
        %v1933 = vpop.permute.xlu0 %1932
        %v1935 = vsel %vm1032, %v1930, 0
        %v1938 = vsel %vm1080, %v1933, 0
        %1940 = vmatprep.subr.bf16.mxu0 0
        %1941 = vmatpush1.bf16.msra.mxu0 %v1938
        %1942 = vmatprep.subr.bf16.mxu0 0
        %1943 = vmatpush1.bf16.msra.mxu0 0
        %1944 = vmatprep.subr.bf16.mxu0 0
        %1945 = vmatpush1.bf16.msra.mxu0 0
        %1946 = vmatprep.subr.bf16.mxu0 0
        %1947 = vmatpush1.bf16.msra.mxu0 0
        %1948 = vmatprep.subr.bf16.mxu0 0
        %1949 = vmatpush1.bf16.msra.mxu0 0
        %1950 = vmatprep.subr.bf16.mxu0 0
        %1951 = vmatpush1.bf16.msra.mxu0 0
        %1952 = vmatprep.subr.bf16.mxu0 0
        %1953 = vmatpush1.bf16.msra.mxu0 0
        %1954 = vmatprep.subr.bf16.mxu0 0
        %1955 = vmatpush1.bf16.msra.mxu0 0
        %1956 = vmatprep.subr.bf16.mxu0 0
        %1957 = vmatpush1.bf16.msra.mxu0 0
        %1958 = vmatprep.subr.bf16.mxu0 0
        %1959 = vmatpush1.bf16.msra.mxu0 0
        %1960 = vmatprep.subr.bf16.mxu0 0
        %1961 = vmatpush1.bf16.msra.mxu0 0
        %1962 = vmatprep.subr.bf16.mxu0 0
        %1963 = vmatpush1.bf16.msra.mxu0 0
        %1964 = vmatprep.subr.bf16.mxu0 0
        %1965 = vmatpush1.bf16.msra.mxu0 0
        %1966 = vmatprep.subr.bf16.mxu0 0
        %1967 = vmatpush1.bf16.msra.mxu0 0
        %1968 = vmatprep.subr.bf16.mxu0 0
        %1969 = vmatpush1.bf16.msra.mxu0 0
        %1970 = vmatprep.subr.bf16.mxu0 0
        %1971 = vmatpush1.bf16.msra.mxu0 0
        %1972 = vmatprep.mubr.bf16.mxu0 0
        %1973 = vmatmul.mubr.bf16.gmra.mrb[0].mxu0 %v1935
        %v1974 = vpop.f32.mrb[0].mxu0
        %v1975 = vadd.f32 0.0, %v1974
        %v1976 = vpop.f32.mrb[0].mxu0
        %v1977 = vpop.f32.mrb[0].mxu0
        %v1978 = vpop.f32.mrb[0].mxu0
        %1979 = vdwg.mxu0
        %1980 = vrot.lane.b32.xlu0 %v838, 96
        %v1981 = vpop.permute.xlu0 %1980
        %v1983 = vsel %vm1032, %v1931, 0
        %v1986 = vsel %vm1080, %v1981, 0
        %1988 = vmatprep.subr.bf16.mxu0 0
        %1989 = vmatpush1.bf16.msra.mxu0 %v1986
        %1990 = vmatprep.subr.bf16.mxu0 0
        %1991 = vmatpush1.bf16.msra.mxu0 0
        %1992 = vmatprep.subr.bf16.mxu0 0
        %1993 = vmatpush1.bf16.msra.mxu0 0
        %1994 = vmatprep.subr.bf16.mxu0 0
        %1995 = vmatpush1.bf16.msra.mxu0 0
        %1996 = vmatprep.subr.bf16.mxu0 0
        %1997 = vmatpush1.bf16.msra.mxu0 0
        %1998 = vmatprep.subr.bf16.mxu0 0
        %1999 = vmatpush1.bf16.msra.mxu0 0
        %2000 = vmatprep.subr.bf16.mxu0 0
        %2001 = vmatpush1.bf16.msra.mxu0 0
        %2002 = vmatprep.subr.bf16.mxu0 0
        %2003 = vmatpush1.bf16.msra.mxu0 0
        %2004 = vmatprep.subr.bf16.mxu0 0
        %2005 = vmatpush1.bf16.msra.mxu0 0
        %2006 = vmatprep.subr.bf16.mxu0 0
        %2007 = vmatpush1.bf16.msra.mxu0 0
        %2008 = vmatprep.subr.bf16.mxu0 0
        %2009 = vmatpush1.bf16.msra.mxu0 0
        %2010 = vmatprep.subr.bf16.mxu0 0
        %2011 = vmatpush1.bf16.msra.mxu0 0
        %2012 = vmatprep.subr.bf16.mxu0 0
        %2013 = vmatpush1.bf16.msra.mxu0 0
        %2014 = vmatprep.subr.bf16.mxu0 0
        %2015 = vmatpush1.bf16.msra.mxu0 0
        %2016 = vmatprep.subr.bf16.mxu0 0
        %2017 = vmatpush1.bf16.msra.mxu0 0
        %2018 = vmatprep.subr.bf16.mxu0 0
        %2019 = vmatpush1.bf16.msra.mxu0 0
        %2020 = vmatprep.mubr.bf16.mxu0 0
        %2021 = vmatmul.mubr.bf16.gmra.mrb[0].mxu0 %v1983
        %v2022 = vpop.f32.mrb[0].mxu0
        %v2023 = vadd.f32 0.0, %v2022
        %v2024 = vpop.f32.mrb[0].mxu0
        %v2025 = vpop.f32.mrb[0].mxu0
        %v2026 = vpop.f32.mrb[0].mxu0
        %2027 = vdwg.mxu0
        %2028 = vrot.lane.b32.xlu0 %v839, 32
        %v2029 = vpop.permute.xlu0 %2028
        %v2032 = vsel %vm841, %v1926, 0
        %2034 = vmatprep.subr.bf16.mxu0 0
        %2035 = vmatpush1.bf16.msra.mxu0 %v2029
        %2036 = vmatprep.subr.bf16.mxu0 0
        %2037 = vmatpush1.bf16.msra.mxu0 0
        %2038 = vmatprep.subr.bf16.mxu0 0
        %2039 = vmatpush1.bf16.msra.mxu0 0
        %2040 = vmatprep.subr.bf16.mxu0 0
        %2041 = vmatpush1.bf16.msra.mxu0 0
        %2042 = vmatprep.subr.bf16.mxu0 0
        %2043 = vmatpush1.bf16.msra.mxu0 0
        %2044 = vmatprep.subr.bf16.mxu0 0
        %2045 = vmatpush1.bf16.msra.mxu0 0
        %2046 = vmatprep.subr.bf16.mxu0 0
        %2047 = vmatpush1.bf16.msra.mxu0 0
        %2048 = vmatprep.subr.bf16.mxu0 0
        %2049 = vmatpush1.bf16.msra.mxu0 0
        %2050 = vmatprep.subr.bf16.mxu0 0
        %2051 = vmatpush1.bf16.msra.mxu0 0
        %2052 = vmatprep.subr.bf16.mxu0 0
        %2053 = vmatpush1.bf16.msra.mxu0 0
        %2054 = vmatprep.subr.bf16.mxu0 0
        %2055 = vmatpush1.bf16.msra.mxu0 0
        %2056 = vmatprep.subr.bf16.mxu0 0
        %2057 = vmatpush1.bf16.msra.mxu0 0
        %2058 = vmatprep.subr.bf16.mxu0 0
        %2059 = vmatpush1.bf16.msra.mxu0 0
        %2060 = vmatprep.subr.bf16.mxu0 0
        %2061 = vmatpush1.bf16.msra.mxu0 0
        %2062 = vmatprep.subr.bf16.mxu0 0
        %2063 = vmatpush1.bf16.msra.mxu0 0
        %2064 = vmatprep.subr.bf16.mxu0 0
        %2065 = vmatpush1.bf16.msra.mxu0 0
        %2066 = vmatprep.mubr.bf16.mxu0 0
        %2067 = vmatmul.mubr.bf16.gmra.mrb[0].mxu0 %v2032
        %v2068 = vpop.f32.mrb[0].mxu0
        %v2069 = vadd.f32 %v1975, %v2068
        %v2070 = vpop.f32.mrb[0].mxu0
        %v2071 = vpop.f32.mrb[0].mxu0
        %v2072 = vpop.f32.mrb[0].mxu0
        %2073 = vdwg.mxu0
        %2074 = vrot.lane.b32.xlu0 %v840, 32
        %v2075 = vpop.permute.xlu0 %2074
        %v2078 = vsel %vm841, %v1927, 0
        %2080 = vmatprep.subr.bf16.mxu0 0
        %2081 = vmatpush1.bf16.msra.mxu0 %v2075
        %2082 = vmatprep.subr.bf16.mxu0 0
        %2083 = vmatpush1.bf16.msra.mxu0 0
        %2084 = vmatprep.subr.bf16.mxu0 0
        %2085 = vmatpush1.bf16.msra.mxu0 0
        %2086 = vmatprep.subr.bf16.mxu0 0
        %2087 = vmatpush1.bf16.msra.mxu0 0
        %2088 = vmatprep.subr.bf16.mxu0 0
        %2089 = vmatpush1.bf16.msra.mxu0 0
        %2090 = vmatprep.subr.bf16.mxu0 0
        %2091 = vmatpush1.bf16.msra.mxu0 0
        %2092 = vmatprep.subr.bf16.mxu0 0
        %2093 = vmatpush1.bf16.msra.mxu0 0
        %2094 = vmatprep.subr.bf16.mxu0 0
        %2095 = vmatpush1.bf16.msra.mxu0 0
        %2096 = vmatprep.subr.bf16.mxu0 0
        %2097 = vmatpush1.bf16.msra.mxu0 0
        %2098 = vmatprep.subr.bf16.mxu0 0
        %2099 = vmatpush1.bf16.msra.mxu0 0
        %2100 = vmatprep.subr.bf16.mxu0 0
        %2101 = vmatpush1.bf16.msra.mxu0 0
        %2102 = vmatprep.subr.bf16.mxu0 0
        %2103 = vmatpush1.bf16.msra.mxu0 0
        %2104 = vmatprep.subr.bf16.mxu0 0
        %2105 = vmatpush1.bf16.msra.mxu0 0
        %2106 = vmatprep.subr.bf16.mxu0 0
        %2107 = vmatpush1.bf16.msra.mxu0 0
        %2108 = vmatprep.subr.bf16.mxu0 0
        %2109 = vmatpush1.bf16.msra.mxu0 0
        %2110 = vmatprep.subr.bf16.mxu0 0
        %2111 = vmatpush1.bf16.msra.mxu0 0
        %2112 = vmatprep.mubr.bf16.mxu0 0
        %2113 = vmatmul.mubr.bf16.gmra.mrb[0].mxu0 %v2078
        %v2114 = vpop.f32.mrb[0].mxu0
        %v2115 = vadd.f32 %v2023, %v2114
        %v2116 = vpop.f32.mrb[0].mxu0
        %v2117 = vpop.f32.mrb[0].mxu0
        %v2118 = vpop.f32.mrb[0].mxu0
        %2119 = vdwg.mxu0
        %2120 = vrot.lane.b32.xlu0 %v827, 80
        %v2121 = vpop.permute.xlu0 %2120
        %2122 = vrot.lane.b32.xlu0 %v839, 80
        %v2123 = vpop.permute.xlu0 %2122
        %v2125 = vsel %vm841, %v2121, 0
        %v2128 = vsel %vm841, %v2123, 0
        %2130 = vmatprep.subr.bf16.mxu0 0
        %2131 = vmatpush1.bf16.xpose.msra.mxu0 %v2128
        %2132 = vmatprep.subr.bf16.mxu0 0
        %2133 = vmatpush1.bf16.xpose.msra.mxu0 0
        %2134 = vmatprep.subr.bf16.mxu0 0
        %2135 = vmatpush1.bf16.xpose.msra.mxu0 0
        %2136 = vmatprep.subr.bf16.mxu0 0
        %2137 = vmatpush1.bf16.xpose.msra.mxu0 0
        %2138 = vmatprep.subr.bf16.mxu0 0
        %2139 = vmatpush1.bf16.xpose.msra.mxu0 0
        %2140 = vmatprep.subr.bf16.mxu0 0
        %2141 = vmatpush1.bf16.xpose.msra.mxu0 0
        %2142 = vmatprep.subr.bf16.mxu0 0
        %2143 = vmatpush1.bf16.xpose.msra.mxu0 0
        %2144 = vmatprep.subr.bf16.mxu0 0
        %2145 = vmatpush1.bf16.xpose.msra.mxu0 0
        %2146 = vmatprep.subr.bf16.mxu0 0
        %2147 = vmatpush1.bf16.xpose.msra.mxu0 0
        %2148 = vmatprep.subr.bf16.mxu0 0
        %2149 = vmatpush1.bf16.xpose.msra.mxu0 0
        %2150 = vmatprep.subr.bf16.mxu0 0
        %2151 = vmatpush1.bf16.xpose.msra.mxu0 0
        %2152 = vmatprep.subr.bf16.mxu0 0
        %2153 = vmatpush1.bf16.xpose.msra.mxu0 0
        %2154 = vmatprep.subr.bf16.mxu0 0
        %2155 = vmatpush1.bf16.xpose.msra.mxu0 0
        %2156 = vmatprep.subr.bf16.mxu0 0
        %2157 = vmatpush1.bf16.xpose.msra.mxu0 0
        %2158 = vmatprep.subr.bf16.mxu0 0
        %2159 = vmatpush1.bf16.xpose.msra.mxu0 0
        %2160 = vmatprep.subr.bf16.mxu0 0
        %2161 = vmatpush1.bf16.xpose.msra.mxu0 0
        %2162 = vmatprep.mubr.bf16.mxu0 0
        %2163 = vmatmul.mubr.bf16.gmra.mrb[0].mxu0 %v2125
        %v2164 = vpop.f32.mrb[0].mxu0
        %v2165 = vadd.f32 0.0, %v2164
        %v2166 = vpop.f32.mrb[0].mxu0
        %v2167 = vpop.f32.mrb[0].mxu0
        %v2168 = vpop.f32.mrb[0].mxu0
        %2169 = vdwg.mxu0
        %2170 = vrot.lane.b32.xlu0 %v828, 80
        %v2171 = vpop.permute.xlu0 %2170
        %2172 = vrot.lane.b32.xlu0 %v840, 80
        %v2173 = vpop.permute.xlu0 %2172
        %v2175 = vsel %vm841, %v2171, 0
        %v2178 = vsel %vm841, %v2173, 0
        %2180 = vmatprep.subr.bf16.mxu0 0
        %2181 = vmatpush1.bf16.xpose.msra.mxu0 %v2178
        %2182 = vmatprep.subr.bf16.mxu0 0
        %2183 = vmatpush1.bf16.xpose.msra.mxu0 0
        %2184 = vmatprep.subr.bf16.mxu0 0
        %2185 = vmatpush1.bf16.xpose.msra.mxu0 0
        %2186 = vmatprep.subr.bf16.mxu0 0
        %2187 = vmatpush1.bf16.xpose.msra.mxu0 0
        %2188 = vmatprep.subr.bf16.mxu0 0
        %2189 = vmatpush1.bf16.xpose.msra.mxu0 0
        %2190 = vmatprep.subr.bf16.mxu0 0
        %2191 = vmatpush1.bf16.xpose.msra.mxu0 0
        %2192 = vmatprep.subr.bf16.mxu0 0
        %2193 = vmatpush1.bf16.xpose.msra.mxu0 0
        %2194 = vmatprep.subr.bf16.mxu0 0
        %2195 = vmatpush1.bf16.xpose.msra.mxu0 0
        %2196 = vmatprep.subr.bf16.mxu0 0
        %2197 = vmatpush1.bf16.xpose.msra.mxu0 0
        %2198 = vmatprep.subr.bf16.mxu0 0
        %2199 = vmatpush1.bf16.xpose.msra.mxu0 0
        %2200 = vmatprep.subr.bf16.mxu0 0
        %2201 = vmatpush1.bf16.xpose.msra.mxu0 0
        %2202 = vmatprep.subr.bf16.mxu0 0
        %2203 = vmatpush1.bf16.xpose.msra.mxu0 0
        %2204 = vmatprep.subr.bf16.mxu0 0
        %2205 = vmatpush1.bf16.xpose.msra.mxu0 0
        %2206 = vmatprep.subr.bf16.mxu0 0
        %2207 = vmatpush1.bf16.xpose.msra.mxu0 0
        %2208 = vmatprep.subr.bf16.mxu0 0
        %2209 = vmatpush1.bf16.xpose.msra.mxu0 0
        %2210 = vmatprep.subr.bf16.mxu0 0
        %2211 = vmatpush1.bf16.xpose.msra.mxu0 0
        %2212 = vmatprep.mubr.bf16.mxu0 0
        %2213 = vmatmul.mubr.bf16.gmra.mrb[0].mxu0 %v2175
        %v2214 = vpop.f32.mrb[0].mxu0
        %v2215 = vadd.f32 0.0, %v2214
        %v2216 = vpop.f32.mrb[0].mxu0
        %v2217 = vpop.f32.mrb[0].mxu0
        %v2218 = vpop.f32.mrb[0].mxu0
        %2219 = vdwg.mxu0
        %2220 = vrot.lane.b32.xlu0 %v934, 16
        %v2221 = vpop.permute.xlu0 %2220
        %v2223 = vsel %vm841, %v2221, 0
        %2225 = vmatprep.subr.bf16.mxu0 0
        %2226 = vmatpush1.bf16.xpose.msra.mxu0 %v2223
        %2227 = vmatprep.subr.bf16.mxu0 0
        %2228 = vmatpush1.bf16.xpose.msra.mxu0 0
        %2229 = vmatprep.subr.bf16.mxu0 0
        %2230 = vmatpush1.bf16.xpose.msra.mxu0 0
        %2231 = vmatprep.subr.bf16.mxu0 0
        %2232 = vmatpush1.bf16.xpose.msra.mxu0 0
        %2233 = vmatprep.subr.bf16.mxu0 0
        %2234 = vmatpush1.bf16.xpose.msra.mxu0 0
        %2235 = vmatprep.subr.bf16.mxu0 0
        %2236 = vmatpush1.bf16.xpose.msra.mxu0 0
        %2237 = vmatprep.subr.bf16.mxu0 0
        %2238 = vmatpush1.bf16.xpose.msra.mxu0 0
        %2239 = vmatprep.subr.bf16.mxu0 0
        %2240 = vmatpush1.bf16.xpose.msra.mxu0 0
        %2241 = vmatprep.subr.bf16.mxu0 0
        %2242 = vmatpush1.bf16.xpose.msra.mxu0 0
        %2243 = vmatprep.subr.bf16.mxu0 0
        %2244 = vmatpush1.bf16.xpose.msra.mxu0 0
        %2245 = vmatprep.subr.bf16.mxu0 0
        %2246 = vmatpush1.bf16.xpose.msra.mxu0 0
        %2247 = vmatprep.subr.bf16.mxu0 0
        %2248 = vmatpush1.bf16.xpose.msra.mxu0 0
        %2249 = vmatprep.subr.bf16.mxu0 0
        %2250 = vmatpush1.bf16.xpose.msra.mxu0 0
        %2251 = vmatprep.subr.bf16.mxu0 0
        %2252 = vmatpush1.bf16.xpose.msra.mxu0 0
        %2253 = vmatprep.subr.bf16.mxu0 0
        %2254 = vmatpush1.bf16.xpose.msra.mxu0 0
        %2255 = vmatprep.subr.bf16.mxu0 0
        %2256 = vmatpush1.bf16.xpose.msra.mxu0 0
        %2257 = vmatprep.mubr.bf16.mxu0 0
        %2258 = vmatmul.mubr.bf16.gmra.mrb[0].mxu0 %v2125
        %v2259 = vpop.f32.mrb[0].mxu0
        %v2260 = vadd.f32 0.0, %v2259
        %v2261 = vpop.f32.mrb[0].mxu0
        %v2262 = vpop.f32.mrb[0].mxu0
        %v2263 = vpop.f32.mrb[0].mxu0
        %2264 = vdwg.mxu0
        %2265 = vrot.lane.b32.xlu0 %v980, 16
        %v2266 = vpop.permute.xlu0 %2265
        %v2268 = vsel %vm841, %v2266, 0
        %2270 = vmatprep.subr.bf16.mxu0 0
        %2271 = vmatpush1.bf16.xpose.msra.mxu0 %v2268
        %2272 = vmatprep.subr.bf16.mxu0 0
        %2273 = vmatpush1.bf16.xpose.msra.mxu0 0
        %2274 = vmatprep.subr.bf16.mxu0 0
        %2275 = vmatpush1.bf16.xpose.msra.mxu0 0
        %2276 = vmatprep.subr.bf16.mxu0 0
        %2277 = vmatpush1.bf16.xpose.msra.mxu0 0
        %2278 = vmatprep.subr.bf16.mxu0 0
        %2279 = vmatpush1.bf16.xpose.msra.mxu0 0
        %2280 = vmatprep.subr.bf16.mxu0 0
        %2281 = vmatpush1.bf16.xpose.msra.mxu0 0
        %2282 = vmatprep.subr.bf16.mxu0 0
        %2283 = vmatpush1.bf16.xpose.msra.mxu0 0
        %2284 = vmatprep.subr.bf16.mxu0 0
        %2285 = vmatpush1.bf16.xpose.msra.mxu0 0
        %2286 = vmatprep.subr.bf16.mxu0 0
        %2287 = vmatpush1.bf16.xpose.msra.mxu0 0
        %2288 = vmatprep.subr.bf16.mxu0 0
        %2289 = vmatpush1.bf16.xpose.msra.mxu0 0
        %2290 = vmatprep.subr.bf16.mxu0 0
        %2291 = vmatpush1.bf16.xpose.msra.mxu0 0
        %2292 = vmatprep.subr.bf16.mxu0 0
        %2293 = vmatpush1.bf16.xpose.msra.mxu0 0
        %2294 = vmatprep.subr.bf16.mxu0 0
        %2295 = vmatpush1.bf16.xpose.msra.mxu0 0
        %2296 = vmatprep.subr.bf16.mxu0 0
        %2297 = vmatpush1.bf16.xpose.msra.mxu0 0
        %2298 = vmatprep.subr.bf16.mxu0 0
        %2299 = vmatpush1.bf16.xpose.msra.mxu0 0
        %2300 = vmatprep.subr.bf16.mxu0 0
        %2301 = vmatpush1.bf16.xpose.msra.mxu0 0
        %2302 = vmatprep.mubr.bf16.mxu0 0
        %2303 = vmatmul.mubr.bf16.gmra.mrb[0].mxu0 %v2175
        %v2304 = vpop.f32.mrb[0].mxu0
        %v2305 = vadd.f32 0.0, %v2304
        %v2306 = vpop.f32.mrb[0].mxu0
        %v2307 = vpop.f32.mrb[0].mxu0
        %v2308 = vpop.f32.mrb[0].mxu0
        %2309 = vdwg.mxu0
        %v2310 = vsel %vm841, %v2165, -inf
        %2311 = vmax.xlane.f32.xlu0 %v2310
        %v2312 = vpop.xlane.xlu0 %2311
        %v2313 = vsel %vm841, %v2215, -inf
        %2314 = vmax.xlane.f32.xlu0 %v2313
        %v2315 = vpop.xlane.xlu0 %2314
        %v2316 = vsel %vm1032, %v2260, -inf
        %2317 = vmax.xlane.f32.xlu0 %v2316
        %v2318 = vpop.xlane.xlu0 %2317
        %v2319 = vsel %vm1032, %v2305, -inf
        %2320 = vmax.xlane.f32.xlu0 %v2319
        %v2321 = vpop.xlane.xlu0 %2320
        %v2322 = vmax.f32 %v2312, %v2318
        %v2323 = vmax.f32 %v2315, %v2321
        %v2324 = vsub.f32 %v2165, %v2322
        %v2325 = vsub.f32 %v2215, %v2323
        %v2326 = vmul.f32 %v2324, 1.442695
        %v2327 = vpow.pop %v2326
        %v2328 = vmul.f32 %v2325, 1.442695
        %v2329 = vpow.pop %v2328
        %v2330 = vsub.f32 %v2260, %v2322
        %v2331 = vsub.f32 %v2305, %v2323
        %v2332 = vmul.f32 %v2330, 1.442695
        %v2333 = vpow.pop %v2332
        %v2334 = vmul.f32 %v2331, 1.442695
        %v2335 = vpow.pop %v2334
        %v2336 = vsel %vm841, %v2327, 0.0
        %2337 = vadd.xlane.f32.xlu0 %v2336
        %v2338 = vpop.xlane.xlu0 %2337
        %v2339 = vsel %vm841, %v2329, 0.0
        %2340 = vadd.xlane.f32.xlu0 %v2339
        %v2341 = vpop.xlane.xlu0 %2340
        %v2342 = vsel %vm1032, %v2333, 0.0
        %2343 = vadd.xlane.f32.xlu0 %v2342
        %v2344 = vpop.xlane.xlu0 %2343
        %v2345 = vsel %vm1032, %v2335, 0.0
        %2346 = vadd.xlane.f32.xlu0 %v2345
        %v2347 = vpop.xlane.xlu0 %2346
        %v2348 = vadd.f32 %v2338, %v2344
        %v2349 = vadd.f32 %v2341, %v2347
        %v2350 = vrcp.pop %v2348
        %v2351 = vrcp.pop %v2349
        %v2352 = vmul.f32 %v2327, %v2350
        %v2353 = vmul.f32 %v2329, %v2351
        %v2354 = vpack.c.bf16 %v2352, %v2352
        %v2355 = vpack.c.bf16 %v2353, %v2353
        %v2356 = vmul.f32 %v2333, %v2350
        %v2357 = vmul.f32 %v2335, %v2351
        %v2358 = vpack.c.bf16 %v2356, %v2356
        %v2359 = vpack.c.bf16 %v2357, %v2357
        %2360 = vrot.lane.b32.xlu0 %v837, 80
        %v2361 = vpop.permute.xlu0 %2360
        %v2363 = vsel %vm1032, %v2358, 0
        %v2366 = vsel %vm1080, %v2361, 0
        %2368 = vmatprep.subr.bf16.mxu0 0
        %2369 = vmatpush1.bf16.msra.mxu0 %v2366
        %2370 = vmatprep.subr.bf16.mxu0 0
        %2371 = vmatpush1.bf16.msra.mxu0 0
        %2372 = vmatprep.subr.bf16.mxu0 0
        %2373 = vmatpush1.bf16.msra.mxu0 0
        %2374 = vmatprep.subr.bf16.mxu0 0
        %2375 = vmatpush1.bf16.msra.mxu0 0
        %2376 = vmatprep.subr.bf16.mxu0 0
        %2377 = vmatpush1.bf16.msra.mxu0 0
        %2378 = vmatprep.subr.bf16.mxu0 0
        %2379 = vmatpush1.bf16.msra.mxu0 0
        %2380 = vmatprep.subr.bf16.mxu0 0
        %2381 = vmatpush1.bf16.msra.mxu0 0
        %2382 = vmatprep.subr.bf16.mxu0 0
        %2383 = vmatpush1.bf16.msra.mxu0 0
        %2384 = vmatprep.subr.bf16.mxu0 0
        %2385 = vmatpush1.bf16.msra.mxu0 0
        %2386 = vmatprep.subr.bf16.mxu0 0
        %2387 = vmatpush1.bf16.msra.mxu0 0
        %2388 = vmatprep.subr.bf16.mxu0 0
        %2389 = vmatpush1.bf16.msra.mxu0 0
        %2390 = vmatprep.subr.bf16.mxu0 0
        %2391 = vmatpush1.bf16.msra.mxu0 0
        %2392 = vmatprep.subr.bf16.mxu0 0
        %2393 = vmatpush1.bf16.msra.mxu0 0
        %2394 = vmatprep.subr.bf16.mxu0 0
        %2395 = vmatpush1.bf16.msra.mxu0 0
        %2396 = vmatprep.subr.bf16.mxu0 0
        %2397 = vmatpush1.bf16.msra.mxu0 0
        %2398 = vmatprep.subr.bf16.mxu0 0
        %2399 = vmatpush1.bf16.msra.mxu0 0
        %2400 = vmatprep.mubr.bf16.mxu0 0
        %2401 = vmatmul.mubr.bf16.gmra.mrb[0].mxu0 %v2363
        %v2402 = vpop.f32.mrb[0].mxu0
        %v2403 = vadd.f32 0.0, %v2402
        %v2404 = vpop.f32.mrb[0].mxu0
        %v2405 = vpop.f32.mrb[0].mxu0
        %v2406 = vpop.f32.mrb[0].mxu0
        %2407 = vdwg.mxu0
        %2408 = vrot.lane.b32.xlu0 %v838, 80
        %v2409 = vpop.permute.xlu0 %2408
        %v2411 = vsel %vm1032, %v2359, 0
        %v2414 = vsel %vm1080, %v2409, 0
        %2416 = vmatprep.subr.bf16.mxu0 0
        %2417 = vmatpush1.bf16.msra.mxu0 %v2414
        %2418 = vmatprep.subr.bf16.mxu0 0
        %2419 = vmatpush1.bf16.msra.mxu0 0
        %2420 = vmatprep.subr.bf16.mxu0 0
        %2421 = vmatpush1.bf16.msra.mxu0 0
        %2422 = vmatprep.subr.bf16.mxu0 0
        %2423 = vmatpush1.bf16.msra.mxu0 0
        %2424 = vmatprep.subr.bf16.mxu0 0
        %2425 = vmatpush1.bf16.msra.mxu0 0
        %2426 = vmatprep.subr.bf16.mxu0 0
        %2427 = vmatpush1.bf16.msra.mxu0 0
        %2428 = vmatprep.subr.bf16.mxu0 0
        %2429 = vmatpush1.bf16.msra.mxu0 0
        %2430 = vmatprep.subr.bf16.mxu0 0
        %2431 = vmatpush1.bf16.msra.mxu0 0
        %2432 = vmatprep.subr.bf16.mxu0 0
        %2433 = vmatpush1.bf16.msra.mxu0 0
        %2434 = vmatprep.subr.bf16.mxu0 0
        %2435 = vmatpush1.bf16.msra.mxu0 0
        %2436 = vmatprep.subr.bf16.mxu0 0
        %2437 = vmatpush1.bf16.msra.mxu0 0
        %2438 = vmatprep.subr.bf16.mxu0 0
        %2439 = vmatpush1.bf16.msra.mxu0 0
        %2440 = vmatprep.subr.bf16.mxu0 0
        %2441 = vmatpush1.bf16.msra.mxu0 0
        %2442 = vmatprep.subr.bf16.mxu0 0
        %2443 = vmatpush1.bf16.msra.mxu0 0
        %2444 = vmatprep.subr.bf16.mxu0 0
        %2445 = vmatpush1.bf16.msra.mxu0 0
        %2446 = vmatprep.subr.bf16.mxu0 0
        %2447 = vmatpush1.bf16.msra.mxu0 0
        %2448 = vmatprep.mubr.bf16.mxu0 0
        %2449 = vmatmul.mubr.bf16.gmra.mrb[0].mxu0 %v2411
        %v2450 = vpop.f32.mrb[0].mxu0
        %v2451 = vadd.f32 0.0, %v2450
        %v2452 = vpop.f32.mrb[0].mxu0
        %v2453 = vpop.f32.mrb[0].mxu0
        %v2454 = vpop.f32.mrb[0].mxu0
        %2455 = vdwg.mxu0
        %2456 = vrot.lane.b32.xlu0 %v839, 16
        %v2457 = vpop.permute.xlu0 %2456
        %v2460 = vsel %vm841, %v2354, 0
        %2462 = vmatprep.subr.bf16.mxu0 0
        %2463 = vmatpush1.bf16.msra.mxu0 %v2457
        %2464 = vmatprep.subr.bf16.mxu0 0
        %2465 = vmatpush1.bf16.msra.mxu0 0
        %2466 = vmatprep.subr.bf16.mxu0 0
        %2467 = vmatpush1.bf16.msra.mxu0 0
        %2468 = vmatprep.subr.bf16.mxu0 0
        %2469 = vmatpush1.bf16.msra.mxu0 0
        %2470 = vmatprep.subr.bf16.mxu0 0
        %2471 = vmatpush1.bf16.msra.mxu0 0
        %2472 = vmatprep.subr.bf16.mxu0 0
        %2473 = vmatpush1.bf16.msra.mxu0 0
        %2474 = vmatprep.subr.bf16.mxu0 0
        %2475 = vmatpush1.bf16.msra.mxu0 0
        %2476 = vmatprep.subr.bf16.mxu0 0
        %2477 = vmatpush1.bf16.msra.mxu0 0
        %2478 = vmatprep.subr.bf16.mxu0 0
        %2479 = vmatpush1.bf16.msra.mxu0 0
        %2480 = vmatprep.subr.bf16.mxu0 0
        %2481 = vmatpush1.bf16.msra.mxu0 0
        %2482 = vmatprep.subr.bf16.mxu0 0
        %2483 = vmatpush1.bf16.msra.mxu0 0
        %2484 = vmatprep.subr.bf16.mxu0 0
        %2485 = vmatpush1.bf16.msra.mxu0 0
        %2486 = vmatprep.subr.bf16.mxu0 0
        %2487 = vmatpush1.bf16.msra.mxu0 0
        %2488 = vmatprep.subr.bf16.mxu0 0
        %2489 = vmatpush1.bf16.msra.mxu0 0
        %2490 = vmatprep.subr.bf16.mxu0 0
        %2491 = vmatpush1.bf16.msra.mxu0 0
        %2492 = vmatprep.subr.bf16.mxu0 0
        %2493 = vmatpush1.bf16.msra.mxu0 0
        %2494 = vmatprep.mubr.bf16.mxu0 0
        %2495 = vmatmul.mubr.bf16.gmra.mrb[0].mxu0 %v2460
        %v2496 = vpop.f32.mrb[0].mxu0
        %v2497 = vadd.f32 %v2403, %v2496
        %v2498 = vpop.f32.mrb[0].mxu0
        %v2499 = vpop.f32.mrb[0].mxu0
        %v2500 = vpop.f32.mrb[0].mxu0
        %2501 = vdwg.mxu0
        %2502 = vrot.lane.b32.xlu0 %v840, 16
        %v2503 = vpop.permute.xlu0 %2502
        %v2506 = vsel %vm841, %v2355, 0
        %2508 = vmatprep.subr.bf16.mxu0 0
        %2509 = vmatpush1.bf16.msra.mxu0 %v2503
        %2510 = vmatprep.subr.bf16.mxu0 0
        %2511 = vmatpush1.bf16.msra.mxu0 0
        %2512 = vmatprep.subr.bf16.mxu0 0
        %2513 = vmatpush1.bf16.msra.mxu0 0
        %2514 = vmatprep.subr.bf16.mxu0 0
        %2515 = vmatpush1.bf16.msra.mxu0 0
        %2516 = vmatprep.subr.bf16.mxu0 0
        %2517 = vmatpush1.bf16.msra.mxu0 0
        %2518 = vmatprep.subr.bf16.mxu0 0
        %2519 = vmatpush1.bf16.msra.mxu0 0
        %2520 = vmatprep.subr.bf16.mxu0 0
        %2521 = vmatpush1.bf16.msra.mxu0 0
        %2522 = vmatprep.subr.bf16.mxu0 0
        %2523 = vmatpush1.bf16.msra.mxu0 0
        %2524 = vmatprep.subr.bf16.mxu0 0
        %2525 = vmatpush1.bf16.msra.mxu0 0
        %2526 = vmatprep.subr.bf16.mxu0 0
        %2527 = vmatpush1.bf16.msra.mxu0 0
        %2528 = vmatprep.subr.bf16.mxu0 0
        %2529 = vmatpush1.bf16.msra.mxu0 0
        %2530 = vmatprep.subr.bf16.mxu0 0
        %2531 = vmatpush1.bf16.msra.mxu0 0
        %2532 = vmatprep.subr.bf16.mxu0 0
        %2533 = vmatpush1.bf16.msra.mxu0 0
        %2534 = vmatprep.subr.bf16.mxu0 0
        %2535 = vmatpush1.bf16.msra.mxu0 0
        %2536 = vmatprep.subr.bf16.mxu0 0
        %2537 = vmatpush1.bf16.msra.mxu0 0
        %2538 = vmatprep.subr.bf16.mxu0 0
        %2539 = vmatpush1.bf16.msra.mxu0 0
        %2540 = vmatprep.mubr.bf16.mxu0 0
        %2541 = vmatmul.mubr.bf16.gmra.mrb[0].mxu0 %v2506
        %v2542 = vpop.f32.mrb[0].mxu0
        %v2543 = vadd.f32 %v2451, %v2542
        %v2544 = vpop.f32.mrb[0].mxu0
        %v2545 = vpop.f32.mrb[0].mxu0
        %v2546 = vpop.f32.mrb[0].mxu0
        %2547 = vdwg.mxu0
        %2550 = vrot.lane.b32.xlu0 %v1641, 16
        %v2551 = vpop.permute.xlu0 %2550
        %2552 = vrot.lane.b32.xlu0 %v1687, 16
        %v2553 = vpop.permute.xlu0 %2552
        %2558 = vrot.lane.b32.xlu0 %v2069, 32
        %v2559 = vpop.permute.xlu0 %2558
        %2560 = vrot.lane.b32.xlu0 %v2115, 32
        %v2561 = vpop.permute.xlu0 %2560
        %2566 = vrot.lane.b32.xlu0 %v2497, 48
        %v2567 = vpop.permute.xlu0 %2566
        %2568 = vrot.lane.b32.xlu0 %v2543, 48
        %v2569 = vpop.permute.xlu0 %2568
        %v2572 = vsel %vm841, %v1212, %v2551
        %v2573 = vsel %vm841, %v1259, %v2553
        %vm2574 = vcmask 261120
        %v2575 = vsel %vm2574, %v2572, %v2559
        %v2576 = vsel %vm2574, %v2573, %v2561
        %vm2577 = vcmask 392192
        %v2578 = vsel %vm2577, %v2575, %v2567
        %v2579 = vsel %vm2577, %v2576, %v2569
        %v2580 = vpack.c.bf16 %v2579, %v2578
        %v2581 = vld [vmem:[%s425] sm:$0xf]
        %v2582 = vld [vmem:[%s425 + $0x4] sm:$0xf]
        %v2583 = vld [vmem:[%s425 + $0x8] sm:$0xf]
        %v2584 = vld [vmem:[%s425 + $0xc] sm:$0xf]
        %v2585 = vld [vmem:[%s425 + $0x10] sm:$0xf]
        %v2586 = vld [vmem:[%s425 + $0x14] sm:$0xf]
        %v2587 = vld [vmem:[%s425 + $0x18] sm:$0xf]
        %v2588 = vld [vmem:[%s425 + $0x1c] sm:$0xf]
        %v2597 = vunpack.c.l.b16 %v2581
        %v2598 = vunpack.c.l.b16 %v2582
        %v2599 = vunpack.c.l.b16 %v2583
        %v2600 = vunpack.c.l.b16 %v2584
        %v2601 = vunpack.c.l.b16 %v2585
        %v2602 = vunpack.c.l.b16 %v2586
        %v2603 = vunpack.c.l.b16 %v2587
        %v2604 = vunpack.c.l.b16 %v2588
        %v2605 = vpack.c.b16 %v2598, %v2597
        %v2606 = vpack.c.b16 %v2600, %v2599
        %v2607 = vpack.c.b16 %v2602, %v2601
        %v2608 = vpack.c.b16 %v2604, %v2603
        %v2614 = vsel %vm536, %v2580, 0
        %2616 = vmatprep.subr.bf16.mxu0 0
        %2617 = vmatpush1.bf16.msra.mxu0 %v2605
        %2618 = vmatprep.subr.bf16.mxu0 0
        %2619 = vmatpush1.bf16.msra.mxu0 %v2606
        %2620 = vmatprep.subr.bf16.mxu0 0
        %2621 = vmatpush1.bf16.msra.mxu0 %v2607
        %2622 = vmatprep.subr.bf16.mxu0 0
        %2623 = vmatpush1.bf16.msra.mxu0 %v2608
        %2624 = vmatprep.subr.bf16.mxu0 0
        %2625 = vmatpush1.bf16.msra.mxu0 0
        %2626 = vmatprep.subr.bf16.mxu0 0
        %2627 = vmatpush1.bf16.msra.mxu0 0
        %2628 = vmatprep.subr.bf16.mxu0 0
        %2629 = vmatpush1.bf16.msra.mxu0 0
        %2630 = vmatprep.subr.bf16.mxu0 0
        %2631 = vmatpush1.bf16.msra.mxu0 0
        %2632 = vmatprep.subr.bf16.mxu0 0
        %2633 = vmatpush1.bf16.msra.mxu0 0
        %2634 = vmatprep.subr.bf16.mxu0 0
        %2635 = vmatpush1.bf16.msra.mxu0 0
        %2636 = vmatprep.subr.bf16.mxu0 0
        %2637 = vmatpush1.bf16.msra.mxu0 0
        %2638 = vmatprep.subr.bf16.mxu0 0
        %2639 = vmatpush1.bf16.msra.mxu0 0
        %2640 = vmatprep.subr.bf16.mxu0 0
        %2641 = vmatpush1.bf16.msra.mxu0 0
        %2642 = vmatprep.subr.bf16.mxu0 0
        %2643 = vmatpush1.bf16.msra.mxu0 0
        %2644 = vmatprep.subr.bf16.mxu0 0
        %2645 = vmatpush1.bf16.msra.mxu0 0
        %2646 = vmatprep.subr.bf16.mxu0 0
        %2647 = vmatpush1.bf16.msra.mxu0 0
        %2648 = vmatprep.mubr.bf16.mxu0 0
        %2649 = vmatmul.mubr.bf16.gmra.mrb[0].mxu0 %v2614
        %v2650 = vpop.f32.mrb[0].mxu0
        %v2651 = vadd.f32 0.0, %v2650
        %v2652 = vpop.f32.mrb[0].mxu0
        %v2653 = vpop.f32.mrb[0].mxu0
        %v2654 = vadd.f32 0.0, %v2653
        %v2655 = vpop.f32.mrb[0].mxu0
        %2656 = vdwg.mxu0
        %v2657 = vadd.f32 %v529, %v2651
        %v2658 = vadd.f32 %v530, %v2654
        %v2659 = vsel %vm536, %v2657, 0.0
        %2660 = vadd.xlane.f32.xlu0 %v2659
        %v2661 = vpop.xlane.xlu0 %2660
        %v2662 = vsel %vm536, %v2658, 0.0
        %2663 = vadd.xlane.f32.xlu0 %v2662
        %v2664 = vpop.xlane.xlu0 %2663
        %v2665 = vmul.f32 %v2661, %v549
        %v2666 = vmul.f32 %v2664, %v549
        %v2667 = vsub.f32 %v2657, %v2665
        %v2668 = vsub.f32 %v2658, %v2666
        %v2669 = vmul.f32 %v2667, %v2667
        %v2670 = vmul.f32 %v2668, %v2668
        %v2671 = vsel %vm536, %v2669, 0.0
        %2672 = vadd.xlane.f32.xlu0 %v2671
        %v2673 = vpop.xlane.xlu0 %2672
        %v2674 = vsel %vm536, %v2670, 0.0
        %2675 = vadd.xlane.f32.xlu0 %v2674
        %v2676 = vpop.xlane.xlu0 %2675
        %v2677 = vmul.f32 %v2673, %v549
        %v2678 = vmul.f32 %v2676, %v549
        %v2679 = vadd.f32 %v2677, 1e-05
        %v2680 = vadd.f32 %v2678, 1e-05
        %v2681 = vrsqrt.pop %v2679
        %v2682 = vrsqrt.pop %v2680
        %v2683 = vmul.f32 %v2667, %v2681
        %v2684 = vmul.f32 %v2668, %v2682
        %v2685 = vlaneseq
        %v2686 = vshrl.u32 %v2685, 7
        %v2687 = vsub.s32 4, %v2686
        %v2688 = vrot.slane %v535, %v2687
        %v2689 = vmul.f32 %v2683, %v2688
        %v2690 = vmul.f32 %v2684, %v2688
        %v2691 = vlaneseq
        %v2692 = vshrl.u32 %v2691, 7
        %v2693 = vsub.s32 5, %v2692
        %v2694 = vrot.slane %v535, %v2693
        %v2695 = vadd.f32 %v2689, %v2694
        %v2696 = vadd.f32 %v2690, %v2694
        %v2697 = vpack.c.bf16 %v2696, %v2695
        %v2698 = vld [vmem:[%s363] sm:$0xf]
        %v2699 = vld [vmem:[%s363 + $0x4] sm:$0xf]
        %v2700 = vld [vmem:[%s363 + $0x8] sm:$0xf]
        %v2701 = vld [vmem:[%s363 + $0xc] sm:$0xf]
        %v2702 = vld [vmem:[%s363 + $0x10] sm:$0xf]
        %v2703 = vld [vmem:[%s363 + $0x14] sm:$0xf]
        %v2704 = vld [vmem:[%s363 + $0x18] sm:$0xf]
        %v2705 = vld [vmem:[%s363 + $0x1c] sm:$0xf]
        %v2714 = vunpack.c.l.b16 %v2698
        %v2715 = vunpack.c.l.b16 %v2699
        %v2716 = vunpack.c.l.b16 %v2700
        %v2717 = vunpack.c.l.b16 %v2701
        %v2718 = vunpack.c.l.b16 %v2702
        %v2719 = vunpack.c.l.b16 %v2703
        %v2720 = vunpack.c.l.b16 %v2704
        %v2721 = vunpack.c.l.b16 %v2705
        %v2722 = vpack.c.b16 %v2715, %v2714
        %v2723 = vpack.c.b16 %v2717, %v2716
        %v2724 = vpack.c.b16 %v2719, %v2718
        %v2725 = vpack.c.b16 %v2721, %v2720
        %v2731 = vsel %vm536, %v2697, 0
        %2733 = vmatprep.subr.bf16.mxu0 0
        %2734 = vmatpush1.bf16.msra.mxu0 %v2722
        %2735 = vmatprep.subr.bf16.mxu0 0
        %2736 = vmatpush1.bf16.msra.mxu0 %v2723
        %2737 = vmatprep.subr.bf16.mxu0 0
        %2738 = vmatpush1.bf16.msra.mxu0 %v2724
        %2739 = vmatprep.subr.bf16.mxu0 0
        %2740 = vmatpush1.bf16.msra.mxu0 %v2725
        %2741 = vmatprep.subr.bf16.mxu0 0
        %2742 = vmatpush1.bf16.msra.mxu0 0
        %2743 = vmatprep.subr.bf16.mxu0 0
        %2744 = vmatpush1.bf16.msra.mxu0 0
        %2745 = vmatprep.subr.bf16.mxu0 0
        %2746 = vmatpush1.bf16.msra.mxu0 0
        %2747 = vmatprep.subr.bf16.mxu0 0
        %2748 = vmatpush1.bf16.msra.mxu0 0
        %2749 = vmatprep.subr.bf16.mxu0 0
        %2750 = vmatpush1.bf16.msra.mxu0 0
        %2751 = vmatprep.subr.bf16.mxu0 0
        %2752 = vmatpush1.bf16.msra.mxu0 0
        %2753 = vmatprep.subr.bf16.mxu0 0
        %2754 = vmatpush1.bf16.msra.mxu0 0
        %2755 = vmatprep.subr.bf16.mxu0 0
        %2756 = vmatpush1.bf16.msra.mxu0 0
        %2757 = vmatprep.subr.bf16.mxu0 0
        %2758 = vmatpush1.bf16.msra.mxu0 0
        %2759 = vmatprep.subr.bf16.mxu0 0
        %2760 = vmatpush1.bf16.msra.mxu0 0
        %2761 = vmatprep.subr.bf16.mxu0 0
        %2762 = vmatpush1.bf16.msra.mxu0 0
        %2763 = vmatprep.subr.bf16.mxu0 0
        %2764 = vmatpush1.bf16.msra.mxu0 0
        %2765 = vmatprep.mubr.bf16.mxu0 0
        %2766 = vmatmul.mubr.bf16.gmra.mrb[0].mxu0 %v2731
        %v2767 = vpop.f32.mrb[0].mxu0
        %v2768 = vadd.f32 0.0, %v2767
        %v2769 = vpop.f32.mrb[0].mxu0
        %v2770 = vpop.f32.mrb[0].mxu0
        %v2771 = vadd.f32 0.0, %v2770
        %v2772 = vpop.f32.mrb[0].mxu0
        %2773 = vdwg.mxu0
        %v2774 = vmul.f32 %v2768, 0.5
        %v2775 = vmul.f32 %v2771, 0.5
        %v2776 = vmul.f32 %v2768, 0.70710677
        %v2777 = vmul.f32 %v2771, 0.70710677
        %v2778 = verf.f32.pop %v2776
        %v2779 = verf.f32.pop %v2777
        %v2780 = vadd.f32 %v2778, 1.0
        %v2781 = vadd.f32 %v2779, 1.0
        %v2782 = vmul.f32 %v2774, %v2780
        %v2783 = vmul.f32 %v2775, %v2781
        %v2784 = vpack.c.bf16 %v2783, %v2782
        %v2785 = vld [vmem:[%s430] sm:$0xf]
        %v2786 = vld [vmem:[%s430 + $0x4] sm:$0xf]
        %v2787 = vld [vmem:[%s430 + $0x8] sm:$0xf]
        %v2788 = vld [vmem:[%s430 + $0xc] sm:$0xf]
        %v2789 = vld [vmem:[%s430 + $0x10] sm:$0xf]
        %v2790 = vld [vmem:[%s430 + $0x14] sm:$0xf]
        %v2791 = vld [vmem:[%s430 + $0x18] sm:$0xf]
        %v2792 = vld [vmem:[%s430 + $0x1c] sm:$0xf]
        %v2793 = vld [vmem:[%s430 + $0x20] sm:$0xf]
        %v2794 = vld [vmem:[%s430 + $0x24] sm:$0xf]
        %v2795 = vld [vmem:[%s430 + $0x28] sm:$0xf]
        %v2796 = vld [vmem:[%s430 + $0x2c] sm:$0xf]
        %v2797 = vld [vmem:[%s430 + $0x30] sm:$0xf]
        %v2798 = vld [vmem:[%s430 + $0x34] sm:$0xf]
        %v2799 = vld [vmem:[%s430 + $0x38] sm:$0xf]
        %v2800 = vld [vmem:[%s430 + $0x3c] sm:$0xf]
        %v2817 = vunpack.c.l.b16 %v2785
        %v2818 = vunpack.c.l.b16 %v2786
        %v2819 = vunpack.c.l.b16 %v2787
        %v2820 = vunpack.c.l.b16 %v2788
        %v2821 = vunpack.c.l.b16 %v2789
        %v2822 = vunpack.c.l.b16 %v2790
        %v2823 = vunpack.c.l.b16 %v2791
        %v2824 = vunpack.c.l.b16 %v2792
        %v2825 = vunpack.c.l.b16 %v2793
        %v2826 = vunpack.c.l.b16 %v2794
        %v2827 = vunpack.c.l.b16 %v2795
        %v2828 = vunpack.c.l.b16 %v2796
        %v2829 = vunpack.c.l.b16 %v2797
        %v2830 = vunpack.c.l.b16 %v2798
        %v2831 = vunpack.c.l.b16 %v2799
        %v2832 = vunpack.c.l.b16 %v2800
        %v2833 = vpack.c.b16 %v2818, %v2817
        %v2834 = vpack.c.b16 %v2820, %v2819
        %v2835 = vpack.c.b16 %v2822, %v2821
        %v2836 = vpack.c.b16 %v2824, %v2823
        %v2837 = vpack.c.b16 %v2826, %v2825
        %v2838 = vpack.c.b16 %v2828, %v2827
        %v2839 = vpack.c.b16 %v2830, %v2829
        %v2840 = vpack.c.b16 %v2832, %v2831
        %2849 = vmatprep.subr.bf16.mxu0 0
        %2850 = vmatpush1.bf16.msra.mxu0 %v2833
        %2851 = vmatprep.subr.bf16.mxu0 0
        %2852 = vmatpush1.bf16.msra.mxu0 %v2834
        %2853 = vmatprep.subr.bf16.mxu0 0
        %2854 = vmatpush1.bf16.msra.mxu0 %v2835
        %2855 = vmatprep.subr.bf16.mxu0 0
        %2856 = vmatpush1.bf16.msra.mxu0 %v2836
        %2857 = vmatprep.subr.bf16.mxu0 0
        %2858 = vmatpush1.bf16.msra.mxu0 %v2837
        %2859 = vmatprep.subr.bf16.mxu0 0
        %2860 = vmatpush1.bf16.msra.mxu0 %v2838
        %2861 = vmatprep.subr.bf16.mxu0 0
        %2862 = vmatpush1.bf16.msra.mxu0 %v2839
        %2863 = vmatprep.subr.bf16.mxu0 0
        %2864 = vmatpush1.bf16.msra.mxu0 %v2840
        %2865 = vmatprep.subr.bf16.mxu0 0
        %2866 = vmatpush1.bf16.msra.mxu0 0
        %2867 = vmatprep.subr.bf16.mxu0 0
        %2868 = vmatpush1.bf16.msra.mxu0 0
        %2869 = vmatprep.subr.bf16.mxu0 0
        %2870 = vmatpush1.bf16.msra.mxu0 0
        %2871 = vmatprep.subr.bf16.mxu0 0
        %2872 = vmatpush1.bf16.msra.mxu0 0
        %2873 = vmatprep.subr.bf16.mxu0 0
        %2874 = vmatpush1.bf16.msra.mxu0 0
        %2875 = vmatprep.subr.bf16.mxu0 0
        %2876 = vmatpush1.bf16.msra.mxu0 0
        %2877 = vmatprep.subr.bf16.mxu0 0
        %2878 = vmatpush1.bf16.msra.mxu0 0
        %2879 = vmatprep.subr.bf16.mxu0 0
        %2880 = vmatpush1.bf16.msra.mxu0 0
        %2881 = vmatprep.mubr.bf16.mxu0 0
        %2882 = vmatmul.mubr.bf16.gmra.mrb[0].mxu0 %v2784
        %v2883 = vpop.f32.mrb[0].mxu0
        %v2884 = vadd.f32 0.0, %v2883
        %v2885 = vpop.f32.mrb[0].mxu0
        %v2886 = vpop.f32.mrb[0].mxu0
        %v2887 = vadd.f32 0.0, %v2886
        %v2888 = vpop.f32.mrb[0].mxu0
        %2889 = vdwg.mxu0
        %v2890 = vadd.f32 %v2657, %v2884
        %v2891 = vadd.f32 %v2658, %v2887
        %2892 = vst.msk [vmem:[#allocation8] sm:$0xff] %vm536, %v2890
        %2893 = vst.msk [vmem:[#allocation8 + $0x8] sm:$0xff] %vm536, %v2891
        // Predicated region
        $region69: #{tpu_custom_call.1} parent=55 // pred_check
          %p2894 = pneg %p252
        $region70: #{tpu_custom_call.1} parent=55 // pred_check_branch
          %2896 = sbr.rel (%p2894) target = $region72
        $region71: #{tpu_custom_call.1} parent=55 // pred_region
          %s2898 = ssub.s32 256, 256
          %2899 = vsyncadd [#allocation5], %s2898
          %s2900 = sshll.u32 [#allocation8], 4
          %s2901 = int_to_ptr.vmem [resolvable:$true] %s2900
          %2906 = dma.vmem_to_hbm [thread:$0]  %s2901, 256, %s9, [#allocation5], 128, 128, 8
        $region72: #{tpu_custom_call.1} parent=55 // pred_fallthru
          _
        // Predicated region
        $region73: #{tpu_custom_call.1} parent=55 // pred_check
          %p2907 = pneg %p252
        $region74: #{tpu_custom_call.1} parent=55 // pred_check_branch
          %2909 = sbr.rel (%p2907) target = $region76
        $region75: #{tpu_custom_call.1} parent=55 // pred_region
          %2910 = dma.done [#allocation5], 256
        $region76: #{tpu_custom_call.1} parent=55 // pred_fallthru
          _
      $region56: #{tpu_custom_call.1} parent=5 // pred_fallthru
        _
      %p2911 = scmp.le.s32.totalorder 2, %s20
      // Predicated region
      $region77: #{tpu_custom_call.1} parent=5 // pred_check
        %p2912 = pneg %p2911
      $region78: #{tpu_custom_call.1} parent=5 // pred_check_branch
        %2914 = sbr.rel (%p2912) target = $region80
      $region79: #{tpu_custom_call.1} parent=5 // pred_region
        %s2915 = ssub.s32 %s20, 2
      $region80: #{tpu_custom_call.1} parent=5 // pred_fallthru
        _
    $region6: #{tpu_custom_call.1} parent=1 // loop_footer
      %s24 = sadd.s32 1, %s20
    $region7: #{tpu_custom_call.1} parent=1 // loop_footer_branch
      %19 = sbr.rel target = $region3
    $region8: #{tpu_custom_call.1} parent=1 // loop_exit
      _
    %2916 = vsyncpa [#allocation4], 1
    %s2917 = scalar_lea.sflag [#allocation4], 1
    %2918 = vsyncpa %s2917, 1
    %2919 = vsyncpa [#allocation7], 1
    %s2920 = scalar_lea.sflag [#allocation7], 1
    %2921 = vsyncpa %s2920, 1
    %2922 = vsyncpa [#allocation5], 1
    %s2923 = scalar_lea.sflag [#allocation5], 1
    %2924 = vsyncpa %s2923, 1

</llo_original>
